<compile_context>
chip_gen: v6e
topology: v6e:2x2x1
jax: 0.10.0
libtpu: 0.0.40
codegen_flags: <defaults>
</compile_context>

<pallas_src>
import functools

import jax
import jax.numpy as jnp
import numpy as np
from jax import lax
from jax.experimental import pallas as pl
from jax.experimental.pallas import tpu as pltpu

LRELU_SLOPE = 0.2
BN_EPS = 1e-5


# ---------------------------------------------------------------------------
# In-kernel helpers
# ---------------------------------------------------------------------------
def _leaky_relu(x):
    return jnp.where(x > 0, x, LRELU_SLOPE * x)


def _conv3x3(x, w_taps_ref, col, width):
    """3x3 same-padded conv in channel-major layout.

    x:          (Cin, P) bf16, P = H*W pixels in the lane dim (row-major within the image).
    w_taps_ref: (9, Cout, Cin) bf16 ref, tap t = ky*3 + kx.
    col:        (1, P) int32 column-index iota (p % W).
    Returns (Cout, P) f32.

    Tap (dy, dx) reads pixel p + dy*W + dx: the pixel axis is zero-extended by W+1 lanes on each
    side once, and each tap is a static lane-offset slice of that buffer (zero-fill shift), so the
    top/bottom image padding is free; only the column wrap between image rows needs a single
    comparison mask (6 of 9 taps).  Each tap contributes one accumulated MXU dot.
    """
    cin, npix = x.shape
    cout = w_taps_ref.shape[1]
    zpad = jnp.zeros((cin, width + 1), x.dtype)
    xp = jnp.concatenate([zpad, x, zpad], axis=1)            # (Cin, P + 2W + 2)

    acc = jnp.zeros((cout, npix), jnp.float32)
    for t in range(9):
        dy, dx = t // 3 - 1, t % 3 - 1
        off = dy * width + dx                                 # flattened neighbor offset
        if off == 0:
            tap = x
        else:
            tap = xp[:, width + 1 + off: width + 1 + off + npix]   # tap[:, p] = x[:, p+off] (0 outside)
        if dx < 0:                                            # kill column wrap from previous row
            tap = jnp.where(col >= -dx, tap, jnp.zeros_like(tap))
        elif dx > 0:                                          # ... and from the next row
            tap = jnp.where(col < width - dx, tap, jnp.zeros_like(tap))
        acc = acc + jnp.dot(w_taps_ref[t], tap, preferred_element_type=jnp.float32)
    return acc


# ---------------------------------------------------------------------------
# Pallas kernels
# ---------------------------------------------------------------------------
def _pass1_kernel(x_ref, w1_ref, b1_ref, w2_ref, b2_ref, e2_ref, stats_ref, *, H, W, ipb):
    """conv1 + leaky_relu + conv2 on `ipb` whole images; emits e2 (f32) + BN partial sums."""
    p = H * W
    col = lax.broadcasted_iota(jnp.int32, (1, p), 1) % W

    s_sum = jnp.zeros((16, 1), jnp.float32)
    s_sq = jnp.zeros((16, 1), jnp.float32)
    for b in range(ipb):                                      # static unroll over images in block
        a1 = _conv3x3(x_ref[b], w1_ref, col, W) + b1_ref[...]                 # (64, P) f32
        a1 = _leaky_relu(a1).astype(jnp.bfloat16)
        e2 = _conv3x3(a1, w2_ref, col, W) + b2_ref[...]                       # (16, P) f32
        e2_ref[b] = e2                                        # lane-dense (16, H*W) f32 store
        s_sum = s_sum + jnp.sum(e2, axis=1, keepdims=True)
        s_sq = s_sq + jnp.sum(e2 * e2, axis=1, keepdims=True)
    stats_ref[0, :, 0:1] = s_sum                              # BN partial sums for this block
    stats_ref[0, :, 1:2] = s_sq


def _pass2_kernel(stats_ref, gamma_ref, beta_ref, e2_ref, w3_ref, b3_ref, y_ref, *, H, W, ipb, m_px):
    """In-kernel BN reduction + affine + leaky_relu + conv3 + tanh on `ipb` whole images."""
    p = H * W
    col = lax.broadcasted_iota(jnp.int32, (1, p), 1) % W

    # Cross-block BatchNorm reduction (training mode, biased variance over N*H*W).  The partial
    # sums are tiny and VMEM-resident, so recomputing this per grid step replaces the four XLA
    # micro-ops that used to sit between the two pallas_calls.
    tot = jnp.sum(stats_ref[...], axis=0)                     # (16, 2)
    mean = tot[:, 0:1] * (1.0 / m_px)
    var = jnp.maximum(tot[:, 1:2] * (1.0 / m_px) - mean * mean, 0.0)
    inv = lax.rsqrt(var + BN_EPS)
    scale = gamma_ref[...] * inv                              # (16, 1)
    shift = beta_ref[...] - mean * scale

    for b in range(ipb):
        a2 = e2_ref[b] * scale + shift                        # (16, P) f32
        a2 = _leaky_relu(a2).astype(jnp.bfloat16)
        e3 = _conv3x3(a2, w3_ref, col, W) + b3_ref[...]       # (3, P) f32
        y_ref[b] = jnp.tanh(e3)                               # lane-dense (3, H*W) f32 store


# ---------------------------------------------------------------------------
# JAX glue: weight folding, tile selection, forward wrapper
# ---------------------------------------------------------------------------
def _fold_conv_weight(w_oihw):
    """PyTorch (Cout, Cin, 3, 3) -> (9, Cout, Cin), tap index t = ky*3 + kx."""
    cout, cin, kh, kw = w_oihw.shape
    return jnp.transpose(w_oihw, (2, 3, 0, 1)).reshape(kh * kw, cout, cin)


def _vmem_limit_bytes():
    """Scoped-VMEM limit: ~3/4 of the chip's physical VMEM (defaults are far below physical)."""
    try:
        cap = int(pltpu.get_tpu_info().vmem_capacity_bytes)
    except Exception:                                         # pragma: no cover - older jax / CPU
        cap = 64 * 1024 * 1024                                # conservative: v7x per-TC physical
    return max(32 * 1024 * 1024, cap * 3 // 4)


# Rough peak VMEM bytes per pixel in pass 1 (a1 bf16 + f32 accumulators + tap copy + double-
# buffered x / e2 blocks), used to bound the images-per-block choice.
_PASS1_BYTES_PER_PX = 1536


def _pick_images_per_block(n, px_per_image, vmem_budget):
    if px_per_image * _PASS1_BYTES_PER_PX > vmem_budget:
        # TODO(synk): very large single images need halo'd row tiles (manual make_async_copy).
        raise NotImplementedError("image too large for whole-image blocks")
    cap = max(1, vmem_budget // (_PASS1_BYTES_PER_PX * px_per_image))   # VMEM ceiling
    target = max(1, -(-4096 // px_per_image))                 # aim for >= ~4k pixels per grid step
    ipb = min(n, cap, target)
    if n >= 2:
        ipb = min(ipb, n // 2)     # keep >= 2 "parallel" grid steps so v7x's 2nd TC has work
    while n % ipb:                 # images-per-block must divide the batch
        ipb -= 1
    return ipb


def _const_spec(shape):
    """Constant index_map: the operand stays VMEM-resident across all grid steps."""
    nd = len(shape)
    return pl.BlockSpec(shape, lambda i, _nd=nd: (0,) * _nd)


@jax.jit
def fcn_forward(x_nchw, params):
    n, cin, h, w = x_nchw.shape
    p = h * w                      # pixels per image = lane dim (multiple of 128 for typical sizes)

    # NCHW is already channel-major, so the kernel's (C, P) layout is a free reshape.  Pre-cast to
    # bf16 so the pass-1 input DMA moves half the bytes (the conv operands are bf16 anyway).
    xr = x_nchw.reshape(n, cin, p).astype(jnp.bfloat16)

    w1 = _fold_conv_weight(params["w1"]).astype(jnp.bfloat16)   # (9, 64, cin)
    w2 = _fold_conv_weight(params["w2"]).astype(jnp.bfloat16)   # (9, 16, 64)
    w3 = _fold_conv_weight(params["w3"]).astype(jnp.bfloat16)   # (9, 3, 16)
    b1 = params["b1"].reshape(64, 1).astype(jnp.float32)
    b2 = params["b2"].reshape(16, 1).astype(jnp.float32)
    b3 = params["b3"].reshape(3, 1).astype(jnp.float32)
    gamma = params["gamma"].reshape(16, 1).astype(jnp.float32)
    beta = params["beta"].reshape(16, 1).astype(jnp.float32)

    vmem_budget = _vmem_limit_bytes()
    ipb = _pick_images_per_block(n, p, vmem_budget)
    g = n // ipb
    cparams = pltpu.CompilerParams(dimension_semantics=("parallel",),
                                   vmem_limit_bytes=vmem_budget)

    # ---- pass 1: conv1 + leaky_relu + conv2 (+ BN partial sums), whole image(s) per step -------
    e2, stats = pl.pallas_call(
        functools.partial(_pass1_kernel, H=h, W=w, ipb=ipb),
        grid=(g,),
        in_specs=[
            pl.BlockSpec((ipb, cin, p), lambda i: (i, 0, 0)),
            _const_spec(w1.shape), _const_spec(b1.shape),
            _const_spec(w2.shape), _const_spec(b2.shape),
        ],
        out_specs=(
            pl.BlockSpec((ipb, 16, p), lambda i: (i, 0, 0)),
            pl.BlockSpec((1, 16, 2), lambda i: (i, 0, 0)),
        ),
        out_shape=(
            # e2 kept in f32 so the BN statistics and the normalized activations stay consistent.
            jax.ShapeDtypeStruct((n, 16, p), jnp.float32),
            jax.ShapeDtypeStruct((g, 16, 2), jnp.float32),
        ),
        compiler_params=cparams,
        cost_estimate=pl.CostEstimate(
            flops=2 * n * p * 9 * (cin * 64 + 64 * 16),
            transcendentals=0,
            bytes_accessed=int(xr.size * 2 + (w1.size + w2.size) * 2 + (b1.size + b2.size) * 4
                               + n * p * 16 * 4 + g * 32 * 4),
        ),
    )(xr, w1, b1, w2, b2)

    # ---- pass 2: BN (reduced in-kernel) + leaky_relu + conv3 + tanh ----------------------------
    y = pl.pallas_call(
        functools.partial(_pass2_kernel, H=h, W=w, ipb=ipb, m_px=n * p),
        grid=(g,),
        in_specs=[
            _const_spec(stats.shape),                          # every block's BN partial sums
            _const_spec(gamma.shape), _const_spec(beta.shape),
            pl.BlockSpec((ipb, 16, p), lambda i: (i, 0, 0)),
            _const_spec(w3.shape), _const_spec(b3.shape),
        ],
        out_specs=pl.BlockSpec((ipb, 3, p), lambda i: (i, 0, 0)),
        out_shape=jax.ShapeDtypeStruct((n, 3, p), jnp.float32),
        compiler_params=cparams,
        cost_estimate=pl.CostEstimate(
            flops=2 * n * p * 9 * 16 * 3,
            transcendentals=n * p * 3,
            bytes_accessed=int(n * p * 16 * 4 + g * 32 * 4 + w3.size * 2 + (b3.size + 32) * 4
                               + n * p * 3 * 4),
        ),
    )(stats, gamma, beta, e2, w3, b3)

    # Output is already channel-major (NCHW): just un-flatten the pixel axis.
    return y.reshape(n, 3, h, w)


# ---------------------------------------------------------------------------
# Parameter init (PyTorch Conv2d defaults) and pure-JAX reference
# ---------------------------------------------------------------------------
def init_params(key, input_nc=3):
    ks = jax.random.split(key, 6)

    def conv_init(kw, kb, cin, cout):
        bound = 1.0 / np.sqrt(cin * 9)
        wgt = jax.random.uniform(kw, (cout, cin, 3, 3), jnp.float32, -bound, bound)
        b = jax.random.uniform(kb, (cout,), jnp.float32, -bound, bound)
        return wgt, b

    w1, b1 = conv_init(ks[0], ks[1], input_nc, 64)
    w2, b2 = conv_init(ks[2], ks[3], 64, 16)
    w3, b3 = conv_init(ks[4], ks[5], 16, 3)
    return dict(w1=w1, b1=b1, w2=w2, b2=b2, w3=w3, b3=b3,
                gamma=jnp.ones((16,), jnp.float32), beta=jnp.zeros((16,), jnp.float32))


def fcn_reference(x_nchw, params):
    def conv(x, wgt, b):
        y = lax.conv_general_dilated(
            x, wgt, (1, 1), ((1, 1), (1, 1)),
            dimension_numbers=("NCHW", "OIHW", "NCHW"),
            precision=lax.Precision.HIGHEST,
        )
        return y + b.reshape(1, -1, 1, 1)

    e1 = conv(x_nchw, params["w1"], params["b1"])
    a1 = jnp.where(e1 > 0, e1, LRELU_SLOPE * e1)
    e2 = conv(a1, params["w2"], params["b2"])
    mean = jnp.mean(e2, axis=(0, 2, 3), keepdims=True)
    var = jnp.mean((e2 - mean) ** 2, axis=(0, 2, 3), keepdims=True)
    e2 = (e2 - mean) * lax.rsqrt(var + BN_EPS)
    e2 = e2 * params["gamma"].reshape(1, 16, 1, 1) + params["beta"].reshape(1, 16, 1, 1)
    a2 = jnp.where(e2 > 0, e2, LRELU_SLOPE * e2)
    e3 = conv(a2, params["w3"], params["b3"])
    return jnp.tanh(e3)


if __name__ == "__main__":
    key = jax.random.PRNGKey(0)
    kx, kp = jax.random.split(key)
    x = jax.random.normal(kx, (2, 3, 16, 16), jnp.float32)            # NCHW, like PyTorch
    params = init_params(kp, input_nc=3)

    out = jax.block_until_ready(fcn_forward(x, params))
    assert out.shape == (2, 3, 16, 16) and out.dtype == jnp.float32

    ref = jax.block_until_ready(fcn_reference(x, params))
    # bf16 MXU operands (f32 accumulate) in all three convs -> looser tolerance than pure f32.
    np.testing.assert_allclose(np.asarray(out), np.asarray(ref), atol=2.5e-2, rtol=0)

    print("KERNEL_OK")
</pallas_src>

<mosaic_0001>
module attributes {stable_mosaic.version = 11 : i64} {
  func.func @_pass1_kernel(%arg0: i32, %arg1: memref<1x3x256xbf16, #tpu.memory_space<vmem>>, %arg2: memref<9x64x3xbf16, #tpu.memory_space<vmem>>, %arg3: memref<64x1xf32, #tpu.memory_space<vmem>>, %arg4: memref<9x16x64xbf16, #tpu.memory_space<vmem>>, %arg5: memref<16x1xf32, #tpu.memory_space<vmem>>, %arg6: memref<1x16x256xf32, #tpu.memory_space<vmem>>, %arg7: memref<1x16x2xf32, #tpu.memory_space<vmem>>) attributes {dimension_semantics = [#tpu.dimension_semantics<parallel>], iteration_bounds = array<i64: 2>, scalar_prefetch = 0 : i64, scratch_operands = 0 : i64, tpu.core_type = #tpu.core_type<tc>, window_params = [{transform_indices = @transform_0, window_bounds = array<i64: 1, 3, 256>}, {pipeline_mode = #tpu.pipeline_mode<synchronous>, transform_indices = @transform_1, window_bounds = array<i64: 9, 64, 3>}, {pipeline_mode = #tpu.pipeline_mode<synchronous>, transform_indices = @transform_2, window_bounds = array<i64: 64, 1>}, {pipeline_mode = #tpu.pipeline_mode<synchronous>, transform_indices = @transform_3, window_bounds = array<i64: 9, 16, 64>}, {pipeline_mode = #tpu.pipeline_mode<synchronous>, transform_indices = @transform_4, window_bounds = array<i64: 16, 1>}, {transform_indices = @transform_5, window_bounds = array<i64: 1, 16, 256>}, {transform_indices = @transform_6, window_bounds = array<i64: 1, 16, 2>}]} {
    %0 = tpu.iota {dimensions = array<i32: 1>} : vector<1x256xi32>
    %c16_i32 = arith.constant 16 : i32
    %c0_i32 = arith.constant 0 : i32
    %1 = arith.cmpi eq, %c16_i32, %c0_i32 : i32
    %c1_i32 = arith.constant 1 : i32
    %2 = arith.select %1, %c1_i32, %c16_i32 : i32
    %3 = vector.broadcast %2 : i32 to vector<1x256xi32>
    %4 = arith.remsi %0, %3 : vector<1x256xi32>
    %c0_i32_0 = arith.constant 0 : i32
    %5 = vector.broadcast %c0_i32_0 : i32 to vector<1x256xi32>
    %6 = arith.cmpi ne, %4, %5 : vector<1x256xi32>
    %c0_i32_1 = arith.constant 0 : i32
    %7 = vector.broadcast %c0_i32_1 : i32 to vector<1x256xi32>
    %8 = arith.cmpi slt, %4, %7 : vector<1x256xi32>
    %c0_i32_2 = arith.constant 0 : i32
    %9 = arith.cmpi slt, %2, %c0_i32_2 : i32
    %10 = vector.broadcast %9 : i1 to vector<1x256xi1>
    %11 = vector.broadcast %10 : vector<1x256xi1> to vector<1x256xi1>
    %12 = arith.xori %8, %11 : vector<1x256xi1>
    %13 = arith.andi %12, %6 : vector<1x256xi1>
    %14 = vector.broadcast %2 : i32 to vector<1x256xi32>
    %15 = arith.addi %4, %14 : vector<1x256xi32>
    %16 = arith.select %13, %15, %4 : vector<1x256xi1>, vector<1x256xi32>
    %cst = arith.constant 0.000000e+00 : f32
    %17 = vector.broadcast %cst : f32 to vector<16x1xf32>
    %cst_3 = arith.constant 0.000000e+00 : f32
    %18 = vector.broadcast %cst_3 : f32 to vector<16x1xf32>
    %c0 = arith.constant 0 : index
    %c0_4 = arith.constant 0 : index
    %c0_5 = arith.constant 0 : index
    %19 = vector.load %arg1[%c0, %c0_4, %c0_5] : memref<1x3x256xbf16, #tpu.memory_space<vmem>>, vector<1x3x256xbf16>
    %20 = vector.shape_cast %19 : vector<1x3x256xbf16> to vector<3x256xbf16>
    %cst_6 = arith.constant 0.000000e+00 : bf16
    %21 = vector.broadcast %cst_6 : bf16 to vector<3x17xbf16>
    %22 = tpu.concatenate %21, %20, %21 in 1 : vector<3x17xbf16>, vector<3x256xbf16>, vector<3x17xbf16> -> vector<3x290xbf16>
    %cst_7 = arith.constant 0.000000e+00 : f32
    %23 = vector.broadcast %cst_7 : f32 to vector<64x256xf32>
    %24 = vector.extract_strided_slice %22 {offsets = [0, 0], sizes = [3, 256], strides = [1, 1]} : vector<3x290xbf16> to vector<3x256xbf16>
    %c1_i32_8 = arith.constant 1 : i32
    %25 = vector.broadcast %c1_i32_8 : i32 to vector<1x256xi32>
    %26 = arith.cmpi sge, %16, %25 : vector<1x256xi32>
    %cst_9 = arith.constant 0.000000e+00 : bf16
    %27 = vector.broadcast %cst_9 : bf16 to vector<3x256xbf16>
    %28 = vector.shape_cast %26 : vector<1x256xi1> to vector<1x256xi1>
    %29 = vector.broadcast %28 : vector<1x256xi1> to vector<3x256xi1>
    %30 = arith.select %29, %24, %27 : vector<3x256xi1>, vector<3x256xbf16>
    %c0_10 = arith.constant 0 : index
    %c0_11 = arith.constant 0 : index
    %c0_12 = arith.constant 0 : index
    %31 = vector.load %arg2[%c0_10, %c0_11, %c0_12] : memref<9x64x3xbf16, #tpu.memory_space<vmem>>, vector<1x64x3xbf16>
    %32 = vector.shape_cast %31 : vector<1x64x3xbf16> to vector<64x3xbf16>
    %cst_13 = arith.constant dense<0.000000e+00> : vector<64x256xf32>
    %33 = tpu.matmul %32, %30, %cst_13 {dimension_numbers = #tpu.dot_dimension_numbers<[1], [0], [0], [1], [0, 0, 1, 1], [], []>} : vector<64x3xbf16>, vector<3x256xbf16>, vector<64x256xf32> -> vector<64x256xf32>
    %34 = arith.addf %23, %33 : vector<64x256xf32>
    %35 = vector.extract_strided_slice %22 {offsets = [0, 1], sizes = [3, 256], strides = [1, 1]} : vector<3x290xbf16> to vector<3x256xbf16>
    %c1 = arith.constant 1 : index
    %c0_14 = arith.constant 0 : index
    %c0_15 = arith.constant 0 : index
    %36 = vector.load %arg2[%c1, %c0_14, %c0_15] : memref<9x64x3xbf16, #tpu.memory_space<vmem>>, vector<1x64x3xbf16>
    %37 = vector.shape_cast %36 : vector<1x64x3xbf16> to vector<64x3xbf16>
    %cst_16 = arith.constant dense<0.000000e+00> : vector<64x256xf32>
    %38 = tpu.matmul %37, %35, %cst_16 {dimension_numbers = #tpu.dot_dimension_numbers<[1], [0], [0], [1], [0, 0, 1, 1], [], []>} : vector<64x3xbf16>, vector<3x256xbf16>, vector<64x256xf32> -> vector<64x256xf32>
    %39 = arith.addf %34, %38 : vector<64x256xf32>
    %40 = vector.extract_strided_slice %22 {offsets = [0, 2], sizes = [3, 256], strides = [1, 1]} : vector<3x290xbf16> to vector<3x256xbf16>
    %c15_i32 = arith.constant 15 : i32
    %41 = vector.broadcast %c15_i32 : i32 to vector<1x256xi32>
    %42 = arith.cmpi slt, %16, %41 : vector<1x256xi32>
    %cst_17 = arith.constant 0.000000e+00 : bf16
    %43 = vector.broadcast %cst_17 : bf16 to vector<3x256xbf16>
    %44 = vector.shape_cast %42 : vector<1x256xi1> to vector<1x256xi1>
    %45 = vector.broadcast %44 : vector<1x256xi1> to vector<3x256xi1>
    %46 = arith.select %45, %40, %43 : vector<3x256xi1>, vector<3x256xbf16>
    %c2 = arith.constant 2 : index
    %c0_18 = arith.constant 0 : index
    %c0_19 = arith.constant 0 : index
    %47 = vector.load %arg2[%c2, %c0_18, %c0_19] : memref<9x64x3xbf16, #tpu.memory_space<vmem>>, vector<1x64x3xbf16>
    %48 = vector.shape_cast %47 : vector<1x64x3xbf16> to vector<64x3xbf16>
    %cst_20 = arith.constant dense<0.000000e+00> : vector<64x256xf32>
    %49 = tpu.matmul %48, %46, %cst_20 {dimension_numbers = #tpu.dot_dimension_numbers<[1], [0], [0], [1], [0, 0, 1, 1], [], []>} : vector<64x3xbf16>, vector<3x256xbf16>, vector<64x256xf32> -> vector<64x256xf32>
    %50 = arith.addf %39, %49 : vector<64x256xf32>
    %51 = vector.extract_strided_slice %22 {offsets = [0, 16], sizes = [3, 256], strides = [1, 1]} : vector<3x290xbf16> to vector<3x256xbf16>
    %c1_i32_21 = arith.constant 1 : i32
    %52 = vector.broadcast %c1_i32_21 : i32 to vector<1x256xi32>
    %53 = arith.cmpi sge, %16, %52 : vector<1x256xi32>
    %cst_22 = arith.constant 0.000000e+00 : bf16
    %54 = vector.broadcast %cst_22 : bf16 to vector<3x256xbf16>
    %55 = vector.shape_cast %53 : vector<1x256xi1> to vector<1x256xi1>
    %56 = vector.broadcast %55 : vector<1x256xi1> to vector<3x256xi1>
    %57 = arith.select %56, %51, %54 : vector<3x256xi1>, vector<3x256xbf16>
    %c3 = arith.constant 3 : index
    %c0_23 = arith.constant 0 : index
    %c0_24 = arith.constant 0 : index
    %58 = vector.load %arg2[%c3, %c0_23, %c0_24] : memref<9x64x3xbf16, #tpu.memory_space<vmem>>, vector<1x64x3xbf16>
    %59 = vector.shape_cast %58 : vector<1x64x3xbf16> to vector<64x3xbf16>
    %cst_25 = arith.constant dense<0.000000e+00> : vector<64x256xf32>
    %60 = tpu.matmul %59, %57, %cst_25 {dimension_numbers = #tpu.dot_dimension_numbers<[1], [0], [0], [1], [0, 0, 1, 1], [], []>} : vector<64x3xbf16>, vector<3x256xbf16>, vector<64x256xf32> -> vector<64x256xf32>
    %61 = arith.addf %50, %60 : vector<64x256xf32>
    %c4 = arith.constant 4 : index
    %c0_26 = arith.constant 0 : index
    %c0_27 = arith.constant 0 : index
    %62 = vector.load %arg2[%c4, %c0_26, %c0_27] : memref<9x64x3xbf16, #tpu.memory_space<vmem>>, vector<1x64x3xbf16>
    %63 = vector.shape_cast %62 : vector<1x64x3xbf16> to vector<64x3xbf16>
    %cst_28 = arith.constant dense<0.000000e+00> : vector<64x256xf32>
    %64 = tpu.matmul %63, %20, %cst_28 {dimension_numbers = #tpu.dot_dimension_numbers<[1], [0], [0], [1], [0, 0, 1, 1], [], []>} : vector<64x3xbf16>, vector<3x256xbf16>, vector<64x256xf32> -> vector<64x256xf32>
    %65 = arith.addf %61, %64 : vector<64x256xf32>
    %66 = vector.extract_strided_slice %22 {offsets = [0, 18], sizes = [3, 256], strides = [1, 1]} : vector<3x290xbf16> to vector<3x256xbf16>
    %c15_i32_29 = arith.constant 15 : i32
    %67 = vector.broadcast %c15_i32_29 : i32 to vector<1x256xi32>
    %68 = arith.cmpi slt, %16, %67 : vector<1x256xi32>
    %cst_30 = arith.constant 0.000000e+00 : bf16
    %69 = vector.broadcast %cst_30 : bf16 to vector<3x256xbf16>
    %70 = vector.shape_cast %68 : vector<1x256xi1> to vector<1x256xi1>
    %71 = vector.broadcast %70 : vector<1x256xi1> to vector<3x256xi1>
    %72 = arith.select %71, %66, %69 : vector<3x256xi1>, vector<3x256xbf16>
    %c5 = arith.constant 5 : index
    %c0_31 = arith.constant 0 : index
    %c0_32 = arith.constant 0 : index
    %73 = vector.load %arg2[%c5, %c0_31, %c0_32] : memref<9x64x3xbf16, #tpu.memory_space<vmem>>, vector<1x64x3xbf16>
    %74 = vector.shape_cast %73 : vector<1x64x3xbf16> to vector<64x3xbf16>
    %cst_33 = arith.constant dense<0.000000e+00> : vector<64x256xf32>
    %75 = tpu.matmul %74, %72, %cst_33 {dimension_numbers = #tpu.dot_dimension_numbers<[1], [0], [0], [1], [0, 0, 1, 1], [], []>} : vector<64x3xbf16>, vector<3x256xbf16>, vector<64x256xf32> -> vector<64x256xf32>
    %76 = arith.addf %65, %75 : vector<64x256xf32>
    %77 = vector.extract_strided_slice %22 {offsets = [0, 32], sizes = [3, 256], strides = [1, 1]} : vector<3x290xbf16> to vector<3x256xbf16>
    %c1_i32_34 = arith.constant 1 : i32
    %78 = vector.broadcast %c1_i32_34 : i32 to vector<1x256xi32>
    %79 = arith.cmpi sge, %16, %78 : vector<1x256xi32>
    %cst_35 = arith.constant 0.000000e+00 : bf16
    %80 = vector.broadcast %cst_35 : bf16 to vector<3x256xbf16>
    %81 = vector.shape_cast %79 : vector<1x256xi1> to vector<1x256xi1>
    %82 = vector.broadcast %81 : vector<1x256xi1> to vector<3x256xi1>
    %83 = arith.select %82, %77, %80 : vector<3x256xi1>, vector<3x256xbf16>
    %c6 = arith.constant 6 : index
    %c0_36 = arith.constant 0 : index
    %c0_37 = arith.constant 0 : index
    %84 = vector.load %arg2[%c6, %c0_36, %c0_37] : memref<9x64x3xbf16, #tpu.memory_space<vmem>>, vector<1x64x3xbf16>
    %85 = vector.shape_cast %84 : vector<1x64x3xbf16> to vector<64x3xbf16>
    %cst_38 = arith.constant dense<0.000000e+00> : vector<64x256xf32>
    %86 = tpu.matmul %85, %83, %cst_38 {dimension_numbers = #tpu.dot_dimension_numbers<[1], [0], [0], [1], [0, 0, 1, 1], [], []>} : vector<64x3xbf16>, vector<3x256xbf16>, vector<64x256xf32> -> vector<64x256xf32>
    %87 = arith.addf %76, %86 : vector<64x256xf32>
    %88 = vector.extract_strided_slice %22 {offsets = [0, 33], sizes = [3, 256], strides = [1, 1]} : vector<3x290xbf16> to vector<3x256xbf16>
    %c7 = arith.constant 7 : index
    %c0_39 = arith.constant 0 : index
    %c0_40 = arith.constant 0 : index
    %89 = vector.load %arg2[%c7, %c0_39, %c0_40] : memref<9x64x3xbf16, #tpu.memory_space<vmem>>, vector<1x64x3xbf16>
    %90 = vector.shape_cast %89 : vector<1x64x3xbf16> to vector<64x3xbf16>
    %cst_41 = arith.constant dense<0.000000e+00> : vector<64x256xf32>
    %91 = tpu.matmul %90, %88, %cst_41 {dimension_numbers = #tpu.dot_dimension_numbers<[1], [0], [0], [1], [0, 0, 1, 1], [], []>} : vector<64x3xbf16>, vector<3x256xbf16>, vector<64x256xf32> -> vector<64x256xf32>
    %92 = arith.addf %87, %91 : vector<64x256xf32>
    %93 = vector.extract_strided_slice %22 {offsets = [0, 34], sizes = [3, 256], strides = [1, 1]} : vector<3x290xbf16> to vector<3x256xbf16>
    %c15_i32_42 = arith.constant 15 : i32
    %94 = vector.broadcast %c15_i32_42 : i32 to vector<1x256xi32>
    %95 = arith.cmpi slt, %16, %94 : vector<1x256xi32>
    %cst_43 = arith.constant 0.000000e+00 : bf16
    %96 = vector.broadcast %cst_43 : bf16 to vector<3x256xbf16>
    %97 = vector.shape_cast %95 : vector<1x256xi1> to vector<1x256xi1>
    %98 = vector.broadcast %97 : vector<1x256xi1> to vector<3x256xi1>
    %99 = arith.select %98, %93, %96 : vector<3x256xi1>, vector<3x256xbf16>
    %c8 = arith.constant 8 : index
    %c0_44 = arith.constant 0 : index
    %c0_45 = arith.constant 0 : index
    %100 = vector.load %arg2[%c8, %c0_44, %c0_45] : memref<9x64x3xbf16, #tpu.memory_space<vmem>>, vector<1x64x3xbf16>
    %101 = vector.shape_cast %100 : vector<1x64x3xbf16> to vector<64x3xbf16>
    %cst_46 = arith.constant dense<0.000000e+00> : vector<64x256xf32>
    %102 = tpu.matmul %101, %99, %cst_46 {dimension_numbers = #tpu.dot_dimension_numbers<[1], [0], [0], [1], [0, 0, 1, 1], [], []>} : vector<64x3xbf16>, vector<3x256xbf16>, vector<64x256xf32> -> vector<64x256xf32>
    %103 = arith.addf %92, %102 : vector<64x256xf32>
    %c0_47 = arith.constant 0 : index
    %c0_48 = arith.constant 0 : index
    %104 = vector.load %arg3[%c0_47, %c0_48] : memref<64x1xf32, #tpu.memory_space<vmem>>, vector<64x1xf32>
    %105 = vector.broadcast %104 : vector<64x1xf32> to vector<64x256xf32>
    %106 = arith.addf %103, %105 : vector<64x256xf32>
    %cst_49 = arith.constant 0.000000e+00 : f32
    %107 = vector.broadcast %cst_49 : f32 to vector<64x256xf32>
    %108 = arith.cmpf ogt, %106, %107 : vector<64x256xf32>
    %cst_50 = arith.constant 2.000000e-01 : f32
    %109 = vector.broadcast %cst_50 : f32 to vector<64x256xf32>
    %110 = arith.mulf %109, %106 : vector<64x256xf32>
    %111 = arith.select %108, %106, %110 : vector<64x256xi1>, vector<64x256xf32>
    %112 = arith.truncf %111 : vector<64x256xf32> to vector<64x256xbf16>
    %cst_51 = arith.constant 0.000000e+00 : bf16
    %113 = vector.broadcast %cst_51 : bf16 to vector<64x17xbf16>
    %114 = tpu.concatenate %113, %112, %113 in 1 : vector<64x17xbf16>, vector<64x256xbf16>, vector<64x17xbf16> -> vector<64x290xbf16>
    %cst_52 = arith.constant 0.000000e+00 : f32
    %115 = vector.broadcast %cst_52 : f32 to vector<16x256xf32>
    %116 = vector.extract_strided_slice %114 {offsets = [0, 0], sizes = [64, 256], strides = [1, 1]} : vector<64x290xbf16> to vector<64x256xbf16>
    %c1_i32_53 = arith.constant 1 : i32
    %117 = vector.broadcast %c1_i32_53 : i32 to vector<1x256xi32>
    %118 = arith.cmpi sge, %16, %117 : vector<1x256xi32>
    %cst_54 = arith.constant 0.000000e+00 : bf16
    %119 = vector.broadcast %cst_54 : bf16 to vector<64x256xbf16>
    %120 = vector.shape_cast %118 : vector<1x256xi1> to vector<1x256xi1>
    %121 = vector.broadcast %120 : vector<1x256xi1> to vector<64x256xi1>
    %122 = arith.select %121, %116, %119 : vector<64x256xi1>, vector<64x256xbf16>
    %c0_55 = arith.constant 0 : index
    %c0_56 = arith.constant 0 : index
    %c0_57 = arith.constant 0 : index
    %123 = vector.load %arg4[%c0_55, %c0_56, %c0_57] : memref<9x16x64xbf16, #tpu.memory_space<vmem>>, vector<1x16x64xbf16>
    %124 = vector.shape_cast %123 : vector<1x16x64xbf16> to vector<16x64xbf16>
    %cst_58 = arith.constant dense<0.000000e+00> : vector<16x256xf32>
    %125 = tpu.matmul %124, %122, %cst_58 {dimension_numbers = #tpu.dot_dimension_numbers<[1], [0], [0], [1], [0, 0, 1, 1], [], []>} : vector<16x64xbf16>, vector<64x256xbf16>, vector<16x256xf32> -> vector<16x256xf32>
    %126 = arith.addf %115, %125 : vector<16x256xf32>
    %127 = vector.extract_strided_slice %114 {offsets = [0, 1], sizes = [64, 256], strides = [1, 1]} : vector<64x290xbf16> to vector<64x256xbf16>
    %c1_59 = arith.constant 1 : index
    %c0_60 = arith.constant 0 : index
    %c0_61 = arith.constant 0 : index
    %128 = vector.load %arg4[%c1_59, %c0_60, %c0_61] : memref<9x16x64xbf16, #tpu.memory_space<vmem>>, vector<1x16x64xbf16>
    %129 = vector.shape_cast %128 : vector<1x16x64xbf16> to vector<16x64xbf16>
    %cst_62 = arith.constant dense<0.000000e+00> : vector<16x256xf32>
    %130 = tpu.matmul %129, %127, %cst_62 {dimension_numbers = #tpu.dot_dimension_numbers<[1], [0], [0], [1], [0, 0, 1, 1], [], []>} : vector<16x64xbf16>, vector<64x256xbf16>, vector<16x256xf32> -> vector<16x256xf32>
    %131 = arith.addf %126, %130 : vector<16x256xf32>
    %132 = vector.extract_strided_slice %114 {offsets = [0, 2], sizes = [64, 256], strides = [1, 1]} : vector<64x290xbf16> to vector<64x256xbf16>
    %c15_i32_63 = arith.constant 15 : i32
    %133 = vector.broadcast %c15_i32_63 : i32 to vector<1x256xi32>
    %134 = arith.cmpi slt, %16, %133 : vector<1x256xi32>
    %cst_64 = arith.constant 0.000000e+00 : bf16
    %135 = vector.broadcast %cst_64 : bf16 to vector<64x256xbf16>
    %136 = vector.shape_cast %134 : vector<1x256xi1> to vector<1x256xi1>
    %137 = vector.broadcast %136 : vector<1x256xi1> to vector<64x256xi1>
    %138 = arith.select %137, %132, %135 : vector<64x256xi1>, vector<64x256xbf16>
    %c2_65 = arith.constant 2 : index
    %c0_66 = arith.constant 0 : index
    %c0_67 = arith.constant 0 : index
    %139 = vector.load %arg4[%c2_65, %c0_66, %c0_67] : memref<9x16x64xbf16, #tpu.memory_space<vmem>>, vector<1x16x64xbf16>
    %140 = vector.shape_cast %139 : vector<1x16x64xbf16> to vector<16x64xbf16>
    %cst_68 = arith.constant dense<0.000000e+00> : vector<16x256xf32>
    %141 = tpu.matmul %140, %138, %cst_68 {dimension_numbers = #tpu.dot_dimension_numbers<[1], [0], [0], [1], [0, 0, 1, 1], [], []>} : vector<16x64xbf16>, vector<64x256xbf16>, vector<16x256xf32> -> vector<16x256xf32>
    %142 = arith.addf %131, %141 : vector<16x256xf32>
    %143 = vector.extract_strided_slice %114 {offsets = [0, 16], sizes = [64, 256], strides = [1, 1]} : vector<64x290xbf16> to vector<64x256xbf16>
    %c1_i32_69 = arith.constant 1 : i32
    %144 = vector.broadcast %c1_i32_69 : i32 to vector<1x256xi32>
    %145 = arith.cmpi sge, %16, %144 : vector<1x256xi32>
    %cst_70 = arith.constant 0.000000e+00 : bf16
    %146 = vector.broadcast %cst_70 : bf16 to vector<64x256xbf16>
    %147 = vector.shape_cast %145 : vector<1x256xi1> to vector<1x256xi1>
    %148 = vector.broadcast %147 : vector<1x256xi1> to vector<64x256xi1>
    %149 = arith.select %148, %143, %146 : vector<64x256xi1>, vector<64x256xbf16>
    %c3_71 = arith.constant 3 : index
    %c0_72 = arith.constant 0 : index
    %c0_73 = arith.constant 0 : index
    %150 = vector.load %arg4[%c3_71, %c0_72, %c0_73] : memref<9x16x64xbf16, #tpu.memory_space<vmem>>, vector<1x16x64xbf16>
    %151 = vector.shape_cast %150 : vector<1x16x64xbf16> to vector<16x64xbf16>
    %cst_74 = arith.constant dense<0.000000e+00> : vector<16x256xf32>
    %152 = tpu.matmul %151, %149, %cst_74 {dimension_numbers = #tpu.dot_dimension_numbers<[1], [0], [0], [1], [0, 0, 1, 1], [], []>} : vector<16x64xbf16>, vector<64x256xbf16>, vector<16x256xf32> -> vector<16x256xf32>
    %153 = arith.addf %142, %152 : vector<16x256xf32>
    %c4_75 = arith.constant 4 : index
    %c0_76 = arith.constant 0 : index
    %c0_77 = arith.constant 0 : index
    %154 = vector.load %arg4[%c4_75, %c0_76, %c0_77] : memref<9x16x64xbf16, #tpu.memory_space<vmem>>, vector<1x16x64xbf16>
    %155 = vector.shape_cast %154 : vector<1x16x64xbf16> to vector<16x64xbf16>
    %cst_78 = arith.constant dense<0.000000e+00> : vector<16x256xf32>
    %156 = tpu.matmul %155, %112, %cst_78 {dimension_numbers = #tpu.dot_dimension_numbers<[1], [0], [0], [1], [0, 0, 1, 1], [], []>} : vector<16x64xbf16>, vector<64x256xbf16>, vector<16x256xf32> -> vector<16x256xf32>
    %157 = arith.addf %153, %156 : vector<16x256xf32>
    %158 = vector.extract_strided_slice %114 {offsets = [0, 18], sizes = [64, 256], strides = [1, 1]} : vector<64x290xbf16> to vector<64x256xbf16>
    %c15_i32_79 = arith.constant 15 : i32
    %159 = vector.broadcast %c15_i32_79 : i32 to vector<1x256xi32>
    %160 = arith.cmpi slt, %16, %159 : vector<1x256xi32>
    %cst_80 = arith.constant 0.000000e+00 : bf16
    %161 = vector.broadcast %cst_80 : bf16 to vector<64x256xbf16>
    %162 = vector.shape_cast %160 : vector<1x256xi1> to vector<1x256xi1>
    %163 = vector.broadcast %162 : vector<1x256xi1> to vector<64x256xi1>
    %164 = arith.select %163, %158, %161 : vector<64x256xi1>, vector<64x256xbf16>
    %c5_81 = arith.constant 5 : index
    %c0_82 = arith.constant 0 : index
    %c0_83 = arith.constant 0 : index
    %165 = vector.load %arg4[%c5_81, %c0_82, %c0_83] : memref<9x16x64xbf16, #tpu.memory_space<vmem>>, vector<1x16x64xbf16>
    %166 = vector.shape_cast %165 : vector<1x16x64xbf16> to vector<16x64xbf16>
    %cst_84 = arith.constant dense<0.000000e+00> : vector<16x256xf32>
    %167 = tpu.matmul %166, %164, %cst_84 {dimension_numbers = #tpu.dot_dimension_numbers<[1], [0], [0], [1], [0, 0, 1, 1], [], []>} : vector<16x64xbf16>, vector<64x256xbf16>, vector<16x256xf32> -> vector<16x256xf32>
    %168 = arith.addf %157, %167 : vector<16x256xf32>
    %169 = vector.extract_strided_slice %114 {offsets = [0, 32], sizes = [64, 256], strides = [1, 1]} : vector<64x290xbf16> to vector<64x256xbf16>
    %c1_i32_85 = arith.constant 1 : i32
    %170 = vector.broadcast %c1_i32_85 : i32 to vector<1x256xi32>
    %171 = arith.cmpi sge, %16, %170 : vector<1x256xi32>
    %cst_86 = arith.constant 0.000000e+00 : bf16
    %172 = vector.broadcast %cst_86 : bf16 to vector<64x256xbf16>
    %173 = vector.shape_cast %171 : vector<1x256xi1> to vector<1x256xi1>
    %174 = vector.broadcast %173 : vector<1x256xi1> to vector<64x256xi1>
    %175 = arith.select %174, %169, %172 : vector<64x256xi1>, vector<64x256xbf16>
    %c6_87 = arith.constant 6 : index
    %c0_88 = arith.constant 0 : index
    %c0_89 = arith.constant 0 : index
    %176 = vector.load %arg4[%c6_87, %c0_88, %c0_89] : memref<9x16x64xbf16, #tpu.memory_space<vmem>>, vector<1x16x64xbf16>
    %177 = vector.shape_cast %176 : vector<1x16x64xbf16> to vector<16x64xbf16>
    %cst_90 = arith.constant dense<0.000000e+00> : vector<16x256xf32>
    %178 = tpu.matmul %177, %175, %cst_90 {dimension_numbers = #tpu.dot_dimension_numbers<[1], [0], [0], [1], [0, 0, 1, 1], [], []>} : vector<16x64xbf16>, vector<64x256xbf16>, vector<16x256xf32> -> vector<16x256xf32>
    %179 = arith.addf %168, %178 : vector<16x256xf32>
    %180 = vector.extract_strided_slice %114 {offsets = [0, 33], sizes = [64, 256], strides = [1, 1]} : vector<64x290xbf16> to vector<64x256xbf16>
    %c7_91 = arith.constant 7 : index
    %c0_92 = arith.constant 0 : index
    %c0_93 = arith.constant 0 : index
    %181 = vector.load %arg4[%c7_91, %c0_92, %c0_93] : memref<9x16x64xbf16, #tpu.memory_space<vmem>>, vector<1x16x64xbf16>
    %182 = vector.shape_cast %181 : vector<1x16x64xbf16> to vector<16x64xbf16>
    %cst_94 = arith.constant dense<0.000000e+00> : vector<16x256xf32>
    %183 = tpu.matmul %182, %180, %cst_94 {dimension_numbers = #tpu.dot_dimension_numbers<[1], [0], [0], [1], [0, 0, 1, 1], [], []>} : vector<16x64xbf16>, vector<64x256xbf16>, vector<16x256xf32> -> vector<16x256xf32>
    %184 = arith.addf %179, %183 : vector<16x256xf32>
    %185 = vector.extract_strided_slice %114 {offsets = [0, 34], sizes = [64, 256], strides = [1, 1]} : vector<64x290xbf16> to vector<64x256xbf16>
    %c15_i32_95 = arith.constant 15 : i32
    %186 = vector.broadcast %c15_i32_95 : i32 to vector<1x256xi32>
    %187 = arith.cmpi slt, %16, %186 : vector<1x256xi32>
    %cst_96 = arith.constant 0.000000e+00 : bf16
    %188 = vector.broadcast %cst_96 : bf16 to vector<64x256xbf16>
    %189 = vector.shape_cast %187 : vector<1x256xi1> to vector<1x256xi1>
    %190 = vector.broadcast %189 : vector<1x256xi1> to vector<64x256xi1>
    %191 = arith.select %190, %185, %188 : vector<64x256xi1>, vector<64x256xbf16>
    %c8_97 = arith.constant 8 : index
    %c0_98 = arith.constant 0 : index
    %c0_99 = arith.constant 0 : index
    %192 = vector.load %arg4[%c8_97, %c0_98, %c0_99] : memref<9x16x64xbf16, #tpu.memory_space<vmem>>, vector<1x16x64xbf16>
    %193 = vector.shape_cast %192 : vector<1x16x64xbf16> to vector<16x64xbf16>
    %cst_100 = arith.constant dense<0.000000e+00> : vector<16x256xf32>
    %194 = tpu.matmul %193, %191, %cst_100 {dimension_numbers = #tpu.dot_dimension_numbers<[1], [0], [0], [1], [0, 0, 1, 1], [], []>} : vector<16x64xbf16>, vector<64x256xbf16>, vector<16x256xf32> -> vector<16x256xf32>
    %195 = arith.addf %184, %194 : vector<16x256xf32>
    %c0_101 = arith.constant 0 : index
    %c0_102 = arith.constant 0 : index
    %196 = vector.load %arg5[%c0_101, %c0_102] : memref<16x1xf32, #tpu.memory_space<vmem>>, vector<16x1xf32>
    %197 = vector.broadcast %196 : vector<16x1xf32> to vector<16x256xf32>
    %198 = arith.addf %195, %197 : vector<16x256xf32>
    %c0_103 = arith.constant 0 : index
    %c0_104 = arith.constant 0 : index
    %c0_105 = arith.constant 0 : index
    %199 = vector.load %arg6[%c0_103, %c0_104, %c0_105] : memref<1x16x256xf32, #tpu.memory_space<vmem>>, vector<1x16x256xf32>
    %200 = vector.shape_cast %199 : vector<1x16x256xf32> to vector<16x256xf32>
    %201 = vector.shape_cast %198 : vector<16x256xf32> to vector<1x16x256xf32>
    tpu.vector_store %arg6[%c0_103, %c0_104, %c0_105], %201 {strides = array<i32>} : memref<1x16x256xf32, #tpu.memory_space<vmem>>, vector<1x16x256xf32>,
    %cst_106 = arith.constant dense<0.000000e+00> : vector<16xf32>
    %202 = vector.multi_reduction <add>, %198, %cst_106 [1] : vector<16x256xf32> to vector<16xf32>
    %203 = vector.shape_cast %202 : vector<16xf32> to vector<16x1xf32>
    %204 = arith.addf %17, %203 : vector<16x1xf32>
    %205 = arith.mulf %198, %198 : vector<16x256xf32>
    %cst_107 = arith.constant dense<0.000000e+00> : vector<16xf32>
    %206 = vector.multi_reduction <add>, %205, %cst_107 [1] : vector<16x256xf32> to vector<16xf32>
    %207 = vector.shape_cast %206 : vector<16xf32> to vector<16x1xf32>
    %208 = arith.addf %18, %207 : vector<16x1xf32>
    %c0_108 = arith.constant 0 : index
    %c0_109 = arith.constant 0 : index
    %c0_110 = arith.constant 0 : index
    %209 = vector.load %arg7[%c0_108, %c0_109, %c0_110] : memref<1x16x2xf32, #tpu.memory_space<vmem>>, vector<1x16x1xf32>
    %210 = vector.shape_cast %209 : vector<1x16x1xf32> to vector<16x1xf32>
    %211 = vector.shape_cast %204 : vector<16x1xf32> to vector<1x16x1xf32>
    tpu.vector_store %arg7[%c0_108, %c0_109, %c0_110], %211 {strides = array<i32>} : memref<1x16x2xf32, #tpu.memory_space<vmem>>, vector<1x16x1xf32>,
    %c0_111 = arith.constant 0 : index
    %c0_112 = arith.constant 0 : index
    %c1_113 = arith.constant 1 : index
    %212 = vector.load %arg7[%c0_111, %c0_112, %c1_113] : memref<1x16x2xf32, #tpu.memory_space<vmem>>, vector<1x16x1xf32>
    %213 = vector.shape_cast %212 : vector<1x16x1xf32> to vector<16x1xf32>
    %214 = vector.shape_cast %208 : vector<16x1xf32> to vector<1x16x1xf32>
    tpu.vector_store %arg7[%c0_111, %c0_112, %c1_113], %214 {strides = array<i32>} : memref<1x16x2xf32, #tpu.memory_space<vmem>>, vector<1x16x1xf32>,
    return
  }
  func.func @transform_0(%arg0: i32) -> (i32, i32, i32) {
    %c0_i32 = arith.constant 0 : i32
    %c0_i32_0 = arith.constant 0 : i32
    %c0_i32_1 = arith.constant 0 : i32
    return %arg0, %c0_i32, %c0_i32_0 : i32, i32, i32
  }
  func.func @transform_1(%arg0: i32) -> (i32, i32, i32) {
    %c0_i32 = arith.constant 0 : i32
    %c0_i32_0 = arith.constant 0 : i32
    %c0_i32_1 = arith.constant 0 : i32
    %c0_i32_2 = arith.constant 0 : i32
    return %c0_i32, %c0_i32_0, %c0_i32_1 : i32, i32, i32
  }
  func.func @transform_2(%arg0: i32) -> (i32, i32) {
    %c0_i32 = arith.constant 0 : i32
    %c0_i32_0 = arith.constant 0 : i32
    %c0_i32_1 = arith.constant 0 : i32
    return %c0_i32, %c0_i32_0 : i32, i32
  }
  func.func @transform_3(%arg0: i32) -> (i32, i32, i32) {
    %c0_i32 = arith.constant 0 : i32
    %c0_i32_0 = arith.constant 0 : i32
    %c0_i32_1 = arith.constant 0 : i32
    %c0_i32_2 = arith.constant 0 : i32
    return %c0_i32, %c0_i32_0, %c0_i32_1 : i32, i32, i32
  }
  func.func @transform_4(%arg0: i32) -> (i32, i32) {
    %c0_i32 = arith.constant 0 : i32
    %c0_i32_0 = arith.constant 0 : i32
    %c0_i32_1 = arith.constant 0 : i32
    return %c0_i32, %c0_i32_0 : i32, i32
  }
  func.func @transform_5(%arg0: i32) -> (i32, i32, i32) {
    %c0_i32 = arith.constant 0 : i32
    %c0_i32_0 = arith.constant 0 : i32
    %c0_i32_1 = arith.constant 0 : i32
    return %arg0, %c0_i32, %c0_i32_0 : i32, i32, i32
  }
  func.func @transform_6(%arg0: i32) -> (i32, i32, i32) {
    %c0_i32 = arith.constant 0 : i32
    %c0_i32_0 = arith.constant 0 : i32
    %c0_i32_1 = arith.constant 0 : i32
    return %arg0, %c0_i32, %c0_i32_0 : i32, i32, i32
  }
}

module attributes {stable_mosaic.version = 11 : i64} {
  func.func @_pass2_kernel(%arg0: i32, %arg1: memref<2x16x2xf32, #tpu.memory_space<vmem>>, %arg2: memref<16x1xf32, #tpu.memory_space<vmem>>, %arg3: memref<16x1xf32, #tpu.memory_space<vmem>>, %arg4: memref<1x16x256xf32, #tpu.memory_space<vmem>>, %arg5: memref<9x3x16xbf16, #tpu.memory_space<vmem>>, %arg6: memref<3x1xf32, #tpu.memory_space<vmem>>, %arg7: memref<1x3x256xf32, #tpu.memory_space<vmem>>) attributes {dimension_semantics = [#tpu.dimension_semantics<parallel>], iteration_bounds = array<i64: 2>, scalar_prefetch = 0 : i64, scratch_operands = 0 : i64, tpu.core_type = #tpu.core_type<tc>, window_params = [{pipeline_mode = #tpu.pipeline_mode<synchronous>, transform_indices = @transform_0, window_bounds = array<i64: 2, 16, 2>}, {pipeline_mode = #tpu.pipeline_mode<synchronous>, transform_indices = @transform_1, window_bounds = array<i64: 16, 1>}, {pipeline_mode = #tpu.pipeline_mode<synchronous>, transform_indices = @transform_2, window_bounds = array<i64: 16, 1>}, {transform_indices = @transform_3, window_bounds = array<i64: 1, 16, 256>}, {pipeline_mode = #tpu.pipeline_mode<synchronous>, transform_indices = @transform_4, window_bounds = array<i64: 9, 3, 16>}, {pipeline_mode = #tpu.pipeline_mode<synchronous>, transform_indices = @transform_5, window_bounds = array<i64: 3, 1>}, {transform_indices = @transform_6, window_bounds = array<i64: 1, 3, 256>}]} {
    %0 = tpu.iota {dimensions = array<i32: 1>} : vector<1x256xi32>
    %c16_i32 = arith.constant 16 : i32
    %c0_i32 = arith.constant 0 : i32
    %1 = arith.cmpi eq, %c16_i32, %c0_i32 : i32
    %c1_i32 = arith.constant 1 : i32
    %2 = arith.select %1, %c1_i32, %c16_i32 : i32
    %3 = vector.broadcast %2 : i32 to vector<1x256xi32>
    %4 = arith.remsi %0, %3 : vector<1x256xi32>
    %c0_i32_0 = arith.constant 0 : i32
    %5 = vector.broadcast %c0_i32_0 : i32 to vector<1x256xi32>
    %6 = arith.cmpi ne, %4, %5 : vector<1x256xi32>
    %c0_i32_1 = arith.constant 0 : i32
    %7 = vector.broadcast %c0_i32_1 : i32 to vector<1x256xi32>
    %8 = arith.cmpi slt, %4, %7 : vector<1x256xi32>
    %c0_i32_2 = arith.constant 0 : i32
    %9 = arith.cmpi slt, %2, %c0_i32_2 : i32
    %10 = vector.broadcast %9 : i1 to vector<1x256xi1>
    %11 = vector.broadcast %10 : vector<1x256xi1> to vector<1x256xi1>
    %12 = arith.xori %8, %11 : vector<1x256xi1>
    %13 = arith.andi %12, %6 : vector<1x256xi1>
    %14 = vector.broadcast %2 : i32 to vector<1x256xi32>
    %15 = arith.addi %4, %14 : vector<1x256xi32>
    %16 = arith.select %13, %15, %4 : vector<1x256xi1>, vector<1x256xi32>
    %c0 = arith.constant 0 : index
    %c0_3 = arith.constant 0 : index
    %c0_4 = arith.constant 0 : index
    %17 = vector.load %arg1[%c0, %c0_3, %c0_4] : memref<2x16x2xf32, #tpu.memory_space<vmem>>, vector<2x16x2xf32>
    %cst = arith.constant dense<0.000000e+00> : vector<16x2xf32>
    %18 = vector.multi_reduction <add>, %17, %cst [0] : vector<2x16x2xf32> to vector<16x2xf32>
    %19 = vector.extract_strided_slice %18 {offsets = [0, 0], sizes = [16, 1], strides = [1, 1]} : vector<16x2xf32> to vector<16x1xf32>
    %cst_5 = arith.constant 0.001953125 : f32
    %20 = vector.broadcast %cst_5 : f32 to vector<16x1xf32>
    %21 = arith.mulf %19, %20 : vector<16x1xf32>
    %22 = vector.extract_strided_slice %18 {offsets = [0, 1], sizes = [16, 1], strides = [1, 1]} : vector<16x2xf32> to vector<16x1xf32>
    %cst_6 = arith.constant 0.001953125 : f32
    %23 = vector.broadcast %cst_6 : f32 to vector<16x1xf32>
    %24 = arith.mulf %22, %23 : vector<16x1xf32>
    %25 = arith.mulf %21, %21 : vector<16x1xf32>
    %26 = arith.subf %24, %25 : vector<16x1xf32>
    %cst_7 = arith.constant 0.000000e+00 : f32
    %27 = vector.broadcast %cst_7 : f32 to vector<16x1xf32>
    %28 = arith.maximumf %26, %27 : vector<16x1xf32>
    %cst_8 = arith.constant 9.99999974E-6 : f32
    %29 = vector.broadcast %cst_8 : f32 to vector<16x1xf32>
    %30 = arith.addf %28, %29 : vector<16x1xf32>
    %31 = math.rsqrt %30 : vector<16x1xf32>
    %c0_9 = arith.constant 0 : index
    %c0_10 = arith.constant 0 : index
    %32 = vector.load %arg2[%c0_9, %c0_10] : memref<16x1xf32, #tpu.memory_space<vmem>>, vector<16x1xf32>
    %33 = arith.mulf %32, %31 : vector<16x1xf32>
    %c0_11 = arith.constant 0 : index
    %c0_12 = arith.constant 0 : index
    %34 = vector.load %arg3[%c0_11, %c0_12] : memref<16x1xf32, #tpu.memory_space<vmem>>, vector<16x1xf32>
    %35 = arith.mulf %21, %33 : vector<16x1xf32>
    %36 = arith.subf %34, %35 : vector<16x1xf32>
    %c0_13 = arith.constant 0 : index
    %c0_14 = arith.constant 0 : index
    %c0_15 = arith.constant 0 : index
    %37 = vector.load %arg4[%c0_13, %c0_14, %c0_15] : memref<1x16x256xf32, #tpu.memory_space<vmem>>, vector<1x16x256xf32>
    %38 = vector.shape_cast %37 : vector<1x16x256xf32> to vector<16x256xf32>
    %39 = vector.broadcast %33 : vector<16x1xf32> to vector<16x256xf32>
    %40 = arith.mulf %38, %39 : vector<16x256xf32>
    %41 = vector.broadcast %36 : vector<16x1xf32> to vector<16x256xf32>
    %42 = arith.addf %40, %41 : vector<16x256xf32>
    %cst_16 = arith.constant 0.000000e+00 : f32
    %43 = vector.broadcast %cst_16 : f32 to vector<16x256xf32>
    %44 = arith.cmpf ogt, %42, %43 : vector<16x256xf32>
    %cst_17 = arith.constant 2.000000e-01 : f32
    %45 = vector.broadcast %cst_17 : f32 to vector<16x256xf32>
    %46 = arith.mulf %45, %42 : vector<16x256xf32>
    %47 = arith.select %44, %42, %46 : vector<16x256xi1>, vector<16x256xf32>
    %48 = arith.truncf %47 : vector<16x256xf32> to vector<16x256xbf16>
    %cst_18 = arith.constant 0.000000e+00 : bf16
    %49 = vector.broadcast %cst_18 : bf16 to vector<16x17xbf16>
    %50 = tpu.concatenate %49, %48, %49 in 1 : vector<16x17xbf16>, vector<16x256xbf16>, vector<16x17xbf16> -> vector<16x290xbf16>
    %cst_19 = arith.constant 0.000000e+00 : f32
    %51 = vector.broadcast %cst_19 : f32 to vector<3x256xf32>
    %52 = vector.extract_strided_slice %50 {offsets = [0, 0], sizes = [16, 256], strides = [1, 1]} : vector<16x290xbf16> to vector<16x256xbf16>
    %c1_i32_20 = arith.constant 1 : i32
    %53 = vector.broadcast %c1_i32_20 : i32 to vector<1x256xi32>
    %54 = arith.cmpi sge, %16, %53 : vector<1x256xi32>
    %cst_21 = arith.constant 0.000000e+00 : bf16
    %55 = vector.broadcast %cst_21 : bf16 to vector<16x256xbf16>
    %56 = vector.shape_cast %54 : vector<1x256xi1> to vector<1x256xi1>
    %57 = vector.broadcast %56 : vector<1x256xi1> to vector<16x256xi1>
    %58 = arith.select %57, %52, %55 : vector<16x256xi1>, vector<16x256xbf16>
    %c0_22 = arith.constant 0 : index
    %c0_23 = arith.constant 0 : index
    %c0_24 = arith.constant 0 : index
    %59 = vector.load %arg5[%c0_22, %c0_23, %c0_24] : memref<9x3x16xbf16, #tpu.memory_space<vmem>>, vector<1x3x16xbf16>
    %60 = vector.shape_cast %59 : vector<1x3x16xbf16> to vector<3x16xbf16>
    %cst_25 = arith.constant dense<0.000000e+00> : vector<3x256xf32>
    %61 = tpu.matmul %60, %58, %cst_25 {dimension_numbers = #tpu.dot_dimension_numbers<[1], [0], [0], [1], [0, 0, 1, 1], [], []>} : vector<3x16xbf16>, vector<16x256xbf16>, vector<3x256xf32> -> vector<3x256xf32>
    %62 = arith.addf %51, %61 : vector<3x256xf32>
    %63 = vector.extract_strided_slice %50 {offsets = [0, 1], sizes = [16, 256], strides = [1, 1]} : vector<16x290xbf16> to vector<16x256xbf16>
    %c1 = arith.constant 1 : index
    %c0_26 = arith.constant 0 : index
    %c0_27 = arith.constant 0 : index
    %64 = vector.load %arg5[%c1, %c0_26, %c0_27] : memref<9x3x16xbf16, #tpu.memory_space<vmem>>, vector<1x3x16xbf16>
    %65 = vector.shape_cast %64 : vector<1x3x16xbf16> to vector<3x16xbf16>
    %cst_28 = arith.constant dense<0.000000e+00> : vector<3x256xf32>
    %66 = tpu.matmul %65, %63, %cst_28 {dimension_numbers = #tpu.dot_dimension_numbers<[1], [0], [0], [1], [0, 0, 1, 1], [], []>} : vector<3x16xbf16>, vector<16x256xbf16>, vector<3x256xf32> -> vector<3x256xf32>
    %67 = arith.addf %62, %66 : vector<3x256xf32>
    %68 = vector.extract_strided_slice %50 {offsets = [0, 2], sizes = [16, 256], strides = [1, 1]} : vector<16x290xbf16> to vector<16x256xbf16>
    %c15_i32 = arith.constant 15 : i32
    %69 = vector.broadcast %c15_i32 : i32 to vector<1x256xi32>
    %70 = arith.cmpi slt, %16, %69 : vector<1x256xi32>
    %cst_29 = arith.constant 0.000000e+00 : bf16
    %71 = vector.broadcast %cst_29 : bf16 to vector<16x256xbf16>
    %72 = vector.shape_cast %70 : vector<1x256xi1> to vector<1x256xi1>
    %73 = vector.broadcast %72 : vector<1x256xi1> to vector<16x256xi1>
    %74 = arith.select %73, %68, %71 : vector<16x256xi1>, vector<16x256xbf16>
    %c2 = arith.constant 2 : index
    %c0_30 = arith.constant 0 : index
    %c0_31 = arith.constant 0 : index
    %75 = vector.load %arg5[%c2, %c0_30, %c0_31] : memref<9x3x16xbf16, #tpu.memory_space<vmem>>, vector<1x3x16xbf16>
    %76 = vector.shape_cast %75 : vector<1x3x16xbf16> to vector<3x16xbf16>
    %cst_32 = arith.constant dense<0.000000e+00> : vector<3x256xf32>
    %77 = tpu.matmul %76, %74, %cst_32 {dimension_numbers = #tpu.dot_dimension_numbers<[1], [0], [0], [1], [0, 0, 1, 1], [], []>} : vector<3x16xbf16>, vector<16x256xbf16>, vector<3x256xf32> -> vector<3x256xf32>
    %78 = arith.addf %67, %77 : vector<3x256xf32>
    %79 = vector.extract_strided_slice %50 {offsets = [0, 16], sizes = [16, 256], strides = [1, 1]} : vector<16x290xbf16> to vector<16x256xbf16>
    %c1_i32_33 = arith.constant 1 : i32
    %80 = vector.broadcast %c1_i32_33 : i32 to vector<1x256xi32>
    %81 = arith.cmpi sge, %16, %80 : vector<1x256xi32>
    %cst_34 = arith.constant 0.000000e+00 : bf16
    %82 = vector.broadcast %cst_34 : bf16 to vector<16x256xbf16>
    %83 = vector.shape_cast %81 : vector<1x256xi1> to vector<1x256xi1>
    %84 = vector.broadcast %83 : vector<1x256xi1> to vector<16x256xi1>
    %85 = arith.select %84, %79, %82 : vector<16x256xi1>, vector<16x256xbf16>
    %c3 = arith.constant 3 : index
    %c0_35 = arith.constant 0 : index
    %c0_36 = arith.constant 0 : index
    %86 = vector.load %arg5[%c3, %c0_35, %c0_36] : memref<9x3x16xbf16, #tpu.memory_space<vmem>>, vector<1x3x16xbf16>
    %87 = vector.shape_cast %86 : vector<1x3x16xbf16> to vector<3x16xbf16>
    %cst_37 = arith.constant dense<0.000000e+00> : vector<3x256xf32>
    %88 = tpu.matmul %87, %85, %cst_37 {dimension_numbers = #tpu.dot_dimension_numbers<[1], [0], [0], [1], [0, 0, 1, 1], [], []>} : vector<3x16xbf16>, vector<16x256xbf16>, vector<3x256xf32> -> vector<3x256xf32>
    %89 = arith.addf %78, %88 : vector<3x256xf32>
    %c4 = arith.constant 4 : index
    %c0_38 = arith.constant 0 : index
    %c0_39 = arith.constant 0 : index
    %90 = vector.load %arg5[%c4, %c0_38, %c0_39] : memref<9x3x16xbf16, #tpu.memory_space<vmem>>, vector<1x3x16xbf16>
    %91 = vector.shape_cast %90 : vector<1x3x16xbf16> to vector<3x16xbf16>
    %cst_40 = arith.constant dense<0.000000e+00> : vector<3x256xf32>
    %92 = tpu.matmul %91, %48, %cst_40 {dimension_numbers = #tpu.dot_dimension_numbers<[1], [0], [0], [1], [0, 0, 1, 1], [], []>} : vector<3x16xbf16>, vector<16x256xbf16>, vector<3x256xf32> -> vector<3x256xf32>
    %93 = arith.addf %89, %92 : vector<3x256xf32>
    %94 = vector.extract_strided_slice %50 {offsets = [0, 18], sizes = [16, 256], strides = [1, 1]} : vector<16x290xbf16> to vector<16x256xbf16>
    %c15_i32_41 = arith.constant 15 : i32
    %95 = vector.broadcast %c15_i32_41 : i32 to vector<1x256xi32>
    %96 = arith.cmpi slt, %16, %95 : vector<1x256xi32>
    %cst_42 = arith.constant 0.000000e+00 : bf16
    %97 = vector.broadcast %cst_42 : bf16 to vector<16x256xbf16>
    %98 = vector.shape_cast %96 : vector<1x256xi1> to vector<1x256xi1>
    %99 = vector.broadcast %98 : vector<1x256xi1> to vector<16x256xi1>
    %100 = arith.select %99, %94, %97 : vector<16x256xi1>, vector<16x256xbf16>
    %c5 = arith.constant 5 : index
    %c0_43 = arith.constant 0 : index
    %c0_44 = arith.constant 0 : index
    %101 = vector.load %arg5[%c5, %c0_43, %c0_44] : memref<9x3x16xbf16, #tpu.memory_space<vmem>>, vector<1x3x16xbf16>
    %102 = vector.shape_cast %101 : vector<1x3x16xbf16> to vector<3x16xbf16>
    %cst_45 = arith.constant dense<0.000000e+00> : vector<3x256xf32>
    %103 = tpu.matmul %102, %100, %cst_45 {dimension_numbers = #tpu.dot_dimension_numbers<[1], [0], [0], [1], [0, 0, 1, 1], [], []>} : vector<3x16xbf16>, vector<16x256xbf16>, vector<3x256xf32> -> vector<3x256xf32>
    %104 = arith.addf %93, %103 : vector<3x256xf32>
    %105 = vector.extract_strided_slice %50 {offsets = [0, 32], sizes = [16, 256], strides = [1, 1]} : vector<16x290xbf16> to vector<16x256xbf16>
    %c1_i32_46 = arith.constant 1 : i32
    %106 = vector.broadcast %c1_i32_46 : i32 to vector<1x256xi32>
    %107 = arith.cmpi sge, %16, %106 : vector<1x256xi32>
    %cst_47 = arith.constant 0.000000e+00 : bf16
    %108 = vector.broadcast %cst_47 : bf16 to vector<16x256xbf16>
    %109 = vector.shape_cast %107 : vector<1x256xi1> to vector<1x256xi1>
    %110 = vector.broadcast %109 : vector<1x256xi1> to vector<16x256xi1>
    %111 = arith.select %110, %105, %108 : vector<16x256xi1>, vector<16x256xbf16>
    %c6 = arith.constant 6 : index
    %c0_48 = arith.constant 0 : index
    %c0_49 = arith.constant 0 : index
    %112 = vector.load %arg5[%c6, %c0_48, %c0_49] : memref<9x3x16xbf16, #tpu.memory_space<vmem>>, vector<1x3x16xbf16>
    %113 = vector.shape_cast %112 : vector<1x3x16xbf16> to vector<3x16xbf16>
    %cst_50 = arith.constant dense<0.000000e+00> : vector<3x256xf32>
    %114 = tpu.matmul %113, %111, %cst_50 {dimension_numbers = #tpu.dot_dimension_numbers<[1], [0], [0], [1], [0, 0, 1, 1], [], []>} : vector<3x16xbf16>, vector<16x256xbf16>, vector<3x256xf32> -> vector<3x256xf32>
    %115 = arith.addf %104, %114 : vector<3x256xf32>
    %116 = vector.extract_strided_slice %50 {offsets = [0, 33], sizes = [16, 256], strides = [1, 1]} : vector<16x290xbf16> to vector<16x256xbf16>
    %c7 = arith.constant 7 : index
    %c0_51 = arith.constant 0 : index
    %c0_52 = arith.constant 0 : index
    %117 = vector.load %arg5[%c7, %c0_51, %c0_52] : memref<9x3x16xbf16, #tpu.memory_space<vmem>>, vector<1x3x16xbf16>
    %118 = vector.shape_cast %117 : vector<1x3x16xbf16> to vector<3x16xbf16>
    %cst_53 = arith.constant dense<0.000000e+00> : vector<3x256xf32>
    %119 = tpu.matmul %118, %116, %cst_53 {dimension_numbers = #tpu.dot_dimension_numbers<[1], [0], [0], [1], [0, 0, 1, 1], [], []>} : vector<3x16xbf16>, vector<16x256xbf16>, vector<3x256xf32> -> vector<3x256xf32>
    %120 = arith.addf %115, %119 : vector<3x256xf32>
    %121 = vector.extract_strided_slice %50 {offsets = [0, 34], sizes = [16, 256], strides = [1, 1]} : vector<16x290xbf16> to vector<16x256xbf16>
    %c15_i32_54 = arith.constant 15 : i32
    %122 = vector.broadcast %c15_i32_54 : i32 to vector<1x256xi32>
    %123 = arith.cmpi slt, %16, %122 : vector<1x256xi32>
    %cst_55 = arith.constant 0.000000e+00 : bf16
    %124 = vector.broadcast %cst_55 : bf16 to vector<16x256xbf16>
    %125 = vector.shape_cast %123 : vector<1x256xi1> to vector<1x256xi1>
    %126 = vector.broadcast %125 : vector<1x256xi1> to vector<16x256xi1>
    %127 = arith.select %126, %121, %124 : vector<16x256xi1>, vector<16x256xbf16>
    %c8 = arith.constant 8 : index
    %c0_56 = arith.constant 0 : index
    %c0_57 = arith.constant 0 : index
    %128 = vector.load %arg5[%c8, %c0_56, %c0_57] : memref<9x3x16xbf16, #tpu.memory_space<vmem>>, vector<1x3x16xbf16>
    %129 = vector.shape_cast %128 : vector<1x3x16xbf16> to vector<3x16xbf16>
    %cst_58 = arith.constant dense<0.000000e+00> : vector<3x256xf32>
    %130 = tpu.matmul %129, %127, %cst_58 {dimension_numbers = #tpu.dot_dimension_numbers<[1], [0], [0], [1], [0, 0, 1, 1], [], []>} : vector<3x16xbf16>, vector<16x256xbf16>, vector<3x256xf32> -> vector<3x256xf32>
    %131 = arith.addf %120, %130 : vector<3x256xf32>
    %c0_59 = arith.constant 0 : index
    %c0_60 = arith.constant 0 : index
    %132 = vector.load %arg6[%c0_59, %c0_60] : memref<3x1xf32, #tpu.memory_space<vmem>>, vector<3x1xf32>
    %133 = vector.broadcast %132 : vector<3x1xf32> to vector<3x256xf32>
    %134 = arith.addf %131, %133 : vector<3x256xf32>
    %135 = math.tanh %134 : vector<3x256xf32>
    %c0_61 = arith.constant 0 : index
    %c0_62 = arith.constant 0 : index
    %c0_63 = arith.constant 0 : index
    %136 = vector.load %arg7[%c0_61, %c0_62, %c0_63] : memref<1x3x256xf32, #tpu.memory_space<vmem>>, vector<1x3x256xf32>
    %137 = vector.shape_cast %136 : vector<1x3x256xf32> to vector<3x256xf32>
    %138 = vector.shape_cast %135 : vector<3x256xf32> to vector<1x3x256xf32>
    tpu.vector_store %arg7[%c0_61, %c0_62, %c0_63], %138 {strides = array<i32>} : memref<1x3x256xf32, #tpu.memory_space<vmem>>, vector<1x3x256xf32>,
    return
  }
  func.func @transform_0(%arg0: i32) -> (i32, i32, i32) {
    %c0_i32 = arith.constant 0 : i32
    %c0_i32_0 = arith.constant 0 : i32
    %c0_i32_1 = arith.constant 0 : i32
    %c0_i32_2 = arith.constant 0 : i32
    return %c0_i32, %c0_i32_0, %c0_i32_1 : i32, i32, i32
  }
  func.func @transform_1(%arg0: i32) -> (i32, i32) {
    %c0_i32 = arith.constant 0 : i32
    %c0_i32_0 = arith.constant 0 : i32
    %c0_i32_1 = arith.constant 0 : i32
    return %c0_i32, %c0_i32_0 : i32, i32
  }
  func.func @transform_2(%arg0: i32) -> (i32, i32) {
    %c0_i32 = arith.constant 0 : i32
    %c0_i32_0 = arith.constant 0 : i32
    %c0_i32_1 = arith.constant 0 : i32
    return %c0_i32, %c0_i32_0 : i32, i32
  }
  func.func @transform_3(%arg0: i32) -> (i32, i32, i32) {
    %c0_i32 = arith.constant 0 : i32
    %c0_i32_0 = arith.constant 0 : i32
    %c0_i32_1 = arith.constant 0 : i32
    return %arg0, %c0_i32, %c0_i32_0 : i32, i32, i32
  }
  func.func @transform_4(%arg0: i32) -> (i32, i32, i32) {
    %c0_i32 = arith.constant 0 : i32
    %c0_i32_0 = arith.constant 0 : i32
    %c0_i32_1 = arith.constant 0 : i32
    %c0_i32_2 = arith.constant 0 : i32
    return %c0_i32, %c0_i32_0, %c0_i32_1 : i32, i32, i32
  }
  func.func @transform_5(%arg0: i32) -> (i32, i32) {
    %c0_i32 = arith.constant 0 : i32
    %c0_i32_0 = arith.constant 0 : i32
    %c0_i32_1 = arith.constant 0 : i32
    return %c0_i32, %c0_i32_0 : i32, i32
  }
  func.func @transform_6(%arg0: i32) -> (i32, i32, i32) {
    %c0_i32 = arith.constant 0 : i32
    %c0_i32_0 = arith.constant 0 : i32
    %c0_i32_1 = arith.constant 0 : i32
    return %arg0, %c0_i32, %c0_i32_0 : i32, i32, i32
  }
}

</mosaic_0001>

<llo_original>
// kernel: fcn_forward.3
$region0: #{fcn_forward.3}
  #allocation0 [shape = 'u32[]', space=smem, size = 0x4, offset = 0x4, fixed_abs, tag = 'smem constant byte address 0x4 - core index']
  #allocation1 [shape = 'u32[144,128]{1,0:T(1,128)}', space=vmem, size = 0x12000, scoped, tag = 'internal scratch']
  %s0 = inlined_call_operand.vmem [shape: f32[2,16,2], index: 0, kind: input, shape index: {}]
  %s1 = inlined_call_operand.vmem [shape: f32[16,1], index: 1, kind: input, shape index: {}]
  %s2 = inlined_call_operand.vmem [shape: f32[16,1], index: 2, kind: input, shape index: {}]
  %s3 = inlined_call_operand.vmem [shape: f32[2,16,256], index: 3, kind: input, shape index: {}]
  %s4 = inlined_call_operand.vmem [shape: bf16[9,3,16], index: 4, kind: input, shape index: {}]
  %s5 = inlined_call_operand.vmem [shape: f32[3,1], index: 5, kind: input, shape index: {}]
  %s6 = inlined_call_operand.vmem [shape: f32[2,3,256], index: 6, kind: output, shape index: {}]
  %s7 = sld [smem:[#allocation0]]
  $region57: #{fcn_forward.3} parent=0
    _
  %s9 = ssub.s32 1, %s7
  %s10 = scalar_select 0, %s9, %s7
  loop: start=0, step=1, limit=4
  $region2: #{fcn_forward.3} parent=0 // loop_pre_header
    _
  $region3: #{fcn_forward.3} parent=0 // loop_header
    %s12 = sphi 0, %s16
    %p13 = scmp.ge.s32.totalorder %s12, 4
    %s20 = sphi 0, %s20
    %s22 = sphi 0, %s20
    %s23 = sphi 0, %s22
    %s37 = sphi 0, %s23
    %s41 = sphi 0, %s41
    %s43 = sphi 0, %s41
    %s44 = sphi 0, %s43
    %s58 = sphi 0, %s44
    %s62 = sphi 0, %s62
    %s64 = sphi 0, %s62
    %s65 = sphi 0, %s64
    %s79 = sphi 0, %s65
    %s85 = sphi 0, %s87
    %s88 = sphi 0, %s85
    %s89 = sphi 0, %s88
    %s105 = sphi 0, %s89
    %s109 = sphi 0, %s109
    %s111 = sphi 0, %s109
    %s112 = sphi 0, %s111
    %s126 = sphi 0, %s112
    %s130 = sphi 0, %s130
    %s132 = sphi 0, %s130
    %s133 = sphi 0, %s132
    %s147 = sphi 0, %s133
    %s153 = sphi 0, %s155
    %s156 = sphi 0, %s153
    %s157 = sphi 0, %s156
    %s173 = sphi 0, %s157
  $region4: #{fcn_forward.3} parent=0 // loop_header_branch
    %15 = sbr.rel (%p13) target = $region8
  $region5: #{fcn_forward.3} parent=0 // loop_body
    %s17 = ssub.s32 %s12, 1
    %s18 = ssub.s32 %s12, 2
    %s19 = sadd.s32 %s12, 1
    %s21 = sadd.s32 %s20, 1
    %p24 = scmp.eq.s32.totalorder %s12, 1
    %p25 = scmp.ne.s32.totalorder %s20, %s22
    %p26 = scmp.eq.s32.totalorder %s12, 0
    %p27 = por %p25, %p26
    %p28 = scmp.ne.s32.totalorder %s20, %s22
    %p29 = scmp.eq.s32.totalorder %s17, 1
    %p30 = por %p28, %p29
    %p31 = scmp.ne.s32.totalorder %s22, %s23
    %p32 = scmp.eq.s32.totalorder %s17, 0
    %p33 = por %p31, %p32
    %p34 = scmp.ne.s32.totalorder %s22, %s23
    %p35 = scmp.eq.s32.totalorder %s18, 1
    %p36 = por %p34, %p35
    %p38 = scmp.ne.s32.totalorder %s23, %s37
    %p39 = scmp.eq.s32.totalorder %s18, 0
    %p40 = por %p38, %p39
    %s42 = sadd.s32 %s41, 1
    %p45 = scmp.eq.s32.totalorder %s12, 1
    %p46 = scmp.ne.s32.totalorder %s41, %s43
    %p47 = scmp.eq.s32.totalorder %s12, 0
    %p48 = por %p46, %p47
    %p49 = scmp.ne.s32.totalorder %s41, %s43
    %p50 = scmp.eq.s32.totalorder %s17, 1
    %p51 = por %p49, %p50
    %p52 = scmp.ne.s32.totalorder %s43, %s44
    %p53 = scmp.eq.s32.totalorder %s17, 0
    %p54 = por %p52, %p53
    %p55 = scmp.ne.s32.totalorder %s43, %s44
    %p56 = scmp.eq.s32.totalorder %s18, 1
    %p57 = por %p55, %p56
    %p59 = scmp.ne.s32.totalorder %s44, %s58
    %p60 = scmp.eq.s32.totalorder %s18, 0
    %p61 = por %p59, %p60
    %s63 = sadd.s32 %s62, 1
    %p66 = scmp.eq.s32.totalorder %s12, 1
    %p67 = scmp.ne.s32.totalorder %s62, %s64
    %p68 = scmp.eq.s32.totalorder %s12, 0
    %p69 = por %p67, %p68
    %p70 = scmp.ne.s32.totalorder %s62, %s64
    %p71 = scmp.eq.s32.totalorder %s17, 1
    %p72 = por %p70, %p71
    %p73 = scmp.ne.s32.totalorder %s64, %s65
    %p74 = scmp.eq.s32.totalorder %s17, 0
    %p75 = por %p73, %p74
    %p76 = scmp.ne.s32.totalorder %s64, %s65
    %p77 = scmp.eq.s32.totalorder %s18, 1
    %p78 = por %p76, %p77
    %p80 = scmp.ne.s32.totalorder %s65, %s79
    %p81 = scmp.eq.s32.totalorder %s18, 0
    %p82 = por %p80, %p81
    %s83 = ssub.s32 %s12, %s19
    %p84 = scmp.eq.s32.totalorder %s83, 0
    %s86 = sadd.s32 %s85, 1
    %s87 = scalar_select %p84, %s85, %s86
    %p90 = pneg %p84
    %p91 = scmp.eq.s32.totalorder %s12, 1
    %p92 = por %p90, %p91
    %p93 = scmp.ne.s32.totalorder %s85, %s88
    %p94 = scmp.eq.s32.totalorder %s12, 0
    %p95 = por %p93, %p94
    %p96 = scmp.ne.s32.totalorder %s85, %s88
    %p97 = scmp.eq.s32.totalorder %s17, 1
    %p98 = por %p96, %p97
    %p99 = scmp.ne.s32.totalorder %s88, %s89
    %p100 = scmp.eq.s32.totalorder %s17, 0
    %p101 = por %p99, %p100
    %p102 = scmp.ne.s32.totalorder %s88, %s89
    %p103 = scmp.eq.s32.totalorder %s18, 1
    %p104 = por %p102, %p103
    %p106 = scmp.ne.s32.totalorder %s89, %s105
    %p107 = scmp.eq.s32.totalorder %s18, 0
    %p108 = por %p106, %p107
    %s110 = sadd.s32 %s109, 1
    %p113 = scmp.eq.s32.totalorder %s12, 1
    %p114 = scmp.ne.s32.totalorder %s109, %s111
    %p115 = scmp.eq.s32.totalorder %s12, 0
    %p116 = por %p114, %p115
    %p117 = scmp.ne.s32.totalorder %s109, %s111
    %p118 = scmp.eq.s32.totalorder %s17, 1
    %p119 = por %p117, %p118
    %p120 = scmp.ne.s32.totalorder %s111, %s112
    %p121 = scmp.eq.s32.totalorder %s17, 0
    %p122 = por %p120, %p121
    %p123 = scmp.ne.s32.totalorder %s111, %s112
    %p124 = scmp.eq.s32.totalorder %s18, 1
    %p125 = por %p123, %p124
    %p127 = scmp.ne.s32.totalorder %s112, %s126
    %p128 = scmp.eq.s32.totalorder %s18, 0
    %p129 = por %p127, %p128
    %s131 = sadd.s32 %s130, 1
    %p134 = scmp.eq.s32.totalorder %s12, 1
    %p135 = scmp.ne.s32.totalorder %s130, %s132
    %p136 = scmp.eq.s32.totalorder %s12, 0
    %p137 = por %p135, %p136
    %p138 = scmp.ne.s32.totalorder %s130, %s132
    %p139 = scmp.eq.s32.totalorder %s17, 1
    %p140 = por %p138, %p139
    %p141 = scmp.ne.s32.totalorder %s132, %s133
    %p142 = scmp.eq.s32.totalorder %s17, 0
    %p143 = por %p141, %p142
    %p144 = scmp.ne.s32.totalorder %s132, %s133
    %p145 = scmp.eq.s32.totalorder %s18, 1
    %p146 = por %p144, %p145
    %p148 = scmp.ne.s32.totalorder %s133, %s147
    %p149 = scmp.eq.s32.totalorder %s18, 0
    %p150 = por %p148, %p149
    %s151 = ssub.s32 %s12, %s19
    %p152 = scmp.eq.s32.totalorder %s151, 0
    %s154 = sadd.s32 %s153, 1
    %s155 = scalar_select %p152, %s153, %s154
    %p158 = pneg %p152
    %p159 = scmp.eq.s32.totalorder %s12, 1
    %p160 = por %p158, %p159
    %p161 = scmp.ne.s32.totalorder %s153, %s156
    %p162 = scmp.eq.s32.totalorder %s12, 0
    %p163 = por %p161, %p162
    %p164 = scmp.ne.s32.totalorder %s153, %s156
    %p165 = scmp.eq.s32.totalorder %s17, 1
    %p166 = por %p164, %p165
    %p167 = scmp.ne.s32.totalorder %s156, %s157
    %p168 = scmp.eq.s32.totalorder %s17, 0
    %p169 = por %p167, %p168
    %p170 = scmp.ne.s32.totalorder %s156, %s157
    %p171 = scmp.eq.s32.totalorder %s18, 1
    %p172 = por %p170, %p171
    %p174 = scmp.ne.s32.totalorder %s157, %s173
    %p175 = scmp.eq.s32.totalorder %s18, 0
    %p176 = por %p174, %p175
    %p177 = scmp.le.s32.totalorder 1, %s12
    %p178 = scmp.lt.s32.totalorder %s12, 3
    %p179 = pnand %p177, %p178
    %p180 = pneg %p179
    // Predicated region
    $region9: #{fcn_forward.3} parent=5 // pred_check
      _
    $region10: #{fcn_forward.3} parent=5 // pred_check_branch
      %182 = sbr.rel (%p179) target = $region12
    $region11: #{fcn_forward.3} parent=5 // pred_region
      %s183 = ssub.s32 %s12, 1
      // Predicated region
      $region13: #{fcn_forward.3} parent=11 // pred_check
        %p184 = pneg %p33
      $region14: #{fcn_forward.3} parent=11 // pred_check_branch
        %186 = sbr.rel (%p184) target = $region16
      $region15: #{fcn_forward.3} parent=11 // pred_region
        _
      $region16: #{fcn_forward.3} parent=11 // pred_fallthru
        _
      // Predicated region
      $region17: #{fcn_forward.3} parent=11 // pred_check
        %p187 = pneg %p54
      $region18: #{fcn_forward.3} parent=11 // pred_check_branch
        %189 = sbr.rel (%p187) target = $region20
      $region19: #{fcn_forward.3} parent=11 // pred_region
        _
      $region20: #{fcn_forward.3} parent=11 // pred_fallthru
        _
      // Predicated region
      $region21: #{fcn_forward.3} parent=11 // pred_check
        %p190 = pneg %p75
      $region22: #{fcn_forward.3} parent=11 // pred_check_branch
        %192 = sbr.rel (%p190) target = $region24
      $region23: #{fcn_forward.3} parent=11 // pred_region
        _
      $region24: #{fcn_forward.3} parent=11 // pred_fallthru
        _
      // Predicated region
      $region25: #{fcn_forward.3} parent=11 // pred_check
        %p193 = pneg %p122
      $region26: #{fcn_forward.3} parent=11 // pred_check_branch
        %195 = sbr.rel (%p193) target = $region28
      $region27: #{fcn_forward.3} parent=11 // pred_region
        _
      $region28: #{fcn_forward.3} parent=11 // pred_fallthru
        _
      // Predicated region
      $region29: #{fcn_forward.3} parent=11 // pred_check
        %p196 = pneg %p143
      $region30: #{fcn_forward.3} parent=11 // pred_check_branch
        %198 = sbr.rel (%p196) target = $region32
      $region31: #{fcn_forward.3} parent=11 // pred_region
        _
      $region32: #{fcn_forward.3} parent=11 // pred_fallthru
        _
    $region12: #{fcn_forward.3} parent=5 // pred_fallthru
      _
    %p199 = scmp.lt.s32.totalorder %s12, 2
    // Predicated region
    $region33: #{fcn_forward.3} parent=5 // pred_check
      %p200 = pneg %p199
    $region34: #{fcn_forward.3} parent=5 // pred_check_branch
      %202 = sbr.rel (%p200) target = $region36
    $region35: #{fcn_forward.3} parent=5 // pred_region
      // Predicated region
      $region37: #{fcn_forward.3} parent=35 // pred_check
        %p203 = pneg %p95
      $region38: #{fcn_forward.3} parent=35 // pred_check_branch
        %205 = sbr.rel (%p203) target = $region40
      $region39: #{fcn_forward.3} parent=35 // pred_region
        %p206 = scmp.lt.s32.totalorder %s12, 1
        %s207 = scalar_select %p206, %s12, 1
        %s208 = smul.addr %s207, 4
        %s209 = smul.addr %s208, 8
        %s210 = scalar_lea.vmem %s3, %s209
      $region40: #{fcn_forward.3} parent=35 // pred_fallthru
        _
    $region36: #{fcn_forward.3} parent=5 // pred_fallthru
      _
    %p211 = scmp.le.s32.totalorder 1, %s12
    %p212 = scmp.lt.s32.totalorder %s12, 3
    %p213 = pnand %p211, %p212
    %p214 = pneg %p213
    // Predicated region
    $region41: #{fcn_forward.3} parent=5 // pred_check
      _
    $region42: #{fcn_forward.3} parent=5 // pred_check_branch
      %216 = sbr.rel (%p213) target = $region44
    $region43: #{fcn_forward.3} parent=5 // pred_region
      %s217 = ssub.s32 %s12, 1
      %p218 = pneg %p33
      %p219 = pneg %p30
      %p220 = pneg %p54
      %p221 = pneg %p51
      %p222 = pneg %p75
      %p223 = pneg %p72
      %p224 = scmp.lt.s32.totalorder %s17, 1
      %s225 = scalar_select %p224, %s17, 1
      %s226 = smul.addr %s225, 4
      %s227 = smul.addr %s226, 8
      %s228 = scalar_lea.vmem %s3, %s227
      %p229 = pneg %p101
      %p230 = pneg %p98
      %p231 = pneg %p122
      %p232 = pneg %p119
      %p233 = pneg %p143
      %p234 = pneg %p140
      %p235 = pneg %p169
      %p236 = pneg %p166
      %p237 = scmp.lt.s32.totalorder %s17, 1
      %s238 = scalar_select %p237, %s17, 1
      %s239 = smul.addr %s238, 2
      %s240 = smul.addr %s239, 4
      %s241 = scalar_lea.vmem %s6, %s240
      %p242 = scmp.lt.s32.totalorder %s17, 1
      %s243 = scalar_select %p242, %s17, 1
      %s244 = smul.addr %s243, 4
      %s245 = smul.addr %s244, 8
      %s246 = scalar_lea.vmem %s3, %s245
      %p247 = scmp.lt.s32.totalorder %s17, 1
      %s248 = scalar_select %p247, %s17, 1
      %s249 = smul.addr %s248, 2
      %s250 = smul.addr %s249, 4
      %s251 = scalar_lea.vmem %s6, %s250
      %v255 = vlaneseq
      %v256 = vand.u32 %v255, 127
      %v257 = vadd.s32 %v256, 128
      %vm258 = vcmp.lt.s32.totalorder %v256, 0
      %v259 = vsub.s32 0, %v256
      %v260 = vsel %vm258, %v259, %v256
      %v261 = vshrl.u32 %v260, 4
      %v262 = vand.u32 %v260, 15
      %v263 = vsub.s32 0, %v262
      %v264 = vsel %vm258, %v263, %v262
      %vm265 = vcmp.lt.s32.totalorder %v257, 0
      %v266 = vsub.s32 0, %v257
      %v267 = vsel %vm265, %v266, %v257
      %v268 = vshrl.u32 %v267, 4
      %v269 = vand.u32 %v267, 15
      %v270 = vsub.s32 0, %v269
      %v271 = vsel %vm265, %v270, %v269
      %vm272 = vcmp.ne.s32.totalorder %v264, 0
      %vm273 = vcmp.ne.s32.totalorder %v271, 0
      %vm274 = vcmp.lt.s32.totalorder %v264, 0
      %vm275 = vcmp.lt.s32.totalorder %v271, 0
      %vm276 = vmand %vm274, %vm272
      %vm277 = vmand %vm275, %vm273
      %v278 = vadd.s32 %v264, 16
      %v279 = vadd.s32 %v271, 16
      %v280 = vsel %vm276, %v278, %v264
      %v281 = vsel %vm277, %v279, %v271
      %v282 = vld [vmem:[%s0] sm:$0xff]
      %v283 = vld [vmem:[%s0 + $0x8] sm:$0xff]
      %v284 = vld [vmem:[%s0 + $0x10] sm:$0xff]
      %v285 = vld [vmem:[%s0 + $0x18] sm:$0xff]
      %vm286 = vcmask 15360
      %v287 = vsel %vm286, %v282, 0.0
      %v288 = vsel %vm286, %v284, 0.0
      %v289 = vadd.f32 %v287, %v288
      %v290 = vsel %vm286, %v283, 0.0
      %v291 = vsel %vm286, %v285, 0.0
      %v292 = vadd.f32 %v290, %v291
      %v293 = vmul.f32 %v289, 0.001953125
      %v294 = vmul.f32 %v292, 0.001953125
      %v295 = vmul.f32 %v293, %v293
      %v296 = vmul.f32 %v294, %v294
      %299 = vrot.lane.b32.xlu0 %v295, 1
      %v300 = vpop.permute.xlu0 %299
      %301 = vrot.lane.b32.xlu0 %v296, 1
      %v302 = vpop.permute.xlu0 %301
      %v305 = vsub.f32 %v293, %v300
      %v306 = vsub.f32 %v294, %v302
      %v307 = vmax.f32 %v305, 0.0
      %v308 = vmax.f32 %v306, 0.0
      %v309 = vadd.f32 %v307, 1e-05
      %v310 = vadd.f32 %v308, 1e-05
      %v311 = vrsqrt.pop %v309
      %v312 = vrsqrt.pop %v310
      %v313 = vld [vmem:[%s1] sm:$0xff]
      %v314 = vld [vmem:[%s1 + $0x8] sm:$0xff]
      %317 = vrot.lane.b32.xlu0 %v311, 127
      %v318 = vpop.permute.xlu0 %317
      %319 = vrot.lane.b32.xlu0 %v312, 127
      %v320 = vpop.permute.xlu0 %319
      %v323 = vmul.f32 %v313, %v318
      %v324 = vmul.f32 %v314, %v320
      %v325 = vld [vmem:[%s2] sm:$0xff]
      %v326 = vld [vmem:[%s2 + $0x8] sm:$0xff]
      %v327 = vmul.f32 %v293, %v323
      %v328 = vmul.f32 %v294, %v324
      %v329 = vsub.f32 %v325, %v327
      %v330 = vsub.f32 %v326, %v328
      %v331 = vld [vmem:[%s246] sm:$0xff]
      %v332 = vld [vmem:[%s246 + $0x8] sm:$0xff]
      %v333 = vld [vmem:[%s246 + $0x10] sm:$0xff]
      %v334 = vld [vmem:[%s246 + $0x18] sm:$0xff]
      %336 = vset.pattern.permute.xlu0 0
      %337 = vperm.xlu0 %336, %v323
      %v338 = vpop.permute.xlu0 %337
      %341 = vset.pattern.permute.xlu0 0
      %342 = vperm.xlu0 %341, %v324
      %v343 = vpop.permute.xlu0 %342
      %v345 = vmul.f32 %v331, %v338
      %v346 = vmul.f32 %v332, %v338
      %v347 = vmul.f32 %v333, %v343
      %v348 = vmul.f32 %v334, %v343
      %350 = vset.pattern.permute.xlu0 0
      %351 = vperm.xlu0 %350, %v329
      %v352 = vpop.permute.xlu0 %351
      %355 = vset.pattern.permute.xlu0 0
      %356 = vperm.xlu0 %355, %v330
      %v357 = vpop.permute.xlu0 %356
      %v359 = vadd.f32 %v345, %v352
      %v360 = vadd.f32 %v346, %v352
      %v361 = vadd.f32 %v347, %v357
      %v362 = vadd.f32 %v348, %v357
      %vm363 = vcmp.gt.f32.partialorder %v359, 0.0
      %vm364 = vcmp.gt.f32.partialorder %v360, 0.0
      %vm365 = vcmp.gt.f32.partialorder %v361, 0.0
      %vm366 = vcmp.gt.f32.partialorder %v362, 0.0
      %v367 = vmul.f32 %v359, 0.2
      %v368 = vmul.f32 %v360, 0.2
      %v369 = vmul.f32 %v361, 0.2
      %v370 = vmul.f32 %v362, 0.2
      %v371 = vsel %vm363, %v359, %v367
      %v372 = vsel %vm364, %v360, %v368
      %v373 = vsel %vm365, %v361, %v369
      %v374 = vsel %vm366, %v362, %v370
      %v375 = vpack.c.bf16 %v373, %v371
      %v376 = vpack.c.bf16 %v374, %v372
      %379 = vrot.lane.b32.xlu0 %v375, 17
      %v380 = vpop.permute.xlu0 %379
      %381 = vrot.lane.b32.xlu0 %v376, 17
      %v382 = vpop.permute.xlu0 %381
      %vm383 = vcmask 138240
      %v384 = vsel %vm383, %v380, %v382
      %vm386 = vcmask 138240
      %v389 = vsel %vm386, 0, %v380
      %v392 = vsel %vm386, %v382, 0
      %vm394 = vcmp.ge.s32.totalorder %v280, 1
      %vm395 = vcmp.ge.s32.totalorder %v281, 1
      %v396 = vsel %vm394, 1, 0
      %v397 = vsel %vm395, 1, 0
      %vm398 = vcmp.eq.s32.totalorder %v396, 1
      %vm399 = vcmp.eq.s32.totalorder %v397, 1
      %vm400 = vmpackc.low %vm399, %vm398
      %v401 = vsel %vm400, 65537, 0
      %v402 = vlaneseq
      %v403 = vshrl.u32 %v402, 7
      %v404 = vsub.s32 0, %v403
      %v405 = vrot.slane %v401, %v404
      %v406 = vlaneseq
      %v407 = vshrl.u32 %v406, 7
      %v408 = vsub.s32 4, %v407
      %v409 = vrot.slane %v401, %v408
      %vm410 = vcmp.ne.s16.totalorder %v405, 0
      %vm411 = vcmp.ne.s16.totalorder %v409, 0
      %v412 = vsel %vm410, %v389, 0
      %v413 = vsel %vm411, %v384, 0
      %v414 = vld [vmem:[%s4] sm:$0x3]
      %s415 = scalar_lea.vmem %s4, 2
      %v416 = vld [vmem:[%s415] sm:$0x3]
      %419 = vrot.lane.b32.xlu0 %v389, 127
      %v420 = vpop.permute.xlu0 %419
      %421 = vrot.lane.b32.xlu0 %v384, 127
      %v422 = vpop.permute.xlu0 %421
      %423 = vrot.lane.b32.xlu0 %v392, 127
      %v424 = vpop.permute.xlu0 %423
      %vm425 = vcmask 1039360
      %v426 = vsel %vm425, %v420, %v422
      %v427 = vsel %vm425, %v422, %v424
      %vm430 = vcmask 130048
      %v432 = vsel %vm430, %v416, 0
      %434 = vmatprep.subr.bf16.mxu0 0
      %435 = vmatpush1.bf16.msra.mxu0 0
      %436 = vmatprep.subr.bf16.mxu0 0
      %437 = vmatpush1.bf16.msra.mxu0 0
      %438 = vmatprep.subr.bf16.mxu0 0
      %439 = vmatpush1.bf16.msra.mxu0 0
      %440 = vmatprep.subr.bf16.mxu0 0
      %441 = vmatpush1.bf16.msra.mxu0 0
      %442 = vmatprep.subr.bf16.mxu0 0
      %443 = vmatpush1.bf16.msra.mxu0 0
      %444 = vmatprep.subr.bf16.mxu0 0
      %445 = vmatpush1.bf16.msra.mxu0 0
      %446 = vmatprep.subr.bf16.mxu0 0
      %447 = vmatpush1.bf16.msra.mxu0 0
      %448 = vmatprep.subr.bf16.mxu0 %v427
      %449 = vmatpush1.bf16.msra.mxu0 %v426
      %450 = vmatprep.subr.bf16.mxu0 0
      %451 = vmatpush2.bf16.msra.mxu0 0
      %452 = vmatprep.subr.bf16.mxu0 0
      %453 = vmatpush2.bf16.msra.mxu0 0
      %454 = vmatprep.subr.bf16.mxu0 0
      %455 = vmatpush2.bf16.msra.mxu0 0
      %456 = vmatprep.subr.bf16.mxu0 0
      %457 = vmatpush2.bf16.msra.mxu0 0
      %458 = vmatprep.subr.bf16.mxu0 0
      %459 = vmatpush2.bf16.msra.mxu0 0
      %460 = vmatprep.subr.bf16.mxu0 0
      %461 = vmatpush2.bf16.msra.mxu0 0
      %462 = vmatprep.subr.bf16.mxu0 0
      %463 = vmatpush2.bf16.msra.mxu0 0
      %464 = vmatprep.subr.bf16.mxu0 0
      %465 = vmatpush2.bf16.msra.mxu0 0
      %466 = vmatprep.mubr.bf16.mxu0 0
      %467 = vmatmul.mubr.bf16.gmra.mxu0 %v432
      %v468 = vpop.f32.mrf.mxu0
      %v469 = vadd.f32 0.0, %v468
      %v470 = vpop.f32.mrf.mxu0
      %v471 = vadd.f32 0.0, %v470
      %v472 = vpop.f32.mrf.mxu0
      %v473 = vpop.f32.mrf.mxu0
      %474 = vdwg.mxu0
      %v476 = vsel %vm430, %v414, 0
      %478 = vmatprep.subr.bf16.mxu0 0
      %479 = vmatpush1.bf16.msra.mxu0 0
      %480 = vmatprep.subr.bf16.mxu0 0
      %481 = vmatpush1.bf16.msra.mxu0 0
      %482 = vmatprep.subr.bf16.mxu0 0
      %483 = vmatpush1.bf16.msra.mxu0 0
      %484 = vmatprep.subr.bf16.mxu0 0
      %485 = vmatpush1.bf16.msra.mxu0 0
      %486 = vmatprep.subr.bf16.mxu0 0
      %487 = vmatpush1.bf16.msra.mxu0 0
      %488 = vmatprep.subr.bf16.mxu0 0
      %489 = vmatpush1.bf16.msra.mxu0 0
      %490 = vmatprep.subr.bf16.mxu0 0
      %491 = vmatpush1.bf16.msra.mxu0 0
      %492 = vmatprep.subr.bf16.mxu0 %v413
      %493 = vmatpush1.bf16.msra.mxu0 %v412
      %494 = vmatprep.subr.bf16.mxu0 0
      %495 = vmatpush2.bf16.msra.mxu0 0
      %496 = vmatprep.subr.bf16.mxu0 0
      %497 = vmatpush2.bf16.msra.mxu0 0
      %498 = vmatprep.subr.bf16.mxu0 0
      %499 = vmatpush2.bf16.msra.mxu0 0
      %500 = vmatprep.subr.bf16.mxu0 0
      %501 = vmatpush2.bf16.msra.mxu0 0
      %502 = vmatprep.subr.bf16.mxu0 0
      %503 = vmatpush2.bf16.msra.mxu0 0
      %504 = vmatprep.subr.bf16.mxu0 0
      %505 = vmatpush2.bf16.msra.mxu0 0
      %506 = vmatprep.subr.bf16.mxu0 0
      %507 = vmatpush2.bf16.msra.mxu0 0
      %508 = vmatprep.subr.bf16.mxu0 0
      %509 = vmatpush2.bf16.msra.mxu0 0
      %510 = vmatprep.mubr.bf16.mxu0 0
      %511 = vmatmul.mubr.bf16.gmra.mxu0 %v476
      %v512 = vpop.f32.mrf.mxu0
      %v513 = vadd.f32 %v469, %v512
      %v514 = vpop.f32.mrf.mxu0
      %v515 = vadd.f32 %v471, %v514
      %v516 = vpop.f32.mrf.mxu0
      %v517 = vpop.f32.mrf.mxu0
      %518 = vdwg.mxu0
      %vm519 = vcmp.lt.s32.totalorder %v280, 15
      %vm520 = vcmp.lt.s32.totalorder %v281, 15
      %v521 = vsel %vm519, 1, 0
      %v522 = vsel %vm520, 1, 0
      %vm523 = vcmp.eq.s32.totalorder %v521, 1
      %vm524 = vcmp.eq.s32.totalorder %v522, 1
      %vm525 = vmpackc.low %vm524, %vm523
      %v526 = vsel %vm525, 65537, 0
      %v527 = vlaneseq
      %v528 = vshrl.u32 %v527, 7
      %v529 = vsub.s32 0, %v528
      %v530 = vrot.slane %v526, %v529
      %v531 = vlaneseq
      %v532 = vshrl.u32 %v531, 7
      %v533 = vsub.s32 4, %v532
      %v534 = vrot.slane %v526, %v533
      %535 = vrot.lane.b32.xlu0 %v530, 2
      %v536 = vpop.permute.xlu0 %535
      %537 = vrot.lane.b32.xlu0 %v534, 2
      %v538 = vpop.permute.xlu0 %537
      %vm539 = vcmask 15360
      %v540 = vsel %vm539, %v536, %v538
      %vm541 = vcmp.ne.s16.totalorder %v536, 0
      %vm542 = vcmp.ne.s16.totalorder %v540, 0
      %vm543 = vcmp.ne.s16.totalorder %v538, 0
      %v544 = vsel %vm541, %v389, 0
      %v545 = vsel %vm542, %v384, 0
      %v546 = vsel %vm543, %v392, 0
      %s547 = scalar_lea.vmem %s4, 4
      %v548 = vld [vmem:[%s547] sm:$0x3]
      %552 = vrot.lane.b32.xlu0 %v544, 126
      %v553 = vpop.permute.xlu0 %552
      %554 = vrot.lane.b32.xlu0 %v545, 126
      %v555 = vpop.permute.xlu0 %554
      %556 = vrot.lane.b32.xlu0 %v546, 126
      %v557 = vpop.permute.xlu0 %556
      %vm558 = vcmask 1031168
      %v559 = vsel %vm558, %v553, %v555
      %v560 = vsel %vm558, %v555, %v557
      %v564 = vsel %vm430, %v548, 0
      %566 = vmatprep.subr.bf16.mxu0 0
      %567 = vmatpush1.bf16.msra.mxu0 0
      %568 = vmatprep.subr.bf16.mxu0 0
      %569 = vmatpush1.bf16.msra.mxu0 0
      %570 = vmatprep.subr.bf16.mxu0 0
      %571 = vmatpush1.bf16.msra.mxu0 0
      %572 = vmatprep.subr.bf16.mxu0 0
      %573 = vmatpush1.bf16.msra.mxu0 0
      %574 = vmatprep.subr.bf16.mxu0 0
      %575 = vmatpush1.bf16.msra.mxu0 0
      %576 = vmatprep.subr.bf16.mxu0 0
      %577 = vmatpush1.bf16.msra.mxu0 0
      %578 = vmatprep.subr.bf16.mxu0 0
      %579 = vmatpush1.bf16.msra.mxu0 0
      %580 = vmatprep.subr.bf16.mxu0 %v560
      %581 = vmatpush1.bf16.msra.mxu0 %v559
      %582 = vmatprep.subr.bf16.mxu0 0
      %583 = vmatpush2.bf16.msra.mxu0 0
      %584 = vmatprep.subr.bf16.mxu0 0
      %585 = vmatpush2.bf16.msra.mxu0 0
      %586 = vmatprep.subr.bf16.mxu0 0
      %587 = vmatpush2.bf16.msra.mxu0 0
      %588 = vmatprep.subr.bf16.mxu0 0
      %589 = vmatpush2.bf16.msra.mxu0 0
      %590 = vmatprep.subr.bf16.mxu0 0
      %591 = vmatpush2.bf16.msra.mxu0 0
      %592 = vmatprep.subr.bf16.mxu0 0
      %593 = vmatpush2.bf16.msra.mxu0 0
      %594 = vmatprep.subr.bf16.mxu0 0
      %595 = vmatpush2.bf16.msra.mxu0 0
      %596 = vmatprep.subr.bf16.mxu0 0
      %597 = vmatpush2.bf16.msra.mxu0 0
      %598 = vmatprep.mubr.bf16.mxu0 0
      %599 = vmatmul.mubr.bf16.gmra.mxu0 %v564
      %v600 = vpop.f32.mrf.mxu0
      %v601 = vadd.f32 0.0, %v600
      %v602 = vpop.f32.mrf.mxu0
      %v603 = vadd.f32 0.0, %v602
      %v604 = vpop.f32.mrf.mxu0
      %v605 = vpop.f32.mrf.mxu0
      %606 = vdwg.mxu0
      %v607 = vadd.f32 %v513, %v601
      %v608 = vadd.f32 %v515, %v603
      %609 = vrot.lane.b32.xlu0 %v405, 16
      %v610 = vpop.permute.xlu0 %609
      %611 = vrot.lane.b32.xlu0 %v409, 16
      %v612 = vpop.permute.xlu0 %611
      %vm613 = vcmask 130048
      %v614 = vsel %vm613, %v610, %v612
      %vm615 = vcmp.ne.s16.totalorder %v610, 0
      %vm616 = vcmp.ne.s16.totalorder %v614, 0
      %vm617 = vcmp.ne.s16.totalorder %v612, 0
      %v618 = vsel %vm615, %v389, 0
      %v619 = vsel %vm616, %v384, 0
      %v620 = vsel %vm617, %v392, 0
      %s621 = scalar_lea.vmem %s4, 6
      %v622 = vld [vmem:[%s621] sm:$0x3]
      %626 = vrot.lane.b32.xlu0 %v618, 112
      %v627 = vpop.permute.xlu0 %626
      %628 = vrot.lane.b32.xlu0 %v619, 112
      %v629 = vpop.permute.xlu0 %628
      %630 = vrot.lane.b32.xlu0 %v620, 112
      %v631 = vpop.permute.xlu0 %630
      %vm632 = vcmask 916480
      %v633 = vsel %vm632, %v627, %v629
      %v634 = vsel %vm632, %v629, %v631
      %v638 = vsel %vm430, %v622, 0
      %640 = vmatprep.subr.bf16.mxu0 0
      %641 = vmatpush1.bf16.msra.mxu0 0
      %642 = vmatprep.subr.bf16.mxu0 0
      %643 = vmatpush1.bf16.msra.mxu0 0
      %644 = vmatprep.subr.bf16.mxu0 0
      %645 = vmatpush1.bf16.msra.mxu0 0
      %646 = vmatprep.subr.bf16.mxu0 0
      %647 = vmatpush1.bf16.msra.mxu0 0
      %648 = vmatprep.subr.bf16.mxu0 0
      %649 = vmatpush1.bf16.msra.mxu0 0
      %650 = vmatprep.subr.bf16.mxu0 0
      %651 = vmatpush1.bf16.msra.mxu0 0
      %652 = vmatprep.subr.bf16.mxu0 0
      %653 = vmatpush1.bf16.msra.mxu0 0
      %654 = vmatprep.subr.bf16.mxu0 %v634
      %655 = vmatpush1.bf16.msra.mxu0 %v633
      %656 = vmatprep.subr.bf16.mxu0 0
      %657 = vmatpush2.bf16.msra.mxu0 0
      %658 = vmatprep.subr.bf16.mxu0 0
      %659 = vmatpush2.bf16.msra.mxu0 0
      %660 = vmatprep.subr.bf16.mxu0 0
      %661 = vmatpush2.bf16.msra.mxu0 0
      %662 = vmatprep.subr.bf16.mxu0 0
      %663 = vmatpush2.bf16.msra.mxu0 0
      %664 = vmatprep.subr.bf16.mxu0 0
      %665 = vmatpush2.bf16.msra.mxu0 0
      %666 = vmatprep.subr.bf16.mxu0 0
      %667 = vmatpush2.bf16.msra.mxu0 0
      %668 = vmatprep.subr.bf16.mxu0 0
      %669 = vmatpush2.bf16.msra.mxu0 0
      %670 = vmatprep.subr.bf16.mxu0 0
      %671 = vmatpush2.bf16.msra.mxu0 0
      %672 = vmatprep.mubr.bf16.mxu0 0
      %673 = vmatmul.mubr.bf16.gmra.mxu0 %v638
      %v674 = vpop.f32.mrf.mxu0
      %v675 = vadd.f32 0.0, %v674
      %v676 = vpop.f32.mrf.mxu0
      %v677 = vadd.f32 0.0, %v676
      %v678 = vpop.f32.mrf.mxu0
      %v679 = vpop.f32.mrf.mxu0
      %680 = vdwg.mxu0
      %v681 = vadd.f32 %v607, %v675
      %v682 = vadd.f32 %v608, %v677
      %s683 = scalar_lea.vmem %s4, 8
      %v684 = vld [vmem:[%s683] sm:$0x3]
      %v686 = vsel %vm430, %v684, 0
      %688 = vmatprep.subr.bf16.mxu0 0
      %689 = vmatpush1.bf16.msra.mxu0 0
      %690 = vmatprep.subr.bf16.mxu0 0
      %691 = vmatpush1.bf16.msra.mxu0 0
      %692 = vmatprep.subr.bf16.mxu0 0
      %693 = vmatpush1.bf16.msra.mxu0 0
      %694 = vmatprep.subr.bf16.mxu0 0
      %695 = vmatpush1.bf16.msra.mxu0 0
      %696 = vmatprep.subr.bf16.mxu0 0
      %697 = vmatpush1.bf16.msra.mxu0 0
      %698 = vmatprep.subr.bf16.mxu0 0
      %699 = vmatpush1.bf16.msra.mxu0 0
      %700 = vmatprep.subr.bf16.mxu0 0
      %701 = vmatpush1.bf16.msra.mxu0 0
      %702 = vmatprep.subr.bf16.mxu0 %v376
      %703 = vmatpush1.bf16.msra.mxu0 %v375
      %704 = vmatprep.subr.bf16.mxu0 0
      %705 = vmatpush2.bf16.msra.mxu0 0
      %706 = vmatprep.subr.bf16.mxu0 0
      %707 = vmatpush2.bf16.msra.mxu0 0
      %708 = vmatprep.subr.bf16.mxu0 0
      %709 = vmatpush2.bf16.msra.mxu0 0
      %710 = vmatprep.subr.bf16.mxu0 0
      %711 = vmatpush2.bf16.msra.mxu0 0
      %712 = vmatprep.subr.bf16.mxu0 0
      %713 = vmatpush2.bf16.msra.mxu0 0
      %714 = vmatprep.subr.bf16.mxu0 0
      %715 = vmatpush2.bf16.msra.mxu0 0
      %716 = vmatprep.subr.bf16.mxu0 0
      %717 = vmatpush2.bf16.msra.mxu0 0
      %718 = vmatprep.subr.bf16.mxu0 0
      %719 = vmatpush2.bf16.msra.mxu0 0
      %720 = vmatprep.mubr.bf16.mxu0 0
      %721 = vmatmul.mubr.bf16.gmra.mxu0 %v686
      %v722 = vpop.f32.mrf.mxu0
      %v723 = vadd.f32 0.0, %v722
      %v724 = vpop.f32.mrf.mxu0
      %v725 = vadd.f32 0.0, %v724
      %v726 = vpop.f32.mrf.mxu0
      %v727 = vpop.f32.mrf.mxu0
      %728 = vdwg.mxu0
      %v729 = vadd.f32 %v681, %v723
      %v730 = vadd.f32 %v682, %v725
      %731 = vrot.lane.b32.xlu0 %v530, 18
      %v732 = vpop.permute.xlu0 %731
      %733 = vrot.lane.b32.xlu0 %v534, 18
      %v734 = vpop.permute.xlu0 %733
      %vm735 = vcmask 146432
      %v736 = vsel %vm735, %v732, %v734
      %vm737 = vcmp.ne.s16.totalorder %v732, 0
      %vm738 = vcmp.ne.s16.totalorder %v736, 0
      %vm739 = vcmp.ne.s16.totalorder %v734, 0
      %v740 = vsel %vm737, %v389, 0
      %v741 = vsel %vm738, %v384, 0
      %v742 = vsel %vm739, %v392, 0
      %s743 = scalar_lea.vmem %s4, 10
      %v744 = vld [vmem:[%s743] sm:$0x3]
      %748 = vrot.lane.b32.xlu0 %v740, 110
      %v749 = vpop.permute.xlu0 %748
      %750 = vrot.lane.b32.xlu0 %v741, 110
      %v751 = vpop.permute.xlu0 %750
      %752 = vrot.lane.b32.xlu0 %v742, 110
      %v753 = vpop.permute.xlu0 %752
      %vm754 = vcmask 900096
      %v755 = vsel %vm754, %v749, %v751
      %v756 = vsel %vm754, %v751, %v753
      %v760 = vsel %vm430, %v744, 0
      %762 = vmatprep.subr.bf16.mxu0 0
      %763 = vmatpush1.bf16.msra.mxu0 0
      %764 = vmatprep.subr.bf16.mxu0 0
      %765 = vmatpush1.bf16.msra.mxu0 0
      %766 = vmatprep.subr.bf16.mxu0 0
      %767 = vmatpush1.bf16.msra.mxu0 0
      %768 = vmatprep.subr.bf16.mxu0 0
      %769 = vmatpush1.bf16.msra.mxu0 0
      %770 = vmatprep.subr.bf16.mxu0 0
      %771 = vmatpush1.bf16.msra.mxu0 0
      %772 = vmatprep.subr.bf16.mxu0 0
      %773 = vmatpush1.bf16.msra.mxu0 0
      %774 = vmatprep.subr.bf16.mxu0 0
      %775 = vmatpush1.bf16.msra.mxu0 0
      %776 = vmatprep.subr.bf16.mxu0 %v756
      %777 = vmatpush1.bf16.msra.mxu0 %v755
      %778 = vmatprep.subr.bf16.mxu0 0
      %779 = vmatpush2.bf16.msra.mxu0 0
      %780 = vmatprep.subr.bf16.mxu0 0
      %781 = vmatpush2.bf16.msra.mxu0 0
      %782 = vmatprep.subr.bf16.mxu0 0
      %783 = vmatpush2.bf16.msra.mxu0 0
      %784 = vmatprep.subr.bf16.mxu0 0
      %785 = vmatpush2.bf16.msra.mxu0 0
      %786 = vmatprep.subr.bf16.mxu0 0
      %787 = vmatpush2.bf16.msra.mxu0 0
      %788 = vmatprep.subr.bf16.mxu0 0
      %789 = vmatpush2.bf16.msra.mxu0 0
      %790 = vmatprep.subr.bf16.mxu0 0
      %791 = vmatpush2.bf16.msra.mxu0 0
      %792 = vmatprep.subr.bf16.mxu0 0
      %793 = vmatpush2.bf16.msra.mxu0 0
      %794 = vmatprep.mubr.bf16.mxu0 0
      %795 = vmatmul.mubr.bf16.gmra.mxu0 %v760
      %v796 = vpop.f32.mrf.mxu0
      %v797 = vadd.f32 0.0, %v796
      %v798 = vpop.f32.mrf.mxu0
      %v799 = vadd.f32 0.0, %v798
      %v800 = vpop.f32.mrf.mxu0
      %v801 = vpop.f32.mrf.mxu0
      %802 = vdwg.mxu0
      %v803 = vadd.f32 %v729, %v797
      %v804 = vadd.f32 %v730, %v799
      %805 = vrot.lane.b32.xlu0 %v405, 32
      %v806 = vpop.permute.xlu0 %805
      %807 = vrot.lane.b32.xlu0 %v409, 32
      %v808 = vpop.permute.xlu0 %807
      %vm809 = vcmask 261120
      %v810 = vsel %vm809, %v806, %v808
      %vm811 = vcmp.ne.s16.totalorder %v806, 0
      %vm812 = vcmp.ne.s16.totalorder %v810, 0
      %vm813 = vcmp.ne.s16.totalorder %v808, 0
      %v814 = vsel %vm811, %v389, 0
      %v815 = vsel %vm812, %v384, 0
      %v816 = vsel %vm813, %v392, 0
      %s817 = scalar_lea.vmem %s4, 12
      %v818 = vld [vmem:[%s817] sm:$0x3]
      %822 = vrot.lane.b32.xlu0 %v814, 96
      %v823 = vpop.permute.xlu0 %822
      %824 = vrot.lane.b32.xlu0 %v815, 96
      %v825 = vpop.permute.xlu0 %824
      %826 = vrot.lane.b32.xlu0 %v816, 96
      %v827 = vpop.permute.xlu0 %826
      %vm828 = vcmask 785408
      %v829 = vsel %vm828, %v823, %v825
      %v830 = vsel %vm828, %v825, %v827
      %v834 = vsel %vm430, %v818, 0
      %836 = vmatprep.subr.bf16.mxu0 0
      %837 = vmatpush1.bf16.msra.mxu0 0
      %838 = vmatprep.subr.bf16.mxu0 0
      %839 = vmatpush1.bf16.msra.mxu0 0
      %840 = vmatprep.subr.bf16.mxu0 0
      %841 = vmatpush1.bf16.msra.mxu0 0
      %842 = vmatprep.subr.bf16.mxu0 0
      %843 = vmatpush1.bf16.msra.mxu0 0
      %844 = vmatprep.subr.bf16.mxu0 0
      %845 = vmatpush1.bf16.msra.mxu0 0
      %846 = vmatprep.subr.bf16.mxu0 0
      %847 = vmatpush1.bf16.msra.mxu0 0
      %848 = vmatprep.subr.bf16.mxu0 0
      %849 = vmatpush1.bf16.msra.mxu0 0
      %850 = vmatprep.subr.bf16.mxu0 %v830
      %851 = vmatpush1.bf16.msra.mxu0 %v829
      %852 = vmatprep.subr.bf16.mxu0 0
      %853 = vmatpush2.bf16.msra.mxu0 0
      %854 = vmatprep.subr.bf16.mxu0 0
      %855 = vmatpush2.bf16.msra.mxu0 0
      %856 = vmatprep.subr.bf16.mxu0 0
      %857 = vmatpush2.bf16.msra.mxu0 0
      %858 = vmatprep.subr.bf16.mxu0 0
      %859 = vmatpush2.bf16.msra.mxu0 0
      %860 = vmatprep.subr.bf16.mxu0 0
      %861 = vmatpush2.bf16.msra.mxu0 0
      %862 = vmatprep.subr.bf16.mxu0 0
      %863 = vmatpush2.bf16.msra.mxu0 0
      %864 = vmatprep.subr.bf16.mxu0 0
      %865 = vmatpush2.bf16.msra.mxu0 0
      %866 = vmatprep.subr.bf16.mxu0 0
      %867 = vmatpush2.bf16.msra.mxu0 0
      %868 = vmatprep.mubr.bf16.mxu0 0
      %869 = vmatmul.mubr.bf16.gmra.mxu0 %v834
      %v870 = vpop.f32.mrf.mxu0
      %v871 = vadd.f32 0.0, %v870
      %v872 = vpop.f32.mrf.mxu0
      %v873 = vadd.f32 0.0, %v872
      %v874 = vpop.f32.mrf.mxu0
      %v875 = vpop.f32.mrf.mxu0
      %876 = vdwg.mxu0
      %v877 = vadd.f32 %v803, %v871
      %v878 = vadd.f32 %v804, %v873
      %s879 = scalar_lea.vmem %s4, 14
      %v880 = vld [vmem:[%s879] sm:$0x3]
      %881 = vrot.lane.b32.xlu0 %v389, 95
      %v882 = vpop.permute.xlu0 %881
      %883 = vrot.lane.b32.xlu0 %v384, 95
      %v884 = vpop.permute.xlu0 %883
      %885 = vrot.lane.b32.xlu0 %v392, 95
      %v886 = vpop.permute.xlu0 %885
      %vm887 = vcmask 777216
      %v888 = vsel %vm887, %v882, %v884
      %v889 = vsel %vm887, %v884, %v886
      %v893 = vsel %vm430, %v880, 0
      %895 = vmatprep.subr.bf16.mxu0 0
      %896 = vmatpush1.bf16.msra.mxu0 0
      %897 = vmatprep.subr.bf16.mxu0 0
      %898 = vmatpush1.bf16.msra.mxu0 0
      %899 = vmatprep.subr.bf16.mxu0 0
      %900 = vmatpush1.bf16.msra.mxu0 0
      %901 = vmatprep.subr.bf16.mxu0 0
      %902 = vmatpush1.bf16.msra.mxu0 0
      %903 = vmatprep.subr.bf16.mxu0 0
      %904 = vmatpush1.bf16.msra.mxu0 0
      %905 = vmatprep.subr.bf16.mxu0 0
      %906 = vmatpush1.bf16.msra.mxu0 0
      %907 = vmatprep.subr.bf16.mxu0 0
      %908 = vmatpush1.bf16.msra.mxu0 0
      %909 = vmatprep.subr.bf16.mxu0 %v889
      %910 = vmatpush1.bf16.msra.mxu0 %v888
      %911 = vmatprep.subr.bf16.mxu0 0
      %912 = vmatpush2.bf16.msra.mxu0 0
      %913 = vmatprep.subr.bf16.mxu0 0
      %914 = vmatpush2.bf16.msra.mxu0 0
      %915 = vmatprep.subr.bf16.mxu0 0
      %916 = vmatpush2.bf16.msra.mxu0 0
      %917 = vmatprep.subr.bf16.mxu0 0
      %918 = vmatpush2.bf16.msra.mxu0 0
      %919 = vmatprep.subr.bf16.mxu0 0
      %920 = vmatpush2.bf16.msra.mxu0 0
      %921 = vmatprep.subr.bf16.mxu0 0
      %922 = vmatpush2.bf16.msra.mxu0 0
      %923 = vmatprep.subr.bf16.mxu0 0
      %924 = vmatpush2.bf16.msra.mxu0 0
      %925 = vmatprep.subr.bf16.mxu0 0
      %926 = vmatpush2.bf16.msra.mxu0 0
      %927 = vmatprep.mubr.bf16.mxu0 0
      %928 = vmatmul.mubr.bf16.gmra.mxu0 %v893
      %v929 = vpop.f32.mrf.mxu0
      %v930 = vadd.f32 0.0, %v929
      %v931 = vpop.f32.mrf.mxu0
      %v932 = vadd.f32 0.0, %v931
      %v933 = vpop.f32.mrf.mxu0
      %v934 = vpop.f32.mrf.mxu0
      %935 = vdwg.mxu0
      %v936 = vadd.f32 %v877, %v930
      %v937 = vadd.f32 %v878, %v932
      %938 = vrot.lane.b32.xlu0 %v530, 34
      %v939 = vpop.permute.xlu0 %938
      %940 = vrot.lane.b32.xlu0 %v534, 34
      %v941 = vpop.permute.xlu0 %940
      %vm942 = vcmask 277504
      %v943 = vsel %vm942, %v939, %v941
      %vm944 = vcmp.ne.s16.totalorder %v939, 0
      %vm945 = vcmp.ne.s16.totalorder %v943, 0
      %vm946 = vcmp.ne.s16.totalorder %v941, 0
      %v947 = vsel %vm944, %v389, 0
      %v948 = vsel %vm945, %v384, 0
      %v949 = vsel %vm946, %v392, 0
      %s950 = scalar_lea.vmem %s4, 16
      %v951 = vld [vmem:[%s950] sm:$0x3]
      %955 = vrot.lane.b32.xlu0 %v947, 94
      %v956 = vpop.permute.xlu0 %955
      %957 = vrot.lane.b32.xlu0 %v948, 94
      %v958 = vpop.permute.xlu0 %957
      %959 = vrot.lane.b32.xlu0 %v949, 94
      %v960 = vpop.permute.xlu0 %959
      %vm961 = vcmask 769024
      %v962 = vsel %vm961, %v956, %v958
      %v963 = vsel %vm961, %v958, %v960
      %v967 = vsel %vm430, %v951, 0
      %969 = vmatprep.subr.bf16.mxu0 0
      %970 = vmatpush1.bf16.msra.mxu0 0
      %971 = vmatprep.subr.bf16.mxu0 0
      %972 = vmatpush1.bf16.msra.mxu0 0
      %973 = vmatprep.subr.bf16.mxu0 0
      %974 = vmatpush1.bf16.msra.mxu0 0
      %975 = vmatprep.subr.bf16.mxu0 0
      %976 = vmatpush1.bf16.msra.mxu0 0
      %977 = vmatprep.subr.bf16.mxu0 0
      %978 = vmatpush1.bf16.msra.mxu0 0
      %979 = vmatprep.subr.bf16.mxu0 0
      %980 = vmatpush1.bf16.msra.mxu0 0
      %981 = vmatprep.subr.bf16.mxu0 0
      %982 = vmatpush1.bf16.msra.mxu0 0
      %983 = vmatprep.subr.bf16.mxu0 %v963
      %984 = vmatpush1.bf16.msra.mxu0 %v962
      %985 = vmatprep.subr.bf16.mxu0 0
      %986 = vmatpush2.bf16.msra.mxu0 0
      %987 = vmatprep.subr.bf16.mxu0 0
      %988 = vmatpush2.bf16.msra.mxu0 0
      %989 = vmatprep.subr.bf16.mxu0 0
      %990 = vmatpush2.bf16.msra.mxu0 0
      %991 = vmatprep.subr.bf16.mxu0 0
      %992 = vmatpush2.bf16.msra.mxu0 0
      %993 = vmatprep.subr.bf16.mxu0 0
      %994 = vmatpush2.bf16.msra.mxu0 0
      %995 = vmatprep.subr.bf16.mxu0 0
      %996 = vmatpush2.bf16.msra.mxu0 0
      %997 = vmatprep.subr.bf16.mxu0 0
      %998 = vmatpush2.bf16.msra.mxu0 0
      %999 = vmatprep.subr.bf16.mxu0 0
      %1000 = vmatpush2.bf16.msra.mxu0 0
      %1001 = vmatprep.mubr.bf16.mxu0 0
      %1002 = vmatmul.mubr.bf16.gmra.mxu0 %v967
      %v1003 = vpop.f32.mrf.mxu0
      %v1004 = vadd.f32 0.0, %v1003
      %v1005 = vpop.f32.mrf.mxu0
      %v1006 = vadd.f32 0.0, %v1005
      %v1007 = vpop.f32.mrf.mxu0
      %v1008 = vpop.f32.mrf.mxu0
      %1009 = vdwg.mxu0
      %v1010 = vadd.f32 %v936, %v1004
      %v1011 = vadd.f32 %v937, %v1006
      %v1012 = vld [vmem:[%s5] sm:$0x7]
      %1014 = vset.pattern.permute.xlu0 0
      %1015 = vperm.xlu0 %1014, %v1012
      %v1016 = vpop.permute.xlu0 %1015
      %v1018 = vadd.f32 %v1010, %v1016
      %v1019 = vadd.f32 %v1011, %v1016
      %v1020 = vtanh.pop %v1018
      %v1021 = vtanh.pop %v1019
      %v1024 = vcombine.low %v1020, %v1021
      %1026 = vst [vmem:[%s251] sm:$0x77] %v1024
      %p1027 = scmp.lt.s32.totalorder %s17, 1
      %s1028 = scalar_select %p1027, %s17, 1
      %s1029 = smul.addr %s1028, 2
      %s1030 = smul.addr %s1029, 4
      %s1031 = scalar_lea.vmem %s6, %s1030
      // Predicated region
      $region45: #{fcn_forward.3} parent=43 // pred_check
        %p1032 = pneg %p166
      $region46: #{fcn_forward.3} parent=43 // pred_check_branch
        %1034 = sbr.rel (%p1032) target = $region48
      $region47: #{fcn_forward.3} parent=43 // pred_region
        _
      $region48: #{fcn_forward.3} parent=43 // pred_fallthru
        _
    $region44: #{fcn_forward.3} parent=5 // pred_fallthru
      _
    %p1035 = scmp.le.s32.totalorder 2, %s12
    // Predicated region
    $region49: #{fcn_forward.3} parent=5 // pred_check
      %p1036 = pneg %p1035
    $region50: #{fcn_forward.3} parent=5 // pred_check_branch
      %1038 = sbr.rel (%p1036) target = $region52
    $region51: #{fcn_forward.3} parent=5 // pred_region
      %s1039 = ssub.s32 %s12, 2
      // Predicated region
      $region53: #{fcn_forward.3} parent=51 // pred_check
        %p1040 = pneg %p172
      $region54: #{fcn_forward.3} parent=51 // pred_check_branch
        %1042 = sbr.rel (%p1040) target = $region56
      $region55: #{fcn_forward.3} parent=51 // pred_region
        %p1043 = scmp.lt.s32.totalorder %s18, 1
        %s1044 = scalar_select %p1043, %s18, 1
        %s1045 = smul.addr %s1044, 2
        %s1046 = smul.addr %s1045, 4
        %s1047 = scalar_lea.vmem %s6, %s1046
      $region56: #{fcn_forward.3} parent=51 // pred_fallthru
        _
    $region52: #{fcn_forward.3} parent=5 // pred_fallthru
      _
  $region6: #{fcn_forward.3} parent=0 // loop_footer
    %s16 = sadd.s32 1, %s12
  $region7: #{fcn_forward.3} parent=0 // loop_footer_branch
    %11 = sbr.rel target = $region3
  $region8: #{fcn_forward.3} parent=0 // loop_exit
    _

// kernel: fcn_forward.2
$region0: #{fcn_forward.2}
  #allocation0 [shape = 'u32[]', space=smem, size = 0x4, offset = 0x4, fixed_abs, tag = 'smem constant byte address 0x4 - core index']
  #allocation1 [shape = 'u32[144,128]{1,0:T(1,128)}', space=vmem, size = 0x12000, scoped, tag = 'internal scratch']
  %s0 = inlined_call_operand.vmem [shape: bf16[2,3,256], index: 0, kind: input, shape index: {}]
  %s1 = inlined_call_operand.vmem [shape: bf16[9,64,3], index: 1, kind: input, shape index: {}]
  %s2 = inlined_call_operand.vmem [shape: f32[64,1], index: 2, kind: input, shape index: {}]
  %s3 = inlined_call_operand.vmem [shape: bf16[9,16,64], index: 3, kind: input, shape index: {}]
  %s4 = inlined_call_operand.vmem [shape: f32[16,1], index: 4, kind: input, shape index: {}]
  %s5 = inlined_call_operand.vmem [shape: f32[2,16,256], index: 5, kind: output, shape index: {0}]
  %s6 = inlined_call_operand.vmem [shape: f32[2,16,2], index: 6, kind: output, shape index: {1}]
  %7 = xla_tuple %s5, %s6
  %s8 = sld [smem:[#allocation0]]
  $region61: #{fcn_forward.2} parent=0
    _
  %s10 = ssub.s32 1, %s8
  %s11 = scalar_select 0, %s10, %s8
  loop: start=0, step=1, limit=4
  $region2: #{fcn_forward.2} parent=0 // loop_pre_header
    _
  $region3: #{fcn_forward.2} parent=0 // loop_header
    %s13 = sphi 0, %s17
    %p14 = scmp.ge.s32.totalorder %s13, 4
    %s23 = sphi 0, %s25
    %s26 = sphi 0, %s23
    %s27 = sphi 0, %s26
    %s43 = sphi 0, %s27
    %s47 = sphi 0, %s47
    %s49 = sphi 0, %s47
    %s50 = sphi 0, %s49
    %s64 = sphi 0, %s50
    %s68 = sphi 0, %s68
    %s70 = sphi 0, %s68
    %s71 = sphi 0, %s70
    %s85 = sphi 0, %s71
    %s89 = sphi 0, %s89
    %s91 = sphi 0, %s89
    %s92 = sphi 0, %s91
    %s106 = sphi 0, %s92
    %s110 = sphi 0, %s110
    %s112 = sphi 0, %s110
    %s113 = sphi 0, %s112
    %s127 = sphi 0, %s113
    %s133 = sphi 0, %s135
    %s136 = sphi 0, %s133
    %s137 = sphi 0, %s136
    %s153 = sphi 0, %s137
    %s159 = sphi 0, %s161
    %s162 = sphi 0, %s159
    %s163 = sphi 0, %s162
    %s179 = sphi 0, %s163
  $region4: #{fcn_forward.2} parent=0 // loop_header_branch
    %16 = sbr.rel (%p14) target = $region8
  $region5: #{fcn_forward.2} parent=0 // loop_body
    %s18 = ssub.s32 %s13, 1
    %s19 = ssub.s32 %s13, 2
    %s20 = sadd.s32 %s13, 1
    %s21 = ssub.s32 %s13, %s20
    %p22 = scmp.eq.s32.totalorder %s21, 0
    %s24 = sadd.s32 %s23, 1
    %s25 = scalar_select %p22, %s23, %s24
    %p28 = pneg %p22
    %p29 = scmp.eq.s32.totalorder %s13, 1
    %p30 = por %p28, %p29
    %p31 = scmp.ne.s32.totalorder %s23, %s26
    %p32 = scmp.eq.s32.totalorder %s13, 0
    %p33 = por %p31, %p32
    %p34 = scmp.ne.s32.totalorder %s23, %s26
    %p35 = scmp.eq.s32.totalorder %s18, 1
    %p36 = por %p34, %p35
    %p37 = scmp.ne.s32.totalorder %s26, %s27
    %p38 = scmp.eq.s32.totalorder %s18, 0
    %p39 = por %p37, %p38
    %p40 = scmp.ne.s32.totalorder %s26, %s27
    %p41 = scmp.eq.s32.totalorder %s19, 1
    %p42 = por %p40, %p41
    %p44 = scmp.ne.s32.totalorder %s27, %s43
    %p45 = scmp.eq.s32.totalorder %s19, 0
    %p46 = por %p44, %p45
    %s48 = sadd.s32 %s47, 1
    %p51 = scmp.eq.s32.totalorder %s13, 1
    %p52 = scmp.ne.s32.totalorder %s47, %s49
    %p53 = scmp.eq.s32.totalorder %s13, 0
    %p54 = por %p52, %p53
    %p55 = scmp.ne.s32.totalorder %s47, %s49
    %p56 = scmp.eq.s32.totalorder %s18, 1
    %p57 = por %p55, %p56
    %p58 = scmp.ne.s32.totalorder %s49, %s50
    %p59 = scmp.eq.s32.totalorder %s18, 0
    %p60 = por %p58, %p59
    %p61 = scmp.ne.s32.totalorder %s49, %s50
    %p62 = scmp.eq.s32.totalorder %s19, 1
    %p63 = por %p61, %p62
    %p65 = scmp.ne.s32.totalorder %s50, %s64
    %p66 = scmp.eq.s32.totalorder %s19, 0
    %p67 = por %p65, %p66
    %s69 = sadd.s32 %s68, 1
    %p72 = scmp.eq.s32.totalorder %s13, 1
    %p73 = scmp.ne.s32.totalorder %s68, %s70
    %p74 = scmp.eq.s32.totalorder %s13, 0
    %p75 = por %p73, %p74
    %p76 = scmp.ne.s32.totalorder %s68, %s70
    %p77 = scmp.eq.s32.totalorder %s18, 1
    %p78 = por %p76, %p77
    %p79 = scmp.ne.s32.totalorder %s70, %s71
    %p80 = scmp.eq.s32.totalorder %s18, 0
    %p81 = por %p79, %p80
    %p82 = scmp.ne.s32.totalorder %s70, %s71
    %p83 = scmp.eq.s32.totalorder %s19, 1
    %p84 = por %p82, %p83
    %p86 = scmp.ne.s32.totalorder %s71, %s85
    %p87 = scmp.eq.s32.totalorder %s19, 0
    %p88 = por %p86, %p87
    %s90 = sadd.s32 %s89, 1
    %p93 = scmp.eq.s32.totalorder %s13, 1
    %p94 = scmp.ne.s32.totalorder %s89, %s91
    %p95 = scmp.eq.s32.totalorder %s13, 0
    %p96 = por %p94, %p95
    %p97 = scmp.ne.s32.totalorder %s89, %s91
    %p98 = scmp.eq.s32.totalorder %s18, 1
    %p99 = por %p97, %p98
    %p100 = scmp.ne.s32.totalorder %s91, %s92
    %p101 = scmp.eq.s32.totalorder %s18, 0
    %p102 = por %p100, %p101
    %p103 = scmp.ne.s32.totalorder %s91, %s92
    %p104 = scmp.eq.s32.totalorder %s19, 1
    %p105 = por %p103, %p104
    %p107 = scmp.ne.s32.totalorder %s92, %s106
    %p108 = scmp.eq.s32.totalorder %s19, 0
    %p109 = por %p107, %p108
    %s111 = sadd.s32 %s110, 1
    %p114 = scmp.eq.s32.totalorder %s13, 1
    %p115 = scmp.ne.s32.totalorder %s110, %s112
    %p116 = scmp.eq.s32.totalorder %s13, 0
    %p117 = por %p115, %p116
    %p118 = scmp.ne.s32.totalorder %s110, %s112
    %p119 = scmp.eq.s32.totalorder %s18, 1
    %p120 = por %p118, %p119
    %p121 = scmp.ne.s32.totalorder %s112, %s113
    %p122 = scmp.eq.s32.totalorder %s18, 0
    %p123 = por %p121, %p122
    %p124 = scmp.ne.s32.totalorder %s112, %s113
    %p125 = scmp.eq.s32.totalorder %s19, 1
    %p126 = por %p124, %p125
    %p128 = scmp.ne.s32.totalorder %s113, %s127
    %p129 = scmp.eq.s32.totalorder %s19, 0
    %p130 = por %p128, %p129
    %s131 = ssub.s32 %s13, %s20
    %p132 = scmp.eq.s32.totalorder %s131, 0
    %s134 = sadd.s32 %s133, 1
    %s135 = scalar_select %p132, %s133, %s134
    %p138 = pneg %p132
    %p139 = scmp.eq.s32.totalorder %s13, 1
    %p140 = por %p138, %p139
    %p141 = scmp.ne.s32.totalorder %s133, %s136
    %p142 = scmp.eq.s32.totalorder %s13, 0
    %p143 = por %p141, %p142
    %p144 = scmp.ne.s32.totalorder %s133, %s136
    %p145 = scmp.eq.s32.totalorder %s18, 1
    %p146 = por %p144, %p145
    %p147 = scmp.ne.s32.totalorder %s136, %s137
    %p148 = scmp.eq.s32.totalorder %s18, 0
    %p149 = por %p147, %p148
    %p150 = scmp.ne.s32.totalorder %s136, %s137
    %p151 = scmp.eq.s32.totalorder %s19, 1
    %p152 = por %p150, %p151
    %p154 = scmp.ne.s32.totalorder %s137, %s153
    %p155 = scmp.eq.s32.totalorder %s19, 0
    %p156 = por %p154, %p155
    %s157 = ssub.s32 %s13, %s20
    %p158 = scmp.eq.s32.totalorder %s157, 0
    %s160 = sadd.s32 %s159, 1
    %s161 = scalar_select %p158, %s159, %s160
    %p164 = pneg %p158
    %p165 = scmp.eq.s32.totalorder %s13, 1
    %p166 = por %p164, %p165
    %p167 = scmp.ne.s32.totalorder %s159, %s162
    %p168 = scmp.eq.s32.totalorder %s13, 0
    %p169 = por %p167, %p168
    %p170 = scmp.ne.s32.totalorder %s159, %s162
    %p171 = scmp.eq.s32.totalorder %s18, 1
    %p172 = por %p170, %p171
    %p173 = scmp.ne.s32.totalorder %s162, %s163
    %p174 = scmp.eq.s32.totalorder %s18, 0
    %p175 = por %p173, %p174
    %p176 = scmp.ne.s32.totalorder %s162, %s163
    %p177 = scmp.eq.s32.totalorder %s19, 1
    %p178 = por %p176, %p177
    %p180 = scmp.ne.s32.totalorder %s163, %s179
    %p181 = scmp.eq.s32.totalorder %s19, 0
    %p182 = por %p180, %p181
    %p183 = scmp.le.s32.totalorder 1, %s13
    %p184 = scmp.lt.s32.totalorder %s13, 3
    %p185 = pnand %p183, %p184
    %p186 = pneg %p185
    // Predicated region
    $region9: #{fcn_forward.2} parent=5 // pred_check
      _
    $region10: #{fcn_forward.2} parent=5 // pred_check_branch
      %188 = sbr.rel (%p185) target = $region12
    $region11: #{fcn_forward.2} parent=5 // pred_region
      %s189 = ssub.s32 %s13, 1
      // Predicated region
      $region13: #{fcn_forward.2} parent=11 // pred_check
        %p190 = pneg %p60
      $region14: #{fcn_forward.2} parent=11 // pred_check_branch
        %192 = sbr.rel (%p190) target = $region16
      $region15: #{fcn_forward.2} parent=11 // pred_region
        _
      $region16: #{fcn_forward.2} parent=11 // pred_fallthru
        _
      // Predicated region
      $region17: #{fcn_forward.2} parent=11 // pred_check
        %p193 = pneg %p81
      $region18: #{fcn_forward.2} parent=11 // pred_check_branch
        %195 = sbr.rel (%p193) target = $region20
      $region19: #{fcn_forward.2} parent=11 // pred_region
        _
      $region20: #{fcn_forward.2} parent=11 // pred_fallthru
        _
      // Predicated region
      $region21: #{fcn_forward.2} parent=11 // pred_check
        %p196 = pneg %p102
      $region22: #{fcn_forward.2} parent=11 // pred_check_branch
        %198 = sbr.rel (%p196) target = $region24
      $region23: #{fcn_forward.2} parent=11 // pred_region
        _
      $region24: #{fcn_forward.2} parent=11 // pred_fallthru
        _
      // Predicated region
      $region25: #{fcn_forward.2} parent=11 // pred_check
        %p199 = pneg %p123
      $region26: #{fcn_forward.2} parent=11 // pred_check_branch
        %201 = sbr.rel (%p199) target = $region28
      $region27: #{fcn_forward.2} parent=11 // pred_region
        _
      $region28: #{fcn_forward.2} parent=11 // pred_fallthru
        _
    $region12: #{fcn_forward.2} parent=5 // pred_fallthru
      _
    %p202 = scmp.lt.s32.totalorder %s13, 2
    // Predicated region
    $region29: #{fcn_forward.2} parent=5 // pred_check
      %p203 = pneg %p202
    $region30: #{fcn_forward.2} parent=5 // pred_check_branch
      %205 = sbr.rel (%p203) target = $region32
    $region31: #{fcn_forward.2} parent=5 // pred_region
      // Predicated region
      $region33: #{fcn_forward.2} parent=31 // pred_check
        %p206 = pneg %p33
      $region34: #{fcn_forward.2} parent=31 // pred_check_branch
        %208 = sbr.rel (%p206) target = $region36
      $region35: #{fcn_forward.2} parent=31 // pred_region
        %p209 = scmp.lt.s32.totalorder %s13, 1
        %s210 = scalar_select %p209, %s13, 1
        %s211 = smul.addr %s210, 2
        %s212 = smul.addr %s211, 2
        %s213 = scalar_lea.vmem %s0, %s212
      $region36: #{fcn_forward.2} parent=31 // pred_fallthru
        _
    $region32: #{fcn_forward.2} parent=5 // pred_fallthru
      _
    %p214 = scmp.le.s32.totalorder 1, %s13
    %p215 = scmp.lt.s32.totalorder %s13, 3
    %p216 = pnand %p214, %p215
    %p217 = pneg %p216
    // Predicated region
    $region37: #{fcn_forward.2} parent=5 // pred_check
      _
    $region38: #{fcn_forward.2} parent=5 // pred_check_branch
      %219 = sbr.rel (%p216) target = $region40
    $region39: #{fcn_forward.2} parent=5 // pred_region
      %s220 = ssub.s32 %s13, 1
      %p221 = scmp.lt.s32.totalorder %s18, 1
      %s222 = scalar_select %p221, %s18, 1
      %s223 = smul.addr %s222, 2
      %s224 = smul.addr %s223, 2
      %s225 = scalar_lea.vmem %s0, %s224
      %p226 = pneg %p39
      %p227 = pneg %p36
      %p228 = pneg %p60
      %p229 = pneg %p57
      %p230 = pneg %p81
      %p231 = pneg %p78
      %p232 = pneg %p102
      %p233 = pneg %p99
      %p234 = pneg %p123
      %p235 = pneg %p120
      %p236 = pneg %p149
      %p237 = pneg %p146
      %p238 = scmp.lt.s32.totalorder %s18, 1
      %s239 = scalar_select %p238, %s18, 1
      %s240 = smul.addr %s239, 4
      %s241 = smul.addr %s240, 8
      %s242 = scalar_lea.vmem %s5, %s241
      %p243 = pneg %p175
      %p244 = pneg %p172
      %p245 = scmp.lt.s32.totalorder %s18, 1
      %s246 = scalar_select %p245, %s18, 1
      %s247 = smul.addr %s246, 2
      %s248 = smul.addr %s247, 8
      %s249 = scalar_lea.vmem %s6, %s248
      %p250 = scmp.lt.s32.totalorder %s18, 1
      %s251 = scalar_select %p250, %s18, 1
      %s252 = smul.addr %s251, 2
      %s253 = smul.addr %s252, 2
      %s254 = scalar_lea.vmem %s0, %s253
      %p255 = scmp.lt.s32.totalorder %s18, 1
      %s256 = scalar_select %p255, %s18, 1
      %s257 = smul.addr %s256, 4
      %s258 = smul.addr %s257, 8
      %s259 = scalar_lea.vmem %s5, %s258
      %p260 = scmp.lt.s32.totalorder %s18, 1
      %s261 = scalar_select %p260, %s18, 1
      %s262 = smul.addr %s261, 2
      %s263 = smul.addr %s262, 8
      %s264 = scalar_lea.vmem %s6, %s263
      %v268 = vlaneseq
      %v269 = vand.u32 %v268, 127
      %v270 = vadd.s32 %v269, 128
      %vm271 = vcmp.lt.s32.totalorder %v269, 0
      %v272 = vsub.s32 0, %v269
      %v273 = vsel %vm271, %v272, %v269
      %v274 = vshrl.u32 %v273, 4
      %v275 = vand.u32 %v273, 15
      %v276 = vsub.s32 0, %v275
      %v277 = vsel %vm271, %v276, %v275
      %vm278 = vcmp.lt.s32.totalorder %v270, 0
      %v279 = vsub.s32 0, %v270
      %v280 = vsel %vm278, %v279, %v270
      %v281 = vshrl.u32 %v280, 4
      %v282 = vand.u32 %v280, 15
      %v283 = vsub.s32 0, %v282
      %v284 = vsel %vm278, %v283, %v282
      %vm285 = vcmp.ne.s32.totalorder %v277, 0
      %vm286 = vcmp.ne.s32.totalorder %v284, 0
      %vm287 = vcmp.lt.s32.totalorder %v277, 0
      %vm288 = vcmp.lt.s32.totalorder %v284, 0
      %vm289 = vmand %vm287, %vm285
      %vm290 = vmand %vm288, %vm286
      %v291 = vadd.s32 %v277, 16
      %v292 = vadd.s32 %v284, 16
      %v293 = vsel %vm289, %v291, %v277
      %v294 = vsel %vm290, %v292, %v284
      %v295 = vld [vmem:[%s254] sm:$0xf]
      %v298 = vunpack.c.l.s4 1983009808
      %v299 = vunpack.c.0.s8 %v298
      %v300 = vlaneseq
      %v301 = vshrl.u32 %v300, 7
      %v302 = vsub.s32 %v299, %v301
      %v303 = vrot.slane %v295, %v302
      %v304 = vcombine.high %v303, %v303
      %305 = vrot.lane.b32.xlu0 %v303, 17
      %v306 = vpop.permute.xlu0 %305
      %307 = vrot.lane.b32.xlu0 %v304, 17
      %v308 = vpop.permute.xlu0 %307
      %vm309 = vcmask 138240
      %v310 = vsel %vm309, %v306, %v308
      %vm312 = vcmask 138240
      %v315 = vsel %vm312, 0, %v306
      %v318 = vsel %vm312, %v308, 0
      %vm320 = vcmp.ge.s32.totalorder %v293, 1
      %vm321 = vcmp.ge.s32.totalorder %v294, 1
      %v322 = vsel %vm320, 1, 0
      %v323 = vsel %vm321, 1, 0
      %vm324 = vcmp.eq.s32.totalorder %v322, 1
      %vm325 = vcmp.eq.s32.totalorder %v323, 1
      %vm326 = vmpackc.low %vm325, %vm324
      %v327 = vsel %vm326, 65537, 0
      %v328 = vlaneseq
      %v329 = vshrl.u32 %v328, 7
      %v330 = vsub.s32 0, %v329
      %v331 = vrot.slane %v327, %v330
      %v332 = vlaneseq
      %v333 = vshrl.u32 %v332, 7
      %v334 = vsub.s32 4, %v333
      %v335 = vrot.slane %v327, %v334
      %vm336 = vcmp.ne.s16.totalorder %v331, 0
      %vm337 = vcmp.ne.s16.totalorder %v335, 0
      %v338 = vsel %vm336, %v315, 0
      %v339 = vsel %vm337, %v310, 0
      %v340 = vld [vmem:[%s1] sm:$0xf]
      %v341 = vld [vmem:[%s1 + $0x4] sm:$0xf]
      %v342 = vld [vmem:[%s1 + $0x8] sm:$0xf]
      %v343 = vld [vmem:[%s1 + $0xc] sm:$0xf]
      %v344 = vld [vmem:[%s1 + $0x10] sm:$0xf]
      %v345 = vld [vmem:[%s1 + $0x14] sm:$0xf]
      %v346 = vld [vmem:[%s1 + $0x18] sm:$0xf]
      %v347 = vld [vmem:[%s1 + $0x1c] sm:$0xf]
      %s348 = scalar_lea.vmem %s1, 32
      %v349 = vld [vmem:[%s348] sm:$0xf]
      %v350 = vld [vmem:[%s348 + $0x4] sm:$0xf]
      %v351 = vld [vmem:[%s348 + $0x8] sm:$0xf]
      %v352 = vld [vmem:[%s348 + $0xc] sm:$0xf]
      %v353 = vld [vmem:[%s348 + $0x10] sm:$0xf]
      %v354 = vld [vmem:[%s348 + $0x14] sm:$0xf]
      %v355 = vld [vmem:[%s348 + $0x18] sm:$0xf]
      %v356 = vld [vmem:[%s348 + $0x1c] sm:$0xf]
      %v365 = vunpack.c.l.b16 %v349
      %v366 = vunpack.c.l.b16 %v350
      %v367 = vunpack.c.l.b16 %v351
      %v368 = vunpack.c.l.b16 %v352
      %v369 = vunpack.c.l.b16 %v353
      %v370 = vunpack.c.l.b16 %v354
      %v371 = vunpack.c.l.b16 %v355
      %v372 = vunpack.c.l.b16 %v356
      %v373 = vpack.c.b16 %v366, %v365
      %v374 = vpack.c.b16 %v368, %v367
      %v375 = vpack.c.b16 %v370, %v369
      %v376 = vpack.c.b16 %v372, %v371
      %379 = vrot.lane.b32.xlu0 %v315, 127
      %v380 = vpop.permute.xlu0 %379
      %381 = vrot.lane.b32.xlu0 %v310, 127
      %v382 = vpop.permute.xlu0 %381
      %383 = vrot.lane.b32.xlu0 %v318, 127
      %v384 = vpop.permute.xlu0 %383
      %vm385 = vcmask 1039360
      %v386 = vsel %vm385, %v380, %v382
      %v387 = vsel %vm385, %v382, %v384
      %vm388 = vcmask 23552
      %v390 = vsel %vm388, %v373, 0
      %v393 = vsel %vm388, %v374, 0
      %v396 = vsel %vm388, %v375, 0
      %v399 = vsel %vm388, %v376, 0
      %vm401 = vcmask 1040384
      %vm402 = vcmask 1041408
      %v403 = vsel %vm401, 4294967295, 65535
      %v404 = vsel %vm402, %v403, 0
      %v406 = vand.u32 %v386, %v404
      %v409 = vand.u32 %v387, %v404
      %411 = vmatprep.subr.bf16.mxu0 0
      %412 = vmatpush1.bf16.msra.mxu0 0
      %413 = vmatprep.subr.bf16.mxu0 0
      %414 = vmatpush1.bf16.msra.mxu0 0
      %415 = vmatprep.subr.bf16.mxu0 0
      %416 = vmatpush1.bf16.msra.mxu0 0
      %417 = vmatprep.subr.bf16.mxu0 0
      %418 = vmatpush1.bf16.msra.mxu0 0
      %419 = vmatprep.subr.bf16.mxu0 0
      %420 = vmatpush1.bf16.msra.mxu0 0
      %421 = vmatprep.subr.bf16.mxu0 0
      %422 = vmatpush1.bf16.msra.mxu0 0
      %423 = vmatprep.subr.bf16.mxu0 0
      %424 = vmatpush1.bf16.msra.mxu0 0
      %425 = vmatprep.subr.bf16.mxu0 %v409
      %426 = vmatpush1.bf16.msra.mxu0 %v406
      %427 = vmatprep.subr.bf16.mxu0 0
      %428 = vmatpush2.bf16.msra.mxu0 0
      %429 = vmatprep.subr.bf16.mxu0 0
      %430 = vmatpush2.bf16.msra.mxu0 0
      %431 = vmatprep.subr.bf16.mxu0 0
      %432 = vmatpush2.bf16.msra.mxu0 0
      %433 = vmatprep.subr.bf16.mxu0 0
      %434 = vmatpush2.bf16.msra.mxu0 0
      %435 = vmatprep.subr.bf16.mxu0 0
      %436 = vmatpush2.bf16.msra.mxu0 0
      %437 = vmatprep.subr.bf16.mxu0 0
      %438 = vmatpush2.bf16.msra.mxu0 0
      %439 = vmatprep.subr.bf16.mxu0 0
      %440 = vmatpush2.bf16.msra.mxu0 0
      %441 = vmatprep.subr.bf16.mxu0 0
      %442 = vmatpush2.bf16.msra.mxu0 0
      %443 = vmatprep.mubr.bf16.mxu0 0
      %444 = vmatmul.mubr.bf16.gmra.mxu0 %v390
      %v445 = vpop.f32.mrf.mxu0
      %v446 = vadd.f32 0.0, %v445
      %v447 = vpop.f32.mrf.mxu0
      %v448 = vadd.f32 0.0, %v447
      %v449 = vpop.f32.mrf.mxu0
      %v450 = vadd.f32 0.0, %v449
      %v451 = vpop.f32.mrf.mxu0
      %v452 = vadd.f32 0.0, %v451
      %453 = vmatprep.mubr.bf16.mxu0 0
      %454 = vmatmul.mubr.bf16.gmra.mxu0 %v393
      %v455 = vpop.f32.mrf.mxu0
      %v456 = vadd.f32 0.0, %v455
      %v457 = vpop.f32.mrf.mxu0
      %v458 = vadd.f32 0.0, %v457
      %v459 = vpop.f32.mrf.mxu0
      %v460 = vadd.f32 0.0, %v459
      %v461 = vpop.f32.mrf.mxu0
      %v462 = vadd.f32 0.0, %v461
      %463 = vmatprep.mubr.bf16.mxu0 0
      %464 = vmatmul.mubr.bf16.gmra.mxu0 %v396
      %v465 = vpop.f32.mrf.mxu0
      %v466 = vadd.f32 0.0, %v465
      %v467 = vpop.f32.mrf.mxu0
      %v468 = vadd.f32 0.0, %v467
      %v469 = vpop.f32.mrf.mxu0
      %v470 = vadd.f32 0.0, %v469
      %v471 = vpop.f32.mrf.mxu0
      %v472 = vadd.f32 0.0, %v471
      %473 = vmatprep.mubr.bf16.mxu0 0
      %474 = vmatmul.mubr.bf16.gmra.mxu0 %v399
      %v475 = vpop.f32.mrf.mxu0
      %v476 = vadd.f32 0.0, %v475
      %v477 = vpop.f32.mrf.mxu0
      %v478 = vadd.f32 0.0, %v477
      %v479 = vpop.f32.mrf.mxu0
      %v480 = vadd.f32 0.0, %v479
      %v481 = vpop.f32.mrf.mxu0
      %v482 = vadd.f32 0.0, %v481
      %483 = vdwg.mxu0
      %v492 = vunpack.c.l.b16 %v340
      %v493 = vunpack.c.l.b16 %v341
      %v494 = vunpack.c.l.b16 %v342
      %v495 = vunpack.c.l.b16 %v343
      %v496 = vunpack.c.l.b16 %v344
      %v497 = vunpack.c.l.b16 %v345
      %v498 = vunpack.c.l.b16 %v346
      %v499 = vunpack.c.l.b16 %v347
      %v500 = vpack.c.b16 %v493, %v492
      %v501 = vpack.c.b16 %v495, %v494
      %v502 = vpack.c.b16 %v497, %v496
      %v503 = vpack.c.b16 %v499, %v498
      %v505 = vsel %vm388, %v500, 0
      %v508 = vsel %vm388, %v501, 0
      %v511 = vsel %vm388, %v502, 0
      %v514 = vsel %vm388, %v503, 0
      %v517 = vand.u32 %v338, %v404
      %v520 = vand.u32 %v339, %v404
      %522 = vmatprep.subr.bf16.mxu0 0
      %523 = vmatpush1.bf16.msra.mxu0 0
      %524 = vmatprep.subr.bf16.mxu0 0
      %525 = vmatpush1.bf16.msra.mxu0 0
      %526 = vmatprep.subr.bf16.mxu0 0
      %527 = vmatpush1.bf16.msra.mxu0 0
      %528 = vmatprep.subr.bf16.mxu0 0
      %529 = vmatpush1.bf16.msra.mxu0 0
      %530 = vmatprep.subr.bf16.mxu0 0
      %531 = vmatpush1.bf16.msra.mxu0 0
      %532 = vmatprep.subr.bf16.mxu0 0
      %533 = vmatpush1.bf16.msra.mxu0 0
      %534 = vmatprep.subr.bf16.mxu0 0
      %535 = vmatpush1.bf16.msra.mxu0 0
      %536 = vmatprep.subr.bf16.mxu0 %v520
      %537 = vmatpush1.bf16.msra.mxu0 %v517
      %538 = vmatprep.subr.bf16.mxu0 0
      %539 = vmatpush2.bf16.msra.mxu0 0
      %540 = vmatprep.subr.bf16.mxu0 0
      %541 = vmatpush2.bf16.msra.mxu0 0
      %542 = vmatprep.subr.bf16.mxu0 0
      %543 = vmatpush2.bf16.msra.mxu0 0
      %544 = vmatprep.subr.bf16.mxu0 0
      %545 = vmatpush2.bf16.msra.mxu0 0
      %546 = vmatprep.subr.bf16.mxu0 0
      %547 = vmatpush2.bf16.msra.mxu0 0
      %548 = vmatprep.subr.bf16.mxu0 0
      %549 = vmatpush2.bf16.msra.mxu0 0
      %550 = vmatprep.subr.bf16.mxu0 0
      %551 = vmatpush2.bf16.msra.mxu0 0
      %552 = vmatprep.subr.bf16.mxu0 0
      %553 = vmatpush2.bf16.msra.mxu0 0
      %554 = vmatprep.mubr.bf16.mxu0 0
      %555 = vmatmul.mubr.bf16.gmra.mxu0 %v505
      %v556 = vpop.f32.mrf.mxu0
      %v557 = vadd.f32 %v446, %v556
      %v558 = vpop.f32.mrf.mxu0
      %v559 = vadd.f32 %v448, %v558
      %v560 = vpop.f32.mrf.mxu0
      %v561 = vadd.f32 %v450, %v560
      %v562 = vpop.f32.mrf.mxu0
      %v563 = vadd.f32 %v452, %v562
      %564 = vmatprep.mubr.bf16.mxu0 0
      %565 = vmatmul.mubr.bf16.gmra.mxu0 %v508
      %v566 = vpop.f32.mrf.mxu0
      %v567 = vadd.f32 %v456, %v566
      %v568 = vpop.f32.mrf.mxu0
      %v569 = vadd.f32 %v458, %v568
      %v570 = vpop.f32.mrf.mxu0
      %v571 = vadd.f32 %v460, %v570
      %v572 = vpop.f32.mrf.mxu0
      %v573 = vadd.f32 %v462, %v572
      %574 = vmatprep.mubr.bf16.mxu0 0
      %575 = vmatmul.mubr.bf16.gmra.mxu0 %v511
      %v576 = vpop.f32.mrf.mxu0
      %v577 = vadd.f32 %v466, %v576
      %v578 = vpop.f32.mrf.mxu0
      %v579 = vadd.f32 %v468, %v578
      %v580 = vpop.f32.mrf.mxu0
      %v581 = vadd.f32 %v470, %v580
      %v582 = vpop.f32.mrf.mxu0
      %v583 = vadd.f32 %v472, %v582
      %584 = vmatprep.mubr.bf16.mxu0 0
      %585 = vmatmul.mubr.bf16.gmra.mxu0 %v514
      %v586 = vpop.f32.mrf.mxu0
      %v587 = vadd.f32 %v476, %v586
      %v588 = vpop.f32.mrf.mxu0
      %v589 = vadd.f32 %v478, %v588
      %v590 = vpop.f32.mrf.mxu0
      %v591 = vadd.f32 %v480, %v590
      %v592 = vpop.f32.mrf.mxu0
      %v593 = vadd.f32 %v482, %v592
      %594 = vdwg.mxu0
      %vm595 = vcmp.lt.s32.totalorder %v293, 15
      %vm596 = vcmp.lt.s32.totalorder %v294, 15
      %v597 = vsel %vm595, 1, 0
      %v598 = vsel %vm596, 1, 0
      %vm599 = vcmp.eq.s32.totalorder %v597, 1
      %vm600 = vcmp.eq.s32.totalorder %v598, 1
      %vm601 = vmpackc.low %vm600, %vm599
      %v602 = vsel %vm601, 65537, 0
      %v603 = vlaneseq
      %v604 = vshrl.u32 %v603, 7
      %v605 = vsub.s32 0, %v604
      %v606 = vrot.slane %v602, %v605
      %v607 = vlaneseq
      %v608 = vshrl.u32 %v607, 7
      %v609 = vsub.s32 4, %v608
      %v610 = vrot.slane %v602, %v609
      %611 = vrot.lane.b32.xlu0 %v606, 2
      %v612 = vpop.permute.xlu0 %611
      %613 = vrot.lane.b32.xlu0 %v610, 2
      %v614 = vpop.permute.xlu0 %613
      %vm615 = vcmask 15360
      %v616 = vsel %vm615, %v612, %v614
      %vm617 = vcmp.ne.s16.totalorder %v612, 0
      %vm618 = vcmp.ne.s16.totalorder %v616, 0
      %vm619 = vcmp.ne.s16.totalorder %v614, 0
      %v620 = vsel %vm617, %v315, 0
      %v621 = vsel %vm618, %v310, 0
      %v622 = vsel %vm619, %v318, 0
      %s623 = scalar_lea.vmem %s1, 64
      %v624 = vld [vmem:[%s623] sm:$0xf]
      %v625 = vld [vmem:[%s623 + $0x4] sm:$0xf]
      %v626 = vld [vmem:[%s623 + $0x8] sm:$0xf]
      %v627 = vld [vmem:[%s623 + $0xc] sm:$0xf]
      %v628 = vld [vmem:[%s623 + $0x10] sm:$0xf]
      %v629 = vld [vmem:[%s623 + $0x14] sm:$0xf]
      %v630 = vld [vmem:[%s623 + $0x18] sm:$0xf]
      %v631 = vld [vmem:[%s623 + $0x1c] sm:$0xf]
      %v640 = vunpack.c.l.b16 %v624
      %v641 = vunpack.c.l.b16 %v625
      %v642 = vunpack.c.l.b16 %v626
      %v643 = vunpack.c.l.b16 %v627
      %v644 = vunpack.c.l.b16 %v628
      %v645 = vunpack.c.l.b16 %v629
      %v646 = vunpack.c.l.b16 %v630
      %v647 = vunpack.c.l.b16 %v631
      %v648 = vpack.c.b16 %v641, %v640
      %v649 = vpack.c.b16 %v643, %v642
      %v650 = vpack.c.b16 %v645, %v644
      %v651 = vpack.c.b16 %v647, %v646
      %655 = vrot.lane.b32.xlu0 %v620, 126
      %v656 = vpop.permute.xlu0 %655
      %657 = vrot.lane.b32.xlu0 %v621, 126
      %v658 = vpop.permute.xlu0 %657
      %659 = vrot.lane.b32.xlu0 %v622, 126
      %v660 = vpop.permute.xlu0 %659
      %vm661 = vcmask 1031168
      %v662 = vsel %vm661, %v656, %v658
      %v663 = vsel %vm661, %v658, %v660
      %v665 = vsel %vm388, %v648, 0
      %v668 = vsel %vm388, %v649, 0
      %v671 = vsel %vm388, %v650, 0
      %v674 = vsel %vm388, %v651, 0
      %v677 = vand.u32 %v662, %v404
      %v680 = vand.u32 %v663, %v404
      %682 = vmatprep.subr.bf16.mxu0 0
      %683 = vmatpush1.bf16.msra.mxu0 0
      %684 = vmatprep.subr.bf16.mxu0 0
      %685 = vmatpush1.bf16.msra.mxu0 0
      %686 = vmatprep.subr.bf16.mxu0 0
      %687 = vmatpush1.bf16.msra.mxu0 0
      %688 = vmatprep.subr.bf16.mxu0 0
      %689 = vmatpush1.bf16.msra.mxu0 0
      %690 = vmatprep.subr.bf16.mxu0 0
      %691 = vmatpush1.bf16.msra.mxu0 0
      %692 = vmatprep.subr.bf16.mxu0 0
      %693 = vmatpush1.bf16.msra.mxu0 0
      %694 = vmatprep.subr.bf16.mxu0 0
      %695 = vmatpush1.bf16.msra.mxu0 0
      %696 = vmatprep.subr.bf16.mxu0 %v680
      %697 = vmatpush1.bf16.msra.mxu0 %v677
      %698 = vmatprep.subr.bf16.mxu0 0
      %699 = vmatpush2.bf16.msra.mxu0 0
      %700 = vmatprep.subr.bf16.mxu0 0
      %701 = vmatpush2.bf16.msra.mxu0 0
      %702 = vmatprep.subr.bf16.mxu0 0
      %703 = vmatpush2.bf16.msra.mxu0 0
      %704 = vmatprep.subr.bf16.mxu0 0
      %705 = vmatpush2.bf16.msra.mxu0 0
      %706 = vmatprep.subr.bf16.mxu0 0
      %707 = vmatpush2.bf16.msra.mxu0 0
      %708 = vmatprep.subr.bf16.mxu0 0
      %709 = vmatpush2.bf16.msra.mxu0 0
      %710 = vmatprep.subr.bf16.mxu0 0
      %711 = vmatpush2.bf16.msra.mxu0 0
      %712 = vmatprep.subr.bf16.mxu0 0
      %713 = vmatpush2.bf16.msra.mxu0 0
      %714 = vmatprep.mubr.bf16.mxu0 0
      %715 = vmatmul.mubr.bf16.gmra.mxu0 %v665
      %v716 = vpop.f32.mrf.mxu0
      %v717 = vadd.f32 0.0, %v716
      %v718 = vpop.f32.mrf.mxu0
      %v719 = vadd.f32 0.0, %v718
      %v720 = vpop.f32.mrf.mxu0
      %v721 = vadd.f32 0.0, %v720
      %v722 = vpop.f32.mrf.mxu0
      %v723 = vadd.f32 0.0, %v722
      %724 = vmatprep.mubr.bf16.mxu0 0
      %725 = vmatmul.mubr.bf16.gmra.mxu0 %v668
      %v726 = vpop.f32.mrf.mxu0
      %v727 = vadd.f32 0.0, %v726
      %v728 = vpop.f32.mrf.mxu0
      %v729 = vadd.f32 0.0, %v728
      %v730 = vpop.f32.mrf.mxu0
      %v731 = vadd.f32 0.0, %v730
      %v732 = vpop.f32.mrf.mxu0
      %v733 = vadd.f32 0.0, %v732
      %734 = vmatprep.mubr.bf16.mxu0 0
      %735 = vmatmul.mubr.bf16.gmra.mxu0 %v671
      %v736 = vpop.f32.mrf.mxu0
      %v737 = vadd.f32 0.0, %v736
      %v738 = vpop.f32.mrf.mxu0
      %v739 = vadd.f32 0.0, %v738
      %v740 = vpop.f32.mrf.mxu0
      %v741 = vadd.f32 0.0, %v740
      %v742 = vpop.f32.mrf.mxu0
      %v743 = vadd.f32 0.0, %v742
      %744 = vmatprep.mubr.bf16.mxu0 0
      %745 = vmatmul.mubr.bf16.gmra.mxu0 %v674
      %v746 = vpop.f32.mrf.mxu0
      %v747 = vadd.f32 0.0, %v746
      %v748 = vpop.f32.mrf.mxu0
      %v749 = vadd.f32 0.0, %v748
      %v750 = vpop.f32.mrf.mxu0
      %v751 = vadd.f32 0.0, %v750
      %v752 = vpop.f32.mrf.mxu0
      %v753 = vadd.f32 0.0, %v752
      %754 = vdwg.mxu0
      %v755 = vadd.f32 %v557, %v717
      %v756 = vadd.f32 %v559, %v719
      %v757 = vadd.f32 %v561, %v721
      %v758 = vadd.f32 %v563, %v723
      %v759 = vadd.f32 %v567, %v727
      %v760 = vadd.f32 %v569, %v729
      %v761 = vadd.f32 %v571, %v731
      %v762 = vadd.f32 %v573, %v733
      %v763 = vadd.f32 %v577, %v737
      %v764 = vadd.f32 %v579, %v739
      %v765 = vadd.f32 %v581, %v741
      %v766 = vadd.f32 %v583, %v743
      %v767 = vadd.f32 %v587, %v747
      %v768 = vadd.f32 %v589, %v749
      %v769 = vadd.f32 %v591, %v751
      %v770 = vadd.f32 %v593, %v753
      %771 = vrot.lane.b32.xlu0 %v331, 16
      %v772 = vpop.permute.xlu0 %771
      %773 = vrot.lane.b32.xlu0 %v335, 16
      %v774 = vpop.permute.xlu0 %773
      %vm775 = vcmask 130048
      %v776 = vsel %vm775, %v772, %v774
      %vm777 = vcmp.ne.s16.totalorder %v772, 0
      %vm778 = vcmp.ne.s16.totalorder %v776, 0
      %vm779 = vcmp.ne.s16.totalorder %v774, 0
      %v780 = vsel %vm777, %v315, 0
      %v781 = vsel %vm778, %v310, 0
      %v782 = vsel %vm779, %v318, 0
      %s783 = scalar_lea.vmem %s1, 96
      %v784 = vld [vmem:[%s783] sm:$0xf]
      %v785 = vld [vmem:[%s783 + $0x4] sm:$0xf]
      %v786 = vld [vmem:[%s783 + $0x8] sm:$0xf]
      %v787 = vld [vmem:[%s783 + $0xc] sm:$0xf]
      %v788 = vld [vmem:[%s783 + $0x10] sm:$0xf]
      %v789 = vld [vmem:[%s783 + $0x14] sm:$0xf]
      %v790 = vld [vmem:[%s783 + $0x18] sm:$0xf]
      %v791 = vld [vmem:[%s783 + $0x1c] sm:$0xf]
      %v800 = vunpack.c.l.b16 %v784
      %v801 = vunpack.c.l.b16 %v785
      %v802 = vunpack.c.l.b16 %v786
      %v803 = vunpack.c.l.b16 %v787
      %v804 = vunpack.c.l.b16 %v788
      %v805 = vunpack.c.l.b16 %v789
      %v806 = vunpack.c.l.b16 %v790
      %v807 = vunpack.c.l.b16 %v791
      %v808 = vpack.c.b16 %v801, %v800
      %v809 = vpack.c.b16 %v803, %v802
      %v810 = vpack.c.b16 %v805, %v804
      %v811 = vpack.c.b16 %v807, %v806
      %815 = vrot.lane.b32.xlu0 %v780, 112
      %v816 = vpop.permute.xlu0 %815
      %817 = vrot.lane.b32.xlu0 %v781, 112
      %v818 = vpop.permute.xlu0 %817
      %819 = vrot.lane.b32.xlu0 %v782, 112
      %v820 = vpop.permute.xlu0 %819
      %vm821 = vcmask 916480
      %v822 = vsel %vm821, %v816, %v818
      %v823 = vsel %vm821, %v818, %v820
      %v825 = vsel %vm388, %v808, 0
      %v828 = vsel %vm388, %v809, 0
      %v831 = vsel %vm388, %v810, 0
      %v834 = vsel %vm388, %v811, 0
      %v837 = vand.u32 %v822, %v404
      %v840 = vand.u32 %v823, %v404
      %842 = vmatprep.subr.bf16.mxu0 0
      %843 = vmatpush1.bf16.msra.mxu0 0
      %844 = vmatprep.subr.bf16.mxu0 0
      %845 = vmatpush1.bf16.msra.mxu0 0
      %846 = vmatprep.subr.bf16.mxu0 0
      %847 = vmatpush1.bf16.msra.mxu0 0
      %848 = vmatprep.subr.bf16.mxu0 0
      %849 = vmatpush1.bf16.msra.mxu0 0
      %850 = vmatprep.subr.bf16.mxu0 0
      %851 = vmatpush1.bf16.msra.mxu0 0
      %852 = vmatprep.subr.bf16.mxu0 0
      %853 = vmatpush1.bf16.msra.mxu0 0
      %854 = vmatprep.subr.bf16.mxu0 0
      %855 = vmatpush1.bf16.msra.mxu0 0
      %856 = vmatprep.subr.bf16.mxu0 %v840
      %857 = vmatpush1.bf16.msra.mxu0 %v837
      %858 = vmatprep.subr.bf16.mxu0 0
      %859 = vmatpush2.bf16.msra.mxu0 0
      %860 = vmatprep.subr.bf16.mxu0 0
      %861 = vmatpush2.bf16.msra.mxu0 0
      %862 = vmatprep.subr.bf16.mxu0 0
      %863 = vmatpush2.bf16.msra.mxu0 0
      %864 = vmatprep.subr.bf16.mxu0 0
      %865 = vmatpush2.bf16.msra.mxu0 0
      %866 = vmatprep.subr.bf16.mxu0 0
      %867 = vmatpush2.bf16.msra.mxu0 0
      %868 = vmatprep.subr.bf16.mxu0 0
      %869 = vmatpush2.bf16.msra.mxu0 0
      %870 = vmatprep.subr.bf16.mxu0 0
      %871 = vmatpush2.bf16.msra.mxu0 0
      %872 = vmatprep.subr.bf16.mxu0 0
      %873 = vmatpush2.bf16.msra.mxu0 0
      %874 = vmatprep.mubr.bf16.mxu0 0
      %875 = vmatmul.mubr.bf16.gmra.mxu0 %v825
      %v876 = vpop.f32.mrf.mxu0
      %v877 = vadd.f32 0.0, %v876
      %v878 = vpop.f32.mrf.mxu0
      %v879 = vadd.f32 0.0, %v878
      %v880 = vpop.f32.mrf.mxu0
      %v881 = vadd.f32 0.0, %v880
      %v882 = vpop.f32.mrf.mxu0
      %v883 = vadd.f32 0.0, %v882
      %884 = vmatprep.mubr.bf16.mxu0 0
      %885 = vmatmul.mubr.bf16.gmra.mxu0 %v828
      %v886 = vpop.f32.mrf.mxu0
      %v887 = vadd.f32 0.0, %v886
      %v888 = vpop.f32.mrf.mxu0
      %v889 = vadd.f32 0.0, %v888
      %v890 = vpop.f32.mrf.mxu0
      %v891 = vadd.f32 0.0, %v890
      %v892 = vpop.f32.mrf.mxu0
      %v893 = vadd.f32 0.0, %v892
      %894 = vmatprep.mubr.bf16.mxu0 0
      %895 = vmatmul.mubr.bf16.gmra.mxu0 %v831
      %v896 = vpop.f32.mrf.mxu0
      %v897 = vadd.f32 0.0, %v896
      %v898 = vpop.f32.mrf.mxu0
      %v899 = vadd.f32 0.0, %v898
      %v900 = vpop.f32.mrf.mxu0
      %v901 = vadd.f32 0.0, %v900
      %v902 = vpop.f32.mrf.mxu0
      %v903 = vadd.f32 0.0, %v902
      %904 = vmatprep.mubr.bf16.mxu0 0
      %905 = vmatmul.mubr.bf16.gmra.mxu0 %v834
      %v906 = vpop.f32.mrf.mxu0
      %v907 = vadd.f32 0.0, %v906
      %v908 = vpop.f32.mrf.mxu0
      %v909 = vadd.f32 0.0, %v908
      %v910 = vpop.f32.mrf.mxu0
      %v911 = vadd.f32 0.0, %v910
      %v912 = vpop.f32.mrf.mxu0
      %v913 = vadd.f32 0.0, %v912
      %914 = vdwg.mxu0
      %v915 = vadd.f32 %v755, %v877
      %v916 = vadd.f32 %v756, %v879
      %v917 = vadd.f32 %v757, %v881
      %v918 = vadd.f32 %v758, %v883
      %v919 = vadd.f32 %v759, %v887
      %v920 = vadd.f32 %v760, %v889
      %v921 = vadd.f32 %v761, %v891
      %v922 = vadd.f32 %v762, %v893
      %v923 = vadd.f32 %v763, %v897
      %v924 = vadd.f32 %v764, %v899
      %v925 = vadd.f32 %v765, %v901
      %v926 = vadd.f32 %v766, %v903
      %v927 = vadd.f32 %v767, %v907
      %v928 = vadd.f32 %v768, %v909
      %v929 = vadd.f32 %v769, %v911
      %v930 = vadd.f32 %v770, %v913
      %s931 = scalar_lea.vmem %s1, 128
      %v932 = vld [vmem:[%s931] sm:$0xf]
      %v933 = vld [vmem:[%s931 + $0x4] sm:$0xf]
      %v934 = vld [vmem:[%s931 + $0x8] sm:$0xf]
      %v935 = vld [vmem:[%s931 + $0xc] sm:$0xf]
      %v936 = vld [vmem:[%s931 + $0x10] sm:$0xf]
      %v937 = vld [vmem:[%s931 + $0x14] sm:$0xf]
      %v938 = vld [vmem:[%s931 + $0x18] sm:$0xf]
      %v939 = vld [vmem:[%s931 + $0x1c] sm:$0xf]
      %v948 = vunpack.c.l.b16 %v932
      %v949 = vunpack.c.l.b16 %v933
      %v950 = vunpack.c.l.b16 %v934
      %v951 = vunpack.c.l.b16 %v935
      %v952 = vunpack.c.l.b16 %v936
      %v953 = vunpack.c.l.b16 %v937
      %v954 = vunpack.c.l.b16 %v938
      %v955 = vunpack.c.l.b16 %v939
      %v956 = vpack.c.b16 %v949, %v948
      %v957 = vpack.c.b16 %v951, %v950
      %v958 = vpack.c.b16 %v953, %v952
      %v959 = vpack.c.b16 %v955, %v954
      %v961 = vsel %vm388, %v956, 0
      %v964 = vsel %vm388, %v957, 0
      %v967 = vsel %vm388, %v958, 0
      %v970 = vsel %vm388, %v959, 0
      %v973 = vand.u32 %v303, %v404
      %v976 = vand.u32 %v304, %v404
      %978 = vmatprep.subr.bf16.mxu0 0
      %979 = vmatpush1.bf16.msra.mxu0 0
      %980 = vmatprep.subr.bf16.mxu0 0
      %981 = vmatpush1.bf16.msra.mxu0 0
      %982 = vmatprep.subr.bf16.mxu0 0
      %983 = vmatpush1.bf16.msra.mxu0 0
      %984 = vmatprep.subr.bf16.mxu0 0
      %985 = vmatpush1.bf16.msra.mxu0 0
      %986 = vmatprep.subr.bf16.mxu0 0
      %987 = vmatpush1.bf16.msra.mxu0 0
      %988 = vmatprep.subr.bf16.mxu0 0
      %989 = vmatpush1.bf16.msra.mxu0 0
      %990 = vmatprep.subr.bf16.mxu0 0
      %991 = vmatpush1.bf16.msra.mxu0 0
      %992 = vmatprep.subr.bf16.mxu0 %v976
      %993 = vmatpush1.bf16.msra.mxu0 %v973
      %994 = vmatprep.subr.bf16.mxu0 0
      %995 = vmatpush2.bf16.msra.mxu0 0
      %996 = vmatprep.subr.bf16.mxu0 0
      %997 = vmatpush2.bf16.msra.mxu0 0
      %998 = vmatprep.subr.bf16.mxu0 0
      %999 = vmatpush2.bf16.msra.mxu0 0
      %1000 = vmatprep.subr.bf16.mxu0 0
      %1001 = vmatpush2.bf16.msra.mxu0 0
      %1002 = vmatprep.subr.bf16.mxu0 0
      %1003 = vmatpush2.bf16.msra.mxu0 0
      %1004 = vmatprep.subr.bf16.mxu0 0
      %1005 = vmatpush2.bf16.msra.mxu0 0
      %1006 = vmatprep.subr.bf16.mxu0 0
      %1007 = vmatpush2.bf16.msra.mxu0 0
      %1008 = vmatprep.subr.bf16.mxu0 0
      %1009 = vmatpush2.bf16.msra.mxu0 0
      %1010 = vmatprep.mubr.bf16.mxu0 0
      %1011 = vmatmul.mubr.bf16.gmra.mxu0 %v961
      %v1012 = vpop.f32.mrf.mxu0
      %v1013 = vadd.f32 0.0, %v1012
      %v1014 = vpop.f32.mrf.mxu0
      %v1015 = vadd.f32 0.0, %v1014
      %v1016 = vpop.f32.mrf.mxu0
      %v1017 = vadd.f32 0.0, %v1016
      %v1018 = vpop.f32.mrf.mxu0
      %v1019 = vadd.f32 0.0, %v1018
      %1020 = vmatprep.mubr.bf16.mxu0 0
      %1021 = vmatmul.mubr.bf16.gmra.mxu0 %v964
      %v1022 = vpop.f32.mrf.mxu0
      %v1023 = vadd.f32 0.0, %v1022
      %v1024 = vpop.f32.mrf.mxu0
      %v1025 = vadd.f32 0.0, %v1024
      %v1026 = vpop.f32.mrf.mxu0
      %v1027 = vadd.f32 0.0, %v1026
      %v1028 = vpop.f32.mrf.mxu0
      %v1029 = vadd.f32 0.0, %v1028
      %1030 = vmatprep.mubr.bf16.mxu0 0
      %1031 = vmatmul.mubr.bf16.gmra.mxu0 %v967
      %v1032 = vpop.f32.mrf.mxu0
      %v1033 = vadd.f32 0.0, %v1032
      %v1034 = vpop.f32.mrf.mxu0
      %v1035 = vadd.f32 0.0, %v1034
      %v1036 = vpop.f32.mrf.mxu0
      %v1037 = vadd.f32 0.0, %v1036
      %v1038 = vpop.f32.mrf.mxu0
      %v1039 = vadd.f32 0.0, %v1038
      %1040 = vmatprep.mubr.bf16.mxu0 0
      %1041 = vmatmul.mubr.bf16.gmra.mxu0 %v970
      %v1042 = vpop.f32.mrf.mxu0
      %v1043 = vadd.f32 0.0, %v1042
      %v1044 = vpop.f32.mrf.mxu0
      %v1045 = vadd.f32 0.0, %v1044
      %v1046 = vpop.f32.mrf.mxu0
      %v1047 = vadd.f32 0.0, %v1046
      %v1048 = vpop.f32.mrf.mxu0
      %v1049 = vadd.f32 0.0, %v1048
      %1050 = vdwg.mxu0
      %v1051 = vadd.f32 %v915, %v1013
      %v1052 = vadd.f32 %v916, %v1015
      %v1053 = vadd.f32 %v917, %v1017
      %v1054 = vadd.f32 %v918, %v1019
      %v1055 = vadd.f32 %v919, %v1023
      %v1056 = vadd.f32 %v920, %v1025
      %v1057 = vadd.f32 %v921, %v1027
      %v1058 = vadd.f32 %v922, %v1029
      %v1059 = vadd.f32 %v923, %v1033
      %v1060 = vadd.f32 %v924, %v1035
      %v1061 = vadd.f32 %v925, %v1037
      %v1062 = vadd.f32 %v926, %v1039
      %v1063 = vadd.f32 %v927, %v1043
      %v1064 = vadd.f32 %v928, %v1045
      %v1065 = vadd.f32 %v929, %v1047
      %v1066 = vadd.f32 %v930, %v1049
      %1067 = vrot.lane.b32.xlu0 %v606, 18
      %v1068 = vpop.permute.xlu0 %1067
      %1069 = vrot.lane.b32.xlu0 %v610, 18
      %v1070 = vpop.permute.xlu0 %1069
      %vm1071 = vcmask 146432
      %v1072 = vsel %vm1071, %v1068, %v1070
      %vm1073 = vcmp.ne.s16.totalorder %v1068, 0
      %vm1074 = vcmp.ne.s16.totalorder %v1072, 0
      %vm1075 = vcmp.ne.s16.totalorder %v1070, 0
      %v1076 = vsel %vm1073, %v315, 0
      %v1077 = vsel %vm1074, %v310, 0
      %v1078 = vsel %vm1075, %v318, 0
      %s1079 = scalar_lea.vmem %s1, 160
      %v1080 = vld [vmem:[%s1079] sm:$0xf]
      %v1081 = vld [vmem:[%s1079 + $0x4] sm:$0xf]
      %v1082 = vld [vmem:[%s1079 + $0x8] sm:$0xf]
      %v1083 = vld [vmem:[%s1079 + $0xc] sm:$0xf]
      %v1084 = vld [vmem:[%s1079 + $0x10] sm:$0xf]
      %v1085 = vld [vmem:[%s1079 + $0x14] sm:$0xf]
      %v1086 = vld [vmem:[%s1079 + $0x18] sm:$0xf]
      %v1087 = vld [vmem:[%s1079 + $0x1c] sm:$0xf]
      %v1096 = vunpack.c.l.b16 %v1080
      %v1097 = vunpack.c.l.b16 %v1081
      %v1098 = vunpack.c.l.b16 %v1082
      %v1099 = vunpack.c.l.b16 %v1083
      %v1100 = vunpack.c.l.b16 %v1084
      %v1101 = vunpack.c.l.b16 %v1085
      %v1102 = vunpack.c.l.b16 %v1086
      %v1103 = vunpack.c.l.b16 %v1087
      %v1104 = vpack.c.b16 %v1097, %v1096
      %v1105 = vpack.c.b16 %v1099, %v1098
      %v1106 = vpack.c.b16 %v1101, %v1100
      %v1107 = vpack.c.b16 %v1103, %v1102
      %1111 = vrot.lane.b32.xlu0 %v1076, 110
      %v1112 = vpop.permute.xlu0 %1111
      %1113 = vrot.lane.b32.xlu0 %v1077, 110
      %v1114 = vpop.permute.xlu0 %1113
      %1115 = vrot.lane.b32.xlu0 %v1078, 110
      %v1116 = vpop.permute.xlu0 %1115
      %vm1117 = vcmask 900096
      %v1118 = vsel %vm1117, %v1112, %v1114
      %v1119 = vsel %vm1117, %v1114, %v1116
      %v1121 = vsel %vm388, %v1104, 0
      %v1124 = vsel %vm388, %v1105, 0
      %v1127 = vsel %vm388, %v1106, 0
      %v1130 = vsel %vm388, %v1107, 0
      %v1133 = vand.u32 %v1118, %v404
      %v1136 = vand.u32 %v1119, %v404
      %1138 = vmatprep.subr.bf16.mxu0 0
      %1139 = vmatpush1.bf16.msra.mxu0 0
      %1140 = vmatprep.subr.bf16.mxu0 0
      %1141 = vmatpush1.bf16.msra.mxu0 0
      %1142 = vmatprep.subr.bf16.mxu0 0
      %1143 = vmatpush1.bf16.msra.mxu0 0
      %1144 = vmatprep.subr.bf16.mxu0 0
      %1145 = vmatpush1.bf16.msra.mxu0 0
      %1146 = vmatprep.subr.bf16.mxu0 0
      %1147 = vmatpush1.bf16.msra.mxu0 0
      %1148 = vmatprep.subr.bf16.mxu0 0
      %1149 = vmatpush1.bf16.msra.mxu0 0
      %1150 = vmatprep.subr.bf16.mxu0 0
      %1151 = vmatpush1.bf16.msra.mxu0 0
      %1152 = vmatprep.subr.bf16.mxu0 %v1136
      %1153 = vmatpush1.bf16.msra.mxu0 %v1133
      %1154 = vmatprep.subr.bf16.mxu0 0
      %1155 = vmatpush2.bf16.msra.mxu0 0
      %1156 = vmatprep.subr.bf16.mxu0 0
      %1157 = vmatpush2.bf16.msra.mxu0 0
      %1158 = vmatprep.subr.bf16.mxu0 0
      %1159 = vmatpush2.bf16.msra.mxu0 0
      %1160 = vmatprep.subr.bf16.mxu0 0
      %1161 = vmatpush2.bf16.msra.mxu0 0
      %1162 = vmatprep.subr.bf16.mxu0 0
      %1163 = vmatpush2.bf16.msra.mxu0 0
      %1164 = vmatprep.subr.bf16.mxu0 0
      %1165 = vmatpush2.bf16.msra.mxu0 0
      %1166 = vmatprep.subr.bf16.mxu0 0
      %1167 = vmatpush2.bf16.msra.mxu0 0
      %1168 = vmatprep.subr.bf16.mxu0 0
      %1169 = vmatpush2.bf16.msra.mxu0 0
      %1170 = vmatprep.mubr.bf16.mxu0 0
      %1171 = vmatmul.mubr.bf16.gmra.mxu0 %v1121
      %v1172 = vpop.f32.mrf.mxu0
      %v1173 = vadd.f32 0.0, %v1172
      %v1174 = vpop.f32.mrf.mxu0
      %v1175 = vadd.f32 0.0, %v1174
      %v1176 = vpop.f32.mrf.mxu0
      %v1177 = vadd.f32 0.0, %v1176
      %v1178 = vpop.f32.mrf.mxu0
      %v1179 = vadd.f32 0.0, %v1178
      %1180 = vmatprep.mubr.bf16.mxu0 0
      %1181 = vmatmul.mubr.bf16.gmra.mxu0 %v1124
      %v1182 = vpop.f32.mrf.mxu0
      %v1183 = vadd.f32 0.0, %v1182
      %v1184 = vpop.f32.mrf.mxu0
      %v1185 = vadd.f32 0.0, %v1184
      %v1186 = vpop.f32.mrf.mxu0
      %v1187 = vadd.f32 0.0, %v1186
      %v1188 = vpop.f32.mrf.mxu0
      %v1189 = vadd.f32 0.0, %v1188
      %1190 = vmatprep.mubr.bf16.mxu0 0
      %1191 = vmatmul.mubr.bf16.gmra.mxu0 %v1127
      %v1192 = vpop.f32.mrf.mxu0
      %v1193 = vadd.f32 0.0, %v1192
      %v1194 = vpop.f32.mrf.mxu0
      %v1195 = vadd.f32 0.0, %v1194
      %v1196 = vpop.f32.mrf.mxu0
      %v1197 = vadd.f32 0.0, %v1196
      %v1198 = vpop.f32.mrf.mxu0
      %v1199 = vadd.f32 0.0, %v1198
      %1200 = vmatprep.mubr.bf16.mxu0 0
      %1201 = vmatmul.mubr.bf16.gmra.mxu0 %v1130
      %v1202 = vpop.f32.mrf.mxu0
      %v1203 = vadd.f32 0.0, %v1202
      %v1204 = vpop.f32.mrf.mxu0
      %v1205 = vadd.f32 0.0, %v1204
      %v1206 = vpop.f32.mrf.mxu0
      %v1207 = vadd.f32 0.0, %v1206
      %v1208 = vpop.f32.mrf.mxu0
      %v1209 = vadd.f32 0.0, %v1208
      %1210 = vdwg.mxu0
      %v1211 = vadd.f32 %v1051, %v1173
      %v1212 = vadd.f32 %v1052, %v1175
      %v1213 = vadd.f32 %v1053, %v1177
      %v1214 = vadd.f32 %v1054, %v1179
      %v1215 = vadd.f32 %v1055, %v1183
      %v1216 = vadd.f32 %v1056, %v1185
      %v1217 = vadd.f32 %v1057, %v1187
      %v1218 = vadd.f32 %v1058, %v1189
      %v1219 = vadd.f32 %v1059, %v1193
      %v1220 = vadd.f32 %v1060, %v1195
      %v1221 = vadd.f32 %v1061, %v1197
      %v1222 = vadd.f32 %v1062, %v1199
      %v1223 = vadd.f32 %v1063, %v1203
      %v1224 = vadd.f32 %v1064, %v1205
      %v1225 = vadd.f32 %v1065, %v1207
      %v1226 = vadd.f32 %v1066, %v1209
      %1227 = vrot.lane.b32.xlu0 %v331, 32
      %v1228 = vpop.permute.xlu0 %1227
      %1229 = vrot.lane.b32.xlu0 %v335, 32
      %v1230 = vpop.permute.xlu0 %1229
      %vm1231 = vcmask 261120
      %v1232 = vsel %vm1231, %v1228, %v1230
      %vm1233 = vcmp.ne.s16.totalorder %v1228, 0
      %vm1234 = vcmp.ne.s16.totalorder %v1232, 0
      %vm1235 = vcmp.ne.s16.totalorder %v1230, 0
      %v1236 = vsel %vm1233, %v315, 0
      %v1237 = vsel %vm1234, %v310, 0
      %v1238 = vsel %vm1235, %v318, 0
      %s1239 = scalar_lea.vmem %s1, 192
      %v1240 = vld [vmem:[%s1239] sm:$0xf]
      %v1241 = vld [vmem:[%s1239 + $0x4] sm:$0xf]
      %v1242 = vld [vmem:[%s1239 + $0x8] sm:$0xf]
      %v1243 = vld [vmem:[%s1239 + $0xc] sm:$0xf]
      %v1244 = vld [vmem:[%s1239 + $0x10] sm:$0xf]
      %v1245 = vld [vmem:[%s1239 + $0x14] sm:$0xf]
      %v1246 = vld [vmem:[%s1239 + $0x18] sm:$0xf]
      %v1247 = vld [vmem:[%s1239 + $0x1c] sm:$0xf]
      %v1256 = vunpack.c.l.b16 %v1240
      %v1257 = vunpack.c.l.b16 %v1241
      %v1258 = vunpack.c.l.b16 %v1242
      %v1259 = vunpack.c.l.b16 %v1243
      %v1260 = vunpack.c.l.b16 %v1244
      %v1261 = vunpack.c.l.b16 %v1245
      %v1262 = vunpack.c.l.b16 %v1246
      %v1263 = vunpack.c.l.b16 %v1247
      %v1264 = vpack.c.b16 %v1257, %v1256
      %v1265 = vpack.c.b16 %v1259, %v1258
      %v1266 = vpack.c.b16 %v1261, %v1260
      %v1267 = vpack.c.b16 %v1263, %v1262
      %1271 = vrot.lane.b32.xlu0 %v1236, 96
      %v1272 = vpop.permute.xlu0 %1271
      %1273 = vrot.lane.b32.xlu0 %v1237, 96
      %v1274 = vpop.permute.xlu0 %1273
      %1275 = vrot.lane.b32.xlu0 %v1238, 96
      %v1276 = vpop.permute.xlu0 %1275
      %vm1277 = vcmask 785408
      %v1278 = vsel %vm1277, %v1272, %v1274
      %v1279 = vsel %vm1277, %v1274, %v1276
      %v1281 = vsel %vm388, %v1264, 0
      %v1284 = vsel %vm388, %v1265, 0
      %v1287 = vsel %vm388, %v1266, 0
      %v1290 = vsel %vm388, %v1267, 0
      %v1293 = vand.u32 %v1278, %v404
      %v1296 = vand.u32 %v1279, %v404
      %1298 = vmatprep.subr.bf16.mxu0 0
      %1299 = vmatpush1.bf16.msra.mxu0 0
      %1300 = vmatprep.subr.bf16.mxu0 0
      %1301 = vmatpush1.bf16.msra.mxu0 0
      %1302 = vmatprep.subr.bf16.mxu0 0
      %1303 = vmatpush1.bf16.msra.mxu0 0
      %1304 = vmatprep.subr.bf16.mxu0 0
      %1305 = vmatpush1.bf16.msra.mxu0 0
      %1306 = vmatprep.subr.bf16.mxu0 0
      %1307 = vmatpush1.bf16.msra.mxu0 0
      %1308 = vmatprep.subr.bf16.mxu0 0
      %1309 = vmatpush1.bf16.msra.mxu0 0
      %1310 = vmatprep.subr.bf16.mxu0 0
      %1311 = vmatpush1.bf16.msra.mxu0 0
      %1312 = vmatprep.subr.bf16.mxu0 %v1296
      %1313 = vmatpush1.bf16.msra.mxu0 %v1293
      %1314 = vmatprep.subr.bf16.mxu0 0
      %1315 = vmatpush2.bf16.msra.mxu0 0
      %1316 = vmatprep.subr.bf16.mxu0 0
      %1317 = vmatpush2.bf16.msra.mxu0 0
      %1318 = vmatprep.subr.bf16.mxu0 0
      %1319 = vmatpush2.bf16.msra.mxu0 0
      %1320 = vmatprep.subr.bf16.mxu0 0
      %1321 = vmatpush2.bf16.msra.mxu0 0
      %1322 = vmatprep.subr.bf16.mxu0 0
      %1323 = vmatpush2.bf16.msra.mxu0 0
      %1324 = vmatprep.subr.bf16.mxu0 0
      %1325 = vmatpush2.bf16.msra.mxu0 0
      %1326 = vmatprep.subr.bf16.mxu0 0
      %1327 = vmatpush2.bf16.msra.mxu0 0
      %1328 = vmatprep.subr.bf16.mxu0 0
      %1329 = vmatpush2.bf16.msra.mxu0 0
      %1330 = vmatprep.mubr.bf16.mxu0 0
      %1331 = vmatmul.mubr.bf16.gmra.mxu0 %v1281
      %v1332 = vpop.f32.mrf.mxu0
      %v1333 = vadd.f32 0.0, %v1332
      %v1334 = vpop.f32.mrf.mxu0
      %v1335 = vadd.f32 0.0, %v1334
      %v1336 = vpop.f32.mrf.mxu0
      %v1337 = vadd.f32 0.0, %v1336
      %v1338 = vpop.f32.mrf.mxu0
      %v1339 = vadd.f32 0.0, %v1338
      %1340 = vmatprep.mubr.bf16.mxu0 0
      %1341 = vmatmul.mubr.bf16.gmra.mxu0 %v1284
      %v1342 = vpop.f32.mrf.mxu0
      %v1343 = vadd.f32 0.0, %v1342
      %v1344 = vpop.f32.mrf.mxu0
      %v1345 = vadd.f32 0.0, %v1344
      %v1346 = vpop.f32.mrf.mxu0
      %v1347 = vadd.f32 0.0, %v1346
      %v1348 = vpop.f32.mrf.mxu0
      %v1349 = vadd.f32 0.0, %v1348
      %1350 = vmatprep.mubr.bf16.mxu0 0
      %1351 = vmatmul.mubr.bf16.gmra.mxu0 %v1287
      %v1352 = vpop.f32.mrf.mxu0
      %v1353 = vadd.f32 0.0, %v1352
      %v1354 = vpop.f32.mrf.mxu0
      %v1355 = vadd.f32 0.0, %v1354
      %v1356 = vpop.f32.mrf.mxu0
      %v1357 = vadd.f32 0.0, %v1356
      %v1358 = vpop.f32.mrf.mxu0
      %v1359 = vadd.f32 0.0, %v1358
      %1360 = vmatprep.mubr.bf16.mxu0 0
      %1361 = vmatmul.mubr.bf16.gmra.mxu0 %v1290
      %v1362 = vpop.f32.mrf.mxu0
      %v1363 = vadd.f32 0.0, %v1362
      %v1364 = vpop.f32.mrf.mxu0
      %v1365 = vadd.f32 0.0, %v1364
      %v1366 = vpop.f32.mrf.mxu0
      %v1367 = vadd.f32 0.0, %v1366
      %v1368 = vpop.f32.mrf.mxu0
      %v1369 = vadd.f32 0.0, %v1368
      %1370 = vdwg.mxu0
      %v1371 = vadd.f32 %v1211, %v1333
      %v1372 = vadd.f32 %v1212, %v1335
      %v1373 = vadd.f32 %v1213, %v1337
      %v1374 = vadd.f32 %v1214, %v1339
      %v1375 = vadd.f32 %v1215, %v1343
      %v1376 = vadd.f32 %v1216, %v1345
      %v1377 = vadd.f32 %v1217, %v1347
      %v1378 = vadd.f32 %v1218, %v1349
      %v1379 = vadd.f32 %v1219, %v1353
      %v1380 = vadd.f32 %v1220, %v1355
      %v1381 = vadd.f32 %v1221, %v1357
      %v1382 = vadd.f32 %v1222, %v1359
      %v1383 = vadd.f32 %v1223, %v1363
      %v1384 = vadd.f32 %v1224, %v1365
      %v1385 = vadd.f32 %v1225, %v1367
      %v1386 = vadd.f32 %v1226, %v1369
      %s1387 = scalar_lea.vmem %s1, 224
      %v1388 = vld [vmem:[%s1387] sm:$0xf]
      %v1389 = vld [vmem:[%s1387 + $0x4] sm:$0xf]
      %v1390 = vld [vmem:[%s1387 + $0x8] sm:$0xf]
      %v1391 = vld [vmem:[%s1387 + $0xc] sm:$0xf]
      %v1392 = vld [vmem:[%s1387 + $0x10] sm:$0xf]
      %v1393 = vld [vmem:[%s1387 + $0x14] sm:$0xf]
      %v1394 = vld [vmem:[%s1387 + $0x18] sm:$0xf]
      %v1395 = vld [vmem:[%s1387 + $0x1c] sm:$0xf]
      %v1404 = vunpack.c.l.b16 %v1388
      %v1405 = vunpack.c.l.b16 %v1389
      %v1406 = vunpack.c.l.b16 %v1390
      %v1407 = vunpack.c.l.b16 %v1391
      %v1408 = vunpack.c.l.b16 %v1392
      %v1409 = vunpack.c.l.b16 %v1393
      %v1410 = vunpack.c.l.b16 %v1394
      %v1411 = vunpack.c.l.b16 %v1395
      %v1412 = vpack.c.b16 %v1405, %v1404
      %v1413 = vpack.c.b16 %v1407, %v1406
      %v1414 = vpack.c.b16 %v1409, %v1408
      %v1415 = vpack.c.b16 %v1411, %v1410
      %1416 = vrot.lane.b32.xlu0 %v315, 95
      %v1417 = vpop.permute.xlu0 %1416
      %1418 = vrot.lane.b32.xlu0 %v310, 95
      %v1419 = vpop.permute.xlu0 %1418
      %1420 = vrot.lane.b32.xlu0 %v318, 95
      %v1421 = vpop.permute.xlu0 %1420
      %vm1422 = vcmask 777216
      %v1423 = vsel %vm1422, %v1417, %v1419
      %v1424 = vsel %vm1422, %v1419, %v1421
      %v1426 = vsel %vm388, %v1412, 0
      %v1429 = vsel %vm388, %v1413, 0
      %v1432 = vsel %vm388, %v1414, 0
      %v1435 = vsel %vm388, %v1415, 0
      %v1438 = vand.u32 %v1423, %v404
      %v1441 = vand.u32 %v1424, %v404
      %1443 = vmatprep.subr.bf16.mxu0 0
      %1444 = vmatpush1.bf16.msra.mxu0 0
      %1445 = vmatprep.subr.bf16.mxu0 0
      %1446 = vmatpush1.bf16.msra.mxu0 0
      %1447 = vmatprep.subr.bf16.mxu0 0
      %1448 = vmatpush1.bf16.msra.mxu0 0
      %1449 = vmatprep.subr.bf16.mxu0 0
      %1450 = vmatpush1.bf16.msra.mxu0 0
      %1451 = vmatprep.subr.bf16.mxu0 0
      %1452 = vmatpush1.bf16.msra.mxu0 0
      %1453 = vmatprep.subr.bf16.mxu0 0
      %1454 = vmatpush1.bf16.msra.mxu0 0
      %1455 = vmatprep.subr.bf16.mxu0 0
      %1456 = vmatpush1.bf16.msra.mxu0 0
      %1457 = vmatprep.subr.bf16.mxu0 %v1441
      %1458 = vmatpush1.bf16.msra.mxu0 %v1438
      %1459 = vmatprep.subr.bf16.mxu0 0
      %1460 = vmatpush2.bf16.msra.mxu0 0
      %1461 = vmatprep.subr.bf16.mxu0 0
      %1462 = vmatpush2.bf16.msra.mxu0 0
      %1463 = vmatprep.subr.bf16.mxu0 0
      %1464 = vmatpush2.bf16.msra.mxu0 0
      %1465 = vmatprep.subr.bf16.mxu0 0
      %1466 = vmatpush2.bf16.msra.mxu0 0
      %1467 = vmatprep.subr.bf16.mxu0 0
      %1468 = vmatpush2.bf16.msra.mxu0 0
      %1469 = vmatprep.subr.bf16.mxu0 0
      %1470 = vmatpush2.bf16.msra.mxu0 0
      %1471 = vmatprep.subr.bf16.mxu0 0
      %1472 = vmatpush2.bf16.msra.mxu0 0
      %1473 = vmatprep.subr.bf16.mxu0 0
      %1474 = vmatpush2.bf16.msra.mxu0 0
      %1475 = vmatprep.mubr.bf16.mxu0 0
      %1476 = vmatmul.mubr.bf16.gmra.mxu0 %v1426
      %v1477 = vpop.f32.mrf.mxu0
      %v1478 = vadd.f32 0.0, %v1477
      %v1479 = vpop.f32.mrf.mxu0
      %v1480 = vadd.f32 0.0, %v1479
      %v1481 = vpop.f32.mrf.mxu0
      %v1482 = vadd.f32 0.0, %v1481
      %v1483 = vpop.f32.mrf.mxu0
      %v1484 = vadd.f32 0.0, %v1483
      %1485 = vmatprep.mubr.bf16.mxu0 0
      %1486 = vmatmul.mubr.bf16.gmra.mxu0 %v1429
      %v1487 = vpop.f32.mrf.mxu0
      %v1488 = vadd.f32 0.0, %v1487
      %v1489 = vpop.f32.mrf.mxu0
      %v1490 = vadd.f32 0.0, %v1489
      %v1491 = vpop.f32.mrf.mxu0
      %v1492 = vadd.f32 0.0, %v1491
      %v1493 = vpop.f32.mrf.mxu0
      %v1494 = vadd.f32 0.0, %v1493
      %1495 = vmatprep.mubr.bf16.mxu0 0
      %1496 = vmatmul.mubr.bf16.gmra.mxu0 %v1432
      %v1497 = vpop.f32.mrf.mxu0
      %v1498 = vadd.f32 0.0, %v1497
      %v1499 = vpop.f32.mrf.mxu0
      %v1500 = vadd.f32 0.0, %v1499
      %v1501 = vpop.f32.mrf.mxu0
      %v1502 = vadd.f32 0.0, %v1501
      %v1503 = vpop.f32.mrf.mxu0
      %v1504 = vadd.f32 0.0, %v1503
      %1505 = vmatprep.mubr.bf16.mxu0 0
      %1506 = vmatmul.mubr.bf16.gmra.mxu0 %v1435
      %v1507 = vpop.f32.mrf.mxu0
      %v1508 = vadd.f32 0.0, %v1507
      %v1509 = vpop.f32.mrf.mxu0
      %v1510 = vadd.f32 0.0, %v1509
      %v1511 = vpop.f32.mrf.mxu0
      %v1512 = vadd.f32 0.0, %v1511
      %v1513 = vpop.f32.mrf.mxu0
      %v1514 = vadd.f32 0.0, %v1513
      %1515 = vdwg.mxu0
      %v1516 = vadd.f32 %v1371, %v1478
      %v1517 = vadd.f32 %v1372, %v1480
      %v1518 = vadd.f32 %v1373, %v1482
      %v1519 = vadd.f32 %v1374, %v1484
      %v1520 = vadd.f32 %v1375, %v1488
      %v1521 = vadd.f32 %v1376, %v1490
      %v1522 = vadd.f32 %v1377, %v1492
      %v1523 = vadd.f32 %v1378, %v1494
      %v1524 = vadd.f32 %v1379, %v1498
      %v1525 = vadd.f32 %v1380, %v1500
      %v1526 = vadd.f32 %v1381, %v1502
      %v1527 = vadd.f32 %v1382, %v1504
      %v1528 = vadd.f32 %v1383, %v1508
      %v1529 = vadd.f32 %v1384, %v1510
      %v1530 = vadd.f32 %v1385, %v1512
      %v1531 = vadd.f32 %v1386, %v1514
      %1532 = vrot.lane.b32.xlu0 %v606, 34
      %v1533 = vpop.permute.xlu0 %1532
      %1534 = vrot.lane.b32.xlu0 %v610, 34
      %v1535 = vpop.permute.xlu0 %1534
      %vm1536 = vcmask 277504
      %v1537 = vsel %vm1536, %v1533, %v1535
      %vm1538 = vcmp.ne.s16.totalorder %v1533, 0
      %vm1539 = vcmp.ne.s16.totalorder %v1537, 0
      %vm1540 = vcmp.ne.s16.totalorder %v1535, 0
      %v1541 = vsel %vm1538, %v315, 0
      %v1542 = vsel %vm1539, %v310, 0
      %v1543 = vsel %vm1540, %v318, 0
      %s1544 = scalar_lea.vmem %s1, 256
      %v1545 = vld [vmem:[%s1544] sm:$0xf]
      %v1546 = vld [vmem:[%s1544 + $0x4] sm:$0xf]
      %v1547 = vld [vmem:[%s1544 + $0x8] sm:$0xf]
      %v1548 = vld [vmem:[%s1544 + $0xc] sm:$0xf]
      %v1549 = vld [vmem:[%s1544 + $0x10] sm:$0xf]
      %v1550 = vld [vmem:[%s1544 + $0x14] sm:$0xf]
      %v1551 = vld [vmem:[%s1544 + $0x18] sm:$0xf]
      %v1552 = vld [vmem:[%s1544 + $0x1c] sm:$0xf]
      %v1561 = vunpack.c.l.b16 %v1545
      %v1562 = vunpack.c.l.b16 %v1546
      %v1563 = vunpack.c.l.b16 %v1547
      %v1564 = vunpack.c.l.b16 %v1548
      %v1565 = vunpack.c.l.b16 %v1549
      %v1566 = vunpack.c.l.b16 %v1550
      %v1567 = vunpack.c.l.b16 %v1551
      %v1568 = vunpack.c.l.b16 %v1552
      %v1569 = vpack.c.b16 %v1562, %v1561
      %v1570 = vpack.c.b16 %v1564, %v1563
      %v1571 = vpack.c.b16 %v1566, %v1565
      %v1572 = vpack.c.b16 %v1568, %v1567
      %1576 = vrot.lane.b32.xlu0 %v1541, 94
      %v1577 = vpop.permute.xlu0 %1576
      %1578 = vrot.lane.b32.xlu0 %v1542, 94
      %v1579 = vpop.permute.xlu0 %1578
      %1580 = vrot.lane.b32.xlu0 %v1543, 94
      %v1581 = vpop.permute.xlu0 %1580
      %vm1582 = vcmask 769024
      %v1583 = vsel %vm1582, %v1577, %v1579
      %v1584 = vsel %vm1582, %v1579, %v1581
      %v1586 = vsel %vm388, %v1569, 0
      %v1589 = vsel %vm388, %v1570, 0
      %v1592 = vsel %vm388, %v1571, 0
      %v1595 = vsel %vm388, %v1572, 0
      %v1598 = vand.u32 %v1583, %v404
      %v1601 = vand.u32 %v1584, %v404
      %1603 = vmatprep.subr.bf16.mxu0 0
      %1604 = vmatpush1.bf16.msra.mxu0 0
      %1605 = vmatprep.subr.bf16.mxu0 0
      %1606 = vmatpush1.bf16.msra.mxu0 0
      %1607 = vmatprep.subr.bf16.mxu0 0
      %1608 = vmatpush1.bf16.msra.mxu0 0
      %1609 = vmatprep.subr.bf16.mxu0 0
      %1610 = vmatpush1.bf16.msra.mxu0 0
      %1611 = vmatprep.subr.bf16.mxu0 0
      %1612 = vmatpush1.bf16.msra.mxu0 0
      %1613 = vmatprep.subr.bf16.mxu0 0
      %1614 = vmatpush1.bf16.msra.mxu0 0
      %1615 = vmatprep.subr.bf16.mxu0 0
      %1616 = vmatpush1.bf16.msra.mxu0 0
      %1617 = vmatprep.subr.bf16.mxu0 %v1601
      %1618 = vmatpush1.bf16.msra.mxu0 %v1598
      %1619 = vmatprep.subr.bf16.mxu0 0
      %1620 = vmatpush2.bf16.msra.mxu0 0
      %1621 = vmatprep.subr.bf16.mxu0 0
      %1622 = vmatpush2.bf16.msra.mxu0 0
      %1623 = vmatprep.subr.bf16.mxu0 0
      %1624 = vmatpush2.bf16.msra.mxu0 0
      %1625 = vmatprep.subr.bf16.mxu0 0
      %1626 = vmatpush2.bf16.msra.mxu0 0
      %1627 = vmatprep.subr.bf16.mxu0 0
      %1628 = vmatpush2.bf16.msra.mxu0 0
      %1629 = vmatprep.subr.bf16.mxu0 0
      %1630 = vmatpush2.bf16.msra.mxu0 0
      %1631 = vmatprep.subr.bf16.mxu0 0
      %1632 = vmatpush2.bf16.msra.mxu0 0
      %1633 = vmatprep.subr.bf16.mxu0 0
      %1634 = vmatpush2.bf16.msra.mxu0 0
      %1635 = vmatprep.mubr.bf16.mxu0 0
      %1636 = vmatmul.mubr.bf16.gmra.mxu0 %v1586
      %v1637 = vpop.f32.mrf.mxu0
      %v1638 = vadd.f32 0.0, %v1637
      %v1639 = vpop.f32.mrf.mxu0
      %v1640 = vadd.f32 0.0, %v1639
      %v1641 = vpop.f32.mrf.mxu0
      %v1642 = vadd.f32 0.0, %v1641
      %v1643 = vpop.f32.mrf.mxu0
      %v1644 = vadd.f32 0.0, %v1643
      %1645 = vmatprep.mubr.bf16.mxu0 0
      %1646 = vmatmul.mubr.bf16.gmra.mxu0 %v1589
      %v1647 = vpop.f32.mrf.mxu0
      %v1648 = vadd.f32 0.0, %v1647
      %v1649 = vpop.f32.mrf.mxu0
      %v1650 = vadd.f32 0.0, %v1649
      %v1651 = vpop.f32.mrf.mxu0
      %v1652 = vadd.f32 0.0, %v1651
      %v1653 = vpop.f32.mrf.mxu0
      %v1654 = vadd.f32 0.0, %v1653
      %1655 = vmatprep.mubr.bf16.mxu0 0
      %1656 = vmatmul.mubr.bf16.gmra.mxu0 %v1592
      %v1657 = vpop.f32.mrf.mxu0
      %v1658 = vadd.f32 0.0, %v1657
      %v1659 = vpop.f32.mrf.mxu0
      %v1660 = vadd.f32 0.0, %v1659
      %v1661 = vpop.f32.mrf.mxu0
      %v1662 = vadd.f32 0.0, %v1661
      %v1663 = vpop.f32.mrf.mxu0
      %v1664 = vadd.f32 0.0, %v1663
      %1665 = vmatprep.mubr.bf16.mxu0 0
      %1666 = vmatmul.mubr.bf16.gmra.mxu0 %v1595
      %v1667 = vpop.f32.mrf.mxu0
      %v1668 = vadd.f32 0.0, %v1667
      %v1669 = vpop.f32.mrf.mxu0
      %v1670 = vadd.f32 0.0, %v1669
      %v1671 = vpop.f32.mrf.mxu0
      %v1672 = vadd.f32 0.0, %v1671
      %v1673 = vpop.f32.mrf.mxu0
      %v1674 = vadd.f32 0.0, %v1673
      %1675 = vdwg.mxu0
      %v1676 = vadd.f32 %v1516, %v1638
      %v1677 = vadd.f32 %v1517, %v1640
      %v1678 = vadd.f32 %v1518, %v1642
      %v1679 = vadd.f32 %v1519, %v1644
      %v1680 = vadd.f32 %v1520, %v1648
      %v1681 = vadd.f32 %v1521, %v1650
      %v1682 = vadd.f32 %v1522, %v1652
      %v1683 = vadd.f32 %v1523, %v1654
      %v1684 = vadd.f32 %v1524, %v1658
      %v1685 = vadd.f32 %v1525, %v1660
      %v1686 = vadd.f32 %v1526, %v1662
      %v1687 = vadd.f32 %v1527, %v1664
      %v1688 = vadd.f32 %v1528, %v1668
      %v1689 = vadd.f32 %v1529, %v1670
      %v1690 = vadd.f32 %v1530, %v1672
      %v1691 = vadd.f32 %v1531, %v1674
      %v1692 = vld [vmem:[%s2] sm:$0xff]
      %v1693 = vld [vmem:[%s2 + $0x8] sm:$0xff]
      %v1694 = vld [vmem:[%s2 + $0x10] sm:$0xff]
      %v1695 = vld [vmem:[%s2 + $0x18] sm:$0xff]
      %v1696 = vld [vmem:[%s2 + $0x20] sm:$0xff]
      %v1697 = vld [vmem:[%s2 + $0x28] sm:$0xff]
      %v1698 = vld [vmem:[%s2 + $0x30] sm:$0xff]
      %v1699 = vld [vmem:[%s2 + $0x38] sm:$0xff]
      %1701 = vset.pattern.permute.xlu0 0
      %1702 = vperm.xlu0 %1701, %v1692
      %v1703 = vpop.permute.xlu0 %1702
      %1706 = vset.pattern.permute.xlu0 0
      %1707 = vperm.xlu0 %1706, %v1693
      %v1708 = vpop.permute.xlu0 %1707
      %1711 = vset.pattern.permute.xlu0 0
      %1712 = vperm.xlu0 %1711, %v1694
      %v1713 = vpop.permute.xlu0 %1712
      %1716 = vset.pattern.permute.xlu0 0
      %1717 = vperm.xlu0 %1716, %v1695
      %v1718 = vpop.permute.xlu0 %1717
      %1721 = vset.pattern.permute.xlu0 0
      %1722 = vperm.xlu0 %1721, %v1696
      %v1723 = vpop.permute.xlu0 %1722
      %1726 = vset.pattern.permute.xlu0 0
      %1727 = vperm.xlu0 %1726, %v1697
      %v1728 = vpop.permute.xlu0 %1727
      %1731 = vset.pattern.permute.xlu0 0
      %1732 = vperm.xlu0 %1731, %v1698
      %v1733 = vpop.permute.xlu0 %1732
      %1736 = vset.pattern.permute.xlu0 0
      %1737 = vperm.xlu0 %1736, %v1699
      %v1738 = vpop.permute.xlu0 %1737
      %v1740 = vadd.f32 %v1676, %v1703
      %v1741 = vadd.f32 %v1677, %v1703
      %v1742 = vadd.f32 %v1678, %v1708
      %v1743 = vadd.f32 %v1679, %v1708
      %v1744 = vadd.f32 %v1680, %v1713
      %v1745 = vadd.f32 %v1681, %v1713
      %v1746 = vadd.f32 %v1682, %v1718
      %v1747 = vadd.f32 %v1683, %v1718
      %v1748 = vadd.f32 %v1684, %v1723
      %v1749 = vadd.f32 %v1685, %v1723
      %v1750 = vadd.f32 %v1686, %v1728
      %v1751 = vadd.f32 %v1687, %v1728
      %v1752 = vadd.f32 %v1688, %v1733
      %v1753 = vadd.f32 %v1689, %v1733
      %v1754 = vadd.f32 %v1690, %v1738
      %v1755 = vadd.f32 %v1691, %v1738
      %vm1756 = vcmp.gt.f32.partialorder %v1740, 0.0
      %vm1757 = vcmp.gt.f32.partialorder %v1741, 0.0
      %vm1758 = vcmp.gt.f32.partialorder %v1742, 0.0
      %vm1759 = vcmp.gt.f32.partialorder %v1743, 0.0
      %vm1760 = vcmp.gt.f32.partialorder %v1744, 0.0
      %vm1761 = vcmp.gt.f32.partialorder %v1745, 0.0
      %vm1762 = vcmp.gt.f32.partialorder %v1746, 0.0
      %vm1763 = vcmp.gt.f32.partialorder %v1747, 0.0
      %vm1764 = vcmp.gt.f32.partialorder %v1748, 0.0
      %vm1765 = vcmp.gt.f32.partialorder %v1749, 0.0
      %vm1766 = vcmp.gt.f32.partialorder %v1750, 0.0
      %vm1767 = vcmp.gt.f32.partialorder %v1751, 0.0
      %vm1768 = vcmp.gt.f32.partialorder %v1752, 0.0
      %vm1769 = vcmp.gt.f32.partialorder %v1753, 0.0
      %vm1770 = vcmp.gt.f32.partialorder %v1754, 0.0
      %vm1771 = vcmp.gt.f32.partialorder %v1755, 0.0
      %v1772 = vmul.f32 %v1740, 0.2
      %v1773 = vmul.f32 %v1741, 0.2
      %v1774 = vmul.f32 %v1742, 0.2
      %v1775 = vmul.f32 %v1743, 0.2
      %v1776 = vmul.f32 %v1744, 0.2
      %v1777 = vmul.f32 %v1745, 0.2
      %v1778 = vmul.f32 %v1746, 0.2
      %v1779 = vmul.f32 %v1747, 0.2
      %v1780 = vmul.f32 %v1748, 0.2
      %v1781 = vmul.f32 %v1749, 0.2
      %v1782 = vmul.f32 %v1750, 0.2
      %v1783 = vmul.f32 %v1751, 0.2
      %v1784 = vmul.f32 %v1752, 0.2
      %v1785 = vmul.f32 %v1753, 0.2
      %v1786 = vmul.f32 %v1754, 0.2
      %v1787 = vmul.f32 %v1755, 0.2
      %v1788 = vsel %vm1756, %v1740, %v1772
      %v1789 = vsel %vm1757, %v1741, %v1773
      %v1790 = vsel %vm1758, %v1742, %v1774
      %v1791 = vsel %vm1759, %v1743, %v1775
      %v1792 = vsel %vm1760, %v1744, %v1776
      %v1793 = vsel %vm1761, %v1745, %v1777
      %v1794 = vsel %vm1762, %v1746, %v1778
      %v1795 = vsel %vm1763, %v1747, %v1779
      %v1796 = vsel %vm1764, %v1748, %v1780
      %v1797 = vsel %vm1765, %v1749, %v1781
      %v1798 = vsel %vm1766, %v1750, %v1782
      %v1799 = vsel %vm1767, %v1751, %v1783
      %v1800 = vsel %vm1768, %v1752, %v1784
      %v1801 = vsel %vm1769, %v1753, %v1785
      %v1802 = vsel %vm1770, %v1754, %v1786
      %v1803 = vsel %vm1771, %v1755, %v1787
      %v1804 = vpack.c.bf16 %v1790, %v1788
      %v1805 = vpack.c.bf16 %v1791, %v1789
      %v1806 = vpack.c.bf16 %v1794, %v1792
      %v1807 = vpack.c.bf16 %v1795, %v1793
      %v1808 = vpack.c.bf16 %v1798, %v1796
      %v1809 = vpack.c.bf16 %v1799, %v1797
      %v1810 = vpack.c.bf16 %v1802, %v1800
      %v1811 = vpack.c.bf16 %v1803, %v1801
      %1820 = vrot.lane.b32.xlu0 %v1804, 17
      %v1821 = vpop.permute.xlu0 %1820
      %1822 = vrot.lane.b32.xlu0 %v1805, 17
      %v1823 = vpop.permute.xlu0 %1822
      %1824 = vrot.lane.b32.xlu0 %v1806, 17
      %v1825 = vpop.permute.xlu0 %1824
      %1826 = vrot.lane.b32.xlu0 %v1807, 17
      %v1827 = vpop.permute.xlu0 %1826
      %1828 = vrot.lane.b32.xlu0 %v1808, 17
      %v1829 = vpop.permute.xlu0 %1828
      %1830 = vrot.lane.b32.xlu0 %v1809, 17
      %v1831 = vpop.permute.xlu0 %1830
      %1832 = vrot.lane.b32.xlu0 %v1810, 17
      %v1833 = vpop.permute.xlu0 %1832
      %1834 = vrot.lane.b32.xlu0 %v1811, 17
      %v1835 = vpop.permute.xlu0 %1834
      %v1836 = vsel %vm309, %v1821, %v1823
      %v1837 = vsel %vm309, %v1825, %v1827
      %v1838 = vsel %vm309, %v1829, %v1831
      %v1839 = vsel %vm309, %v1833, %v1835
      %v1845 = vsel %vm312, 0, %v1821
      %v1848 = vsel %vm312, 0, %v1825
      %v1851 = vsel %vm312, 0, %v1829
      %v1854 = vsel %vm312, 0, %v1833
      %v1857 = vsel %vm312, %v1823, 0
      %v1860 = vsel %vm312, %v1827, 0
      %v1863 = vsel %vm312, %v1831, 0
      %v1866 = vsel %vm312, %v1835, 0
      %v1868 = vsel %vm336, %v1845, 0
      %v1869 = vsel %vm337, %v1836, 0
      %v1870 = vsel %vm336, %v1848, 0
      %v1871 = vsel %vm337, %v1837, 0
      %v1872 = vsel %vm336, %v1851, 0
      %v1873 = vsel %vm337, %v1838, 0
      %v1874 = vsel %vm336, %v1854, 0
      %v1875 = vsel %vm337, %v1839, 0
      %v1876 = vld [vmem:[%s3] sm:$0xf]
      %v1877 = vld [vmem:[%s3 + $0x4] sm:$0xf]
      %s1878 = scalar_lea.vmem %s3, 8
      %v1879 = vld [vmem:[%s1878] sm:$0xf]
      %v1880 = vld [vmem:[%s1878 + $0x4] sm:$0xf]
      %v1883 = vunpack.c.l.b16 %v1879
      %v1884 = vunpack.c.l.b16 %v1880
      %v1885 = vpack.c.b16 %v1884, %v1883
      %1894 = vrot.lane.b32.xlu0 %v1845, 127
      %v1895 = vpop.permute.xlu0 %1894
      %1896 = vrot.lane.b32.xlu0 %v1836, 127
      %v1897 = vpop.permute.xlu0 %1896
      %1898 = vrot.lane.b32.xlu0 %v1857, 127
      %v1899 = vpop.permute.xlu0 %1898
      %1900 = vrot.lane.b32.xlu0 %v1848, 127
      %v1901 = vpop.permute.xlu0 %1900
      %1902 = vrot.lane.b32.xlu0 %v1837, 127
      %v1903 = vpop.permute.xlu0 %1902
      %1904 = vrot.lane.b32.xlu0 %v1860, 127
      %v1905 = vpop.permute.xlu0 %1904
      %1906 = vrot.lane.b32.xlu0 %v1851, 127
      %v1907 = vpop.permute.xlu0 %1906
      %1908 = vrot.lane.b32.xlu0 %v1838, 127
      %v1909 = vpop.permute.xlu0 %1908
      %1910 = vrot.lane.b32.xlu0 %v1863, 127
      %v1911 = vpop.permute.xlu0 %1910
      %1912 = vrot.lane.b32.xlu0 %v1854, 127
      %v1913 = vpop.permute.xlu0 %1912
      %1914 = vrot.lane.b32.xlu0 %v1839, 127
      %v1915 = vpop.permute.xlu0 %1914
      %1916 = vrot.lane.b32.xlu0 %v1866, 127
      %v1917 = vpop.permute.xlu0 %1916
      %v1918 = vsel %vm385, %v1895, %v1897
      %v1919 = vsel %vm385, %v1897, %v1899
      %v1920 = vsel %vm385, %v1901, %v1903
      %v1921 = vsel %vm385, %v1903, %v1905
      %v1922 = vsel %vm385, %v1907, %v1909
      %v1923 = vsel %vm385, %v1909, %v1911
      %v1924 = vsel %vm385, %v1913, %v1915
      %v1925 = vsel %vm385, %v1915, %v1917
      %vm1934 = vcmask 523264
      %v1936 = vsel %vm1934, %v1885, 0
      %1938 = vmatprep.subr.bf16.mxu0 0
      %1939 = vmatpush1.bf16.msra.mxu0 0
      %1940 = vmatprep.subr.bf16.mxu0 0
      %1941 = vmatpush1.bf16.msra.mxu0 0
      %1942 = vmatprep.subr.bf16.mxu0 0
      %1943 = vmatpush1.bf16.msra.mxu0 0
      %1944 = vmatprep.subr.bf16.mxu0 0
      %1945 = vmatpush1.bf16.msra.mxu0 0
      %1946 = vmatprep.subr.bf16.mxu0 %v1925
      %1947 = vmatpush1.bf16.msra.mxu0 %v1924
      %1948 = vmatprep.subr.bf16.mxu0 %v1923
      %1949 = vmatpush1.bf16.msra.mxu0 %v1922
      %1950 = vmatprep.subr.bf16.mxu0 %v1921
      %1951 = vmatpush1.bf16.msra.mxu0 %v1920
      %1952 = vmatprep.subr.bf16.mxu0 %v1919
      %1953 = vmatpush1.bf16.msra.mxu0 %v1918
      %1954 = vmatprep.subr.bf16.mxu0 0
      %1955 = vmatpush2.bf16.msra.mxu0 0
      %1956 = vmatprep.subr.bf16.mxu0 0
      %1957 = vmatpush2.bf16.msra.mxu0 0
      %1958 = vmatprep.subr.bf16.mxu0 0
      %1959 = vmatpush2.bf16.msra.mxu0 0
      %1960 = vmatprep.subr.bf16.mxu0 0
      %1961 = vmatpush2.bf16.msra.mxu0 0
      %1962 = vmatprep.subr.bf16.mxu0 0
      %1963 = vmatpush2.bf16.msra.mxu0 0
      %1964 = vmatprep.subr.bf16.mxu0 0
      %1965 = vmatpush2.bf16.msra.mxu0 0
      %1966 = vmatprep.subr.bf16.mxu0 0
      %1967 = vmatpush2.bf16.msra.mxu0 0
      %1968 = vmatprep.subr.bf16.mxu0 0
      %1969 = vmatpush2.bf16.msra.mxu0 0
      %1970 = vmatprep.mubr.bf16.mxu0 0
      %1971 = vmatmul.mubr.bf16.gmra.mxu0 %v1936
      %v1972 = vpop.f32.mrf.mxu0
      %v1973 = vadd.f32 0.0, %v1972
      %v1974 = vpop.f32.mrf.mxu0
      %v1975 = vadd.f32 0.0, %v1974
      %v1976 = vpop.f32.mrf.mxu0
      %v1977 = vadd.f32 0.0, %v1976
      %v1978 = vpop.f32.mrf.mxu0
      %v1979 = vadd.f32 0.0, %v1978
      %1980 = vdwg.mxu0
      %v1983 = vunpack.c.l.b16 %v1876
      %v1984 = vunpack.c.l.b16 %v1877
      %v1985 = vpack.c.b16 %v1984, %v1983
      %v1987 = vsel %vm1934, %v1985, 0
      %1989 = vmatprep.subr.bf16.mxu0 0
      %1990 = vmatpush1.bf16.msra.mxu0 0
      %1991 = vmatprep.subr.bf16.mxu0 0
      %1992 = vmatpush1.bf16.msra.mxu0 0
      %1993 = vmatprep.subr.bf16.mxu0 0
      %1994 = vmatpush1.bf16.msra.mxu0 0
      %1995 = vmatprep.subr.bf16.mxu0 0
      %1996 = vmatpush1.bf16.msra.mxu0 0
      %1997 = vmatprep.subr.bf16.mxu0 %v1875
      %1998 = vmatpush1.bf16.msra.mxu0 %v1874
      %1999 = vmatprep.subr.bf16.mxu0 %v1873
      %2000 = vmatpush1.bf16.msra.mxu0 %v1872
      %2001 = vmatprep.subr.bf16.mxu0 %v1871
      %2002 = vmatpush1.bf16.msra.mxu0 %v1870
      %2003 = vmatprep.subr.bf16.mxu0 %v1869
      %2004 = vmatpush1.bf16.msra.mxu0 %v1868
      %2005 = vmatprep.subr.bf16.mxu0 0
      %2006 = vmatpush2.bf16.msra.mxu0 0
      %2007 = vmatprep.subr.bf16.mxu0 0
      %2008 = vmatpush2.bf16.msra.mxu0 0
      %2009 = vmatprep.subr.bf16.mxu0 0
      %2010 = vmatpush2.bf16.msra.mxu0 0
      %2011 = vmatprep.subr.bf16.mxu0 0
      %2012 = vmatpush2.bf16.msra.mxu0 0
      %2013 = vmatprep.subr.bf16.mxu0 0
      %2014 = vmatpush2.bf16.msra.mxu0 0
      %2015 = vmatprep.subr.bf16.mxu0 0
      %2016 = vmatpush2.bf16.msra.mxu0 0
      %2017 = vmatprep.subr.bf16.mxu0 0
      %2018 = vmatpush2.bf16.msra.mxu0 0
      %2019 = vmatprep.subr.bf16.mxu0 0
      %2020 = vmatpush2.bf16.msra.mxu0 0
      %2021 = vmatprep.mubr.bf16.mxu0 0
      %2022 = vmatmul.mubr.bf16.gmra.mxu0 %v1987
      %v2023 = vpop.f32.mrf.mxu0
      %v2024 = vadd.f32 %v1973, %v2023
      %v2025 = vpop.f32.mrf.mxu0
      %v2026 = vadd.f32 %v1975, %v2025
      %v2027 = vpop.f32.mrf.mxu0
      %v2028 = vadd.f32 %v1977, %v2027
      %v2029 = vpop.f32.mrf.mxu0
      %v2030 = vadd.f32 %v1979, %v2029
      %2031 = vdwg.mxu0
      %v2032 = vsel %vm617, %v1845, 0
      %v2033 = vsel %vm618, %v1836, 0
      %v2034 = vsel %vm619, %v1857, 0
      %v2035 = vsel %vm617, %v1848, 0
      %v2036 = vsel %vm618, %v1837, 0
      %v2037 = vsel %vm619, %v1860, 0
      %v2038 = vsel %vm617, %v1851, 0
      %v2039 = vsel %vm618, %v1838, 0
      %v2040 = vsel %vm619, %v1863, 0
      %v2041 = vsel %vm617, %v1854, 0
      %v2042 = vsel %vm618, %v1839, 0
      %v2043 = vsel %vm619, %v1866, 0
      %s2044 = scalar_lea.vmem %s3, 16
      %v2045 = vld [vmem:[%s2044] sm:$0xf]
      %v2046 = vld [vmem:[%s2044 + $0x4] sm:$0xf]
      %v2049 = vunpack.c.l.b16 %v2045
      %v2050 = vunpack.c.l.b16 %v2046
      %v2051 = vpack.c.b16 %v2050, %v2049
      %2064 = vrot.lane.b32.xlu0 %v2032, 126
      %v2065 = vpop.permute.xlu0 %2064
      %2066 = vrot.lane.b32.xlu0 %v2033, 126
      %v2067 = vpop.permute.xlu0 %2066
      %2068 = vrot.lane.b32.xlu0 %v2034, 126
      %v2069 = vpop.permute.xlu0 %2068
      %2070 = vrot.lane.b32.xlu0 %v2035, 126
      %v2071 = vpop.permute.xlu0 %2070
      %2072 = vrot.lane.b32.xlu0 %v2036, 126
      %v2073 = vpop.permute.xlu0 %2072
      %2074 = vrot.lane.b32.xlu0 %v2037, 126
      %v2075 = vpop.permute.xlu0 %2074
      %2076 = vrot.lane.b32.xlu0 %v2038, 126
      %v2077 = vpop.permute.xlu0 %2076
      %2078 = vrot.lane.b32.xlu0 %v2039, 126
      %v2079 = vpop.permute.xlu0 %2078
      %2080 = vrot.lane.b32.xlu0 %v2040, 126
      %v2081 = vpop.permute.xlu0 %2080
      %2082 = vrot.lane.b32.xlu0 %v2041, 126
      %v2083 = vpop.permute.xlu0 %2082
      %2084 = vrot.lane.b32.xlu0 %v2042, 126
      %v2085 = vpop.permute.xlu0 %2084
      %2086 = vrot.lane.b32.xlu0 %v2043, 126
      %v2087 = vpop.permute.xlu0 %2086
      %v2088 = vsel %vm661, %v2065, %v2067
      %v2089 = vsel %vm661, %v2067, %v2069
      %v2090 = vsel %vm661, %v2071, %v2073
      %v2091 = vsel %vm661, %v2073, %v2075
      %v2092 = vsel %vm661, %v2077, %v2079
      %v2093 = vsel %vm661, %v2079, %v2081
      %v2094 = vsel %vm661, %v2083, %v2085
      %v2095 = vsel %vm661, %v2085, %v2087
      %v2105 = vsel %vm1934, %v2051, 0
      %2107 = vmatprep.subr.bf16.mxu0 0
      %2108 = vmatpush1.bf16.msra.mxu0 0
      %2109 = vmatprep.subr.bf16.mxu0 0
      %2110 = vmatpush1.bf16.msra.mxu0 0
      %2111 = vmatprep.subr.bf16.mxu0 0
      %2112 = vmatpush1.bf16.msra.mxu0 0
      %2113 = vmatprep.subr.bf16.mxu0 0
      %2114 = vmatpush1.bf16.msra.mxu0 0
      %2115 = vmatprep.subr.bf16.mxu0 %v2095
      %2116 = vmatpush1.bf16.msra.mxu0 %v2094
      %2117 = vmatprep.subr.bf16.mxu0 %v2093
      %2118 = vmatpush1.bf16.msra.mxu0 %v2092
      %2119 = vmatprep.subr.bf16.mxu0 %v2091
      %2120 = vmatpush1.bf16.msra.mxu0 %v2090
      %2121 = vmatprep.subr.bf16.mxu0 %v2089
      %2122 = vmatpush1.bf16.msra.mxu0 %v2088
      %2123 = vmatprep.subr.bf16.mxu0 0
      %2124 = vmatpush2.bf16.msra.mxu0 0
      %2125 = vmatprep.subr.bf16.mxu0 0
      %2126 = vmatpush2.bf16.msra.mxu0 0
      %2127 = vmatprep.subr.bf16.mxu0 0
      %2128 = vmatpush2.bf16.msra.mxu0 0
      %2129 = vmatprep.subr.bf16.mxu0 0
      %2130 = vmatpush2.bf16.msra.mxu0 0
      %2131 = vmatprep.subr.bf16.mxu0 0
      %2132 = vmatpush2.bf16.msra.mxu0 0
      %2133 = vmatprep.subr.bf16.mxu0 0
      %2134 = vmatpush2.bf16.msra.mxu0 0
      %2135 = vmatprep.subr.bf16.mxu0 0
      %2136 = vmatpush2.bf16.msra.mxu0 0
      %2137 = vmatprep.subr.bf16.mxu0 0
      %2138 = vmatpush2.bf16.msra.mxu0 0
      %2139 = vmatprep.mubr.bf16.mxu0 0
      %2140 = vmatmul.mubr.bf16.gmra.mxu0 %v2105
      %v2141 = vpop.f32.mrf.mxu0
      %v2142 = vadd.f32 0.0, %v2141
      %v2143 = vpop.f32.mrf.mxu0
      %v2144 = vadd.f32 0.0, %v2143
      %v2145 = vpop.f32.mrf.mxu0
      %v2146 = vadd.f32 0.0, %v2145
      %v2147 = vpop.f32.mrf.mxu0
      %v2148 = vadd.f32 0.0, %v2147
      %2149 = vdwg.mxu0
      %v2150 = vadd.f32 %v2024, %v2142
      %v2151 = vadd.f32 %v2026, %v2144
      %v2152 = vadd.f32 %v2028, %v2146
      %v2153 = vadd.f32 %v2030, %v2148
      %v2154 = vsel %vm777, %v1845, 0
      %v2155 = vsel %vm778, %v1836, 0
      %v2156 = vsel %vm779, %v1857, 0
      %v2157 = vsel %vm777, %v1848, 0
      %v2158 = vsel %vm778, %v1837, 0
      %v2159 = vsel %vm779, %v1860, 0
      %v2160 = vsel %vm777, %v1851, 0
      %v2161 = vsel %vm778, %v1838, 0
      %v2162 = vsel %vm779, %v1863, 0
      %v2163 = vsel %vm777, %v1854, 0
      %v2164 = vsel %vm778, %v1839, 0
      %v2165 = vsel %vm779, %v1866, 0
      %s2166 = scalar_lea.vmem %s3, 24
      %v2167 = vld [vmem:[%s2166] sm:$0xf]
      %v2168 = vld [vmem:[%s2166 + $0x4] sm:$0xf]
      %v2171 = vunpack.c.l.b16 %v2167
      %v2172 = vunpack.c.l.b16 %v2168
      %v2173 = vpack.c.b16 %v2172, %v2171
      %2186 = vrot.lane.b32.xlu0 %v2154, 112
      %v2187 = vpop.permute.xlu0 %2186
      %2188 = vrot.lane.b32.xlu0 %v2155, 112
      %v2189 = vpop.permute.xlu0 %2188
      %2190 = vrot.lane.b32.xlu0 %v2156, 112
      %v2191 = vpop.permute.xlu0 %2190
      %2192 = vrot.lane.b32.xlu0 %v2157, 112
      %v2193 = vpop.permute.xlu0 %2192
      %2194 = vrot.lane.b32.xlu0 %v2158, 112
      %v2195 = vpop.permute.xlu0 %2194
      %2196 = vrot.lane.b32.xlu0 %v2159, 112
      %v2197 = vpop.permute.xlu0 %2196
      %2198 = vrot.lane.b32.xlu0 %v2160, 112
      %v2199 = vpop.permute.xlu0 %2198
      %2200 = vrot.lane.b32.xlu0 %v2161, 112
      %v2201 = vpop.permute.xlu0 %2200
      %2202 = vrot.lane.b32.xlu0 %v2162, 112
      %v2203 = vpop.permute.xlu0 %2202
      %2204 = vrot.lane.b32.xlu0 %v2163, 112
      %v2205 = vpop.permute.xlu0 %2204
      %2206 = vrot.lane.b32.xlu0 %v2164, 112
      %v2207 = vpop.permute.xlu0 %2206
      %2208 = vrot.lane.b32.xlu0 %v2165, 112
      %v2209 = vpop.permute.xlu0 %2208
      %v2210 = vsel %vm821, %v2187, %v2189
      %v2211 = vsel %vm821, %v2189, %v2191
      %v2212 = vsel %vm821, %v2193, %v2195
      %v2213 = vsel %vm821, %v2195, %v2197
      %v2214 = vsel %vm821, %v2199, %v2201
      %v2215 = vsel %vm821, %v2201, %v2203
      %v2216 = vsel %vm821, %v2205, %v2207
      %v2217 = vsel %vm821, %v2207, %v2209
      %v2227 = vsel %vm1934, %v2173, 0
      %2229 = vmatprep.subr.bf16.mxu0 0
      %2230 = vmatpush1.bf16.msra.mxu0 0
      %2231 = vmatprep.subr.bf16.mxu0 0
      %2232 = vmatpush1.bf16.msra.mxu0 0
      %2233 = vmatprep.subr.bf16.mxu0 0
      %2234 = vmatpush1.bf16.msra.mxu0 0
      %2235 = vmatprep.subr.bf16.mxu0 0
      %2236 = vmatpush1.bf16.msra.mxu0 0
      %2237 = vmatprep.subr.bf16.mxu0 %v2217
      %2238 = vmatpush1.bf16.msra.mxu0 %v2216
      %2239 = vmatprep.subr.bf16.mxu0 %v2215
      %2240 = vmatpush1.bf16.msra.mxu0 %v2214
      %2241 = vmatprep.subr.bf16.mxu0 %v2213
      %2242 = vmatpush1.bf16.msra.mxu0 %v2212
      %2243 = vmatprep.subr.bf16.mxu0 %v2211
      %2244 = vmatpush1.bf16.msra.mxu0 %v2210
      %2245 = vmatprep.subr.bf16.mxu0 0
      %2246 = vmatpush2.bf16.msra.mxu0 0
      %2247 = vmatprep.subr.bf16.mxu0 0
      %2248 = vmatpush2.bf16.msra.mxu0 0
      %2249 = vmatprep.subr.bf16.mxu0 0
      %2250 = vmatpush2.bf16.msra.mxu0 0
      %2251 = vmatprep.subr.bf16.mxu0 0
      %2252 = vmatpush2.bf16.msra.mxu0 0
      %2253 = vmatprep.subr.bf16.mxu0 0
      %2254 = vmatpush2.bf16.msra.mxu0 0
      %2255 = vmatprep.subr.bf16.mxu0 0
      %2256 = vmatpush2.bf16.msra.mxu0 0
      %2257 = vmatprep.subr.bf16.mxu0 0
      %2258 = vmatpush2.bf16.msra.mxu0 0
      %2259 = vmatprep.subr.bf16.mxu0 0
      %2260 = vmatpush2.bf16.msra.mxu0 0
      %2261 = vmatprep.mubr.bf16.mxu0 0
      %2262 = vmatmul.mubr.bf16.gmra.mxu0 %v2227
      %v2263 = vpop.f32.mrf.mxu0
      %v2264 = vadd.f32 0.0, %v2263
      %v2265 = vpop.f32.mrf.mxu0
      %v2266 = vadd.f32 0.0, %v2265
      %v2267 = vpop.f32.mrf.mxu0
      %v2268 = vadd.f32 0.0, %v2267
      %v2269 = vpop.f32.mrf.mxu0
      %v2270 = vadd.f32 0.0, %v2269
      %2271 = vdwg.mxu0
      %v2272 = vadd.f32 %v2150, %v2264
      %v2273 = vadd.f32 %v2151, %v2266
      %v2274 = vadd.f32 %v2152, %v2268
      %v2275 = vadd.f32 %v2153, %v2270
      %s2276 = scalar_lea.vmem %s3, 32
      %v2277 = vld [vmem:[%s2276] sm:$0xf]
      %v2278 = vld [vmem:[%s2276 + $0x4] sm:$0xf]
      %v2281 = vunpack.c.l.b16 %v2277
      %v2282 = vunpack.c.l.b16 %v2278
      %v2283 = vpack.c.b16 %v2282, %v2281
      %v2285 = vsel %vm1934, %v2283, 0
      %2287 = vmatprep.subr.bf16.mxu0 0
      %2288 = vmatpush1.bf16.msra.mxu0 0
      %2289 = vmatprep.subr.bf16.mxu0 0
      %2290 = vmatpush1.bf16.msra.mxu0 0
      %2291 = vmatprep.subr.bf16.mxu0 0
      %2292 = vmatpush1.bf16.msra.mxu0 0
      %2293 = vmatprep.subr.bf16.mxu0 0
      %2294 = vmatpush1.bf16.msra.mxu0 0
      %2295 = vmatprep.subr.bf16.mxu0 %v1811
      %2296 = vmatpush1.bf16.msra.mxu0 %v1810
      %2297 = vmatprep.subr.bf16.mxu0 %v1809
      %2298 = vmatpush1.bf16.msra.mxu0 %v1808
      %2299 = vmatprep.subr.bf16.mxu0 %v1807
      %2300 = vmatpush1.bf16.msra.mxu0 %v1806
      %2301 = vmatprep.subr.bf16.mxu0 %v1805
      %2302 = vmatpush1.bf16.msra.mxu0 %v1804
      %2303 = vmatprep.subr.bf16.mxu0 0
      %2304 = vmatpush2.bf16.msra.mxu0 0
      %2305 = vmatprep.subr.bf16.mxu0 0
      %2306 = vmatpush2.bf16.msra.mxu0 0
      %2307 = vmatprep.subr.bf16.mxu0 0
      %2308 = vmatpush2.bf16.msra.mxu0 0
      %2309 = vmatprep.subr.bf16.mxu0 0
      %2310 = vmatpush2.bf16.msra.mxu0 0
      %2311 = vmatprep.subr.bf16.mxu0 0
      %2312 = vmatpush2.bf16.msra.mxu0 0
      %2313 = vmatprep.subr.bf16.mxu0 0
      %2314 = vmatpush2.bf16.msra.mxu0 0
      %2315 = vmatprep.subr.bf16.mxu0 0
      %2316 = vmatpush2.bf16.msra.mxu0 0
      %2317 = vmatprep.subr.bf16.mxu0 0
      %2318 = vmatpush2.bf16.msra.mxu0 0
      %2319 = vmatprep.mubr.bf16.mxu0 0
      %2320 = vmatmul.mubr.bf16.gmra.mxu0 %v2285
      %v2321 = vpop.f32.mrf.mxu0
      %v2322 = vadd.f32 0.0, %v2321
      %v2323 = vpop.f32.mrf.mxu0
      %v2324 = vadd.f32 0.0, %v2323
      %v2325 = vpop.f32.mrf.mxu0
      %v2326 = vadd.f32 0.0, %v2325
      %v2327 = vpop.f32.mrf.mxu0
      %v2328 = vadd.f32 0.0, %v2327
      %2329 = vdwg.mxu0
      %v2330 = vadd.f32 %v2272, %v2322
      %v2331 = vadd.f32 %v2273, %v2324
      %v2332 = vadd.f32 %v2274, %v2326
      %v2333 = vadd.f32 %v2275, %v2328
      %v2334 = vsel %vm1073, %v1845, 0
      %v2335 = vsel %vm1074, %v1836, 0
      %v2336 = vsel %vm1075, %v1857, 0
      %v2337 = vsel %vm1073, %v1848, 0
      %v2338 = vsel %vm1074, %v1837, 0
      %v2339 = vsel %vm1075, %v1860, 0
      %v2340 = vsel %vm1073, %v1851, 0
      %v2341 = vsel %vm1074, %v1838, 0
      %v2342 = vsel %vm1075, %v1863, 0
      %v2343 = vsel %vm1073, %v1854, 0
      %v2344 = vsel %vm1074, %v1839, 0
      %v2345 = vsel %vm1075, %v1866, 0
      %s2346 = scalar_lea.vmem %s3, 40
      %v2347 = vld [vmem:[%s2346] sm:$0xf]
      %v2348 = vld [vmem:[%s2346 + $0x4] sm:$0xf]
      %v2351 = vunpack.c.l.b16 %v2347
      %v2352 = vunpack.c.l.b16 %v2348
      %v2353 = vpack.c.b16 %v2352, %v2351
      %2366 = vrot.lane.b32.xlu0 %v2334, 110
      %v2367 = vpop.permute.xlu0 %2366
      %2368 = vrot.lane.b32.xlu0 %v2335, 110
      %v2369 = vpop.permute.xlu0 %2368
      %2370 = vrot.lane.b32.xlu0 %v2336, 110
      %v2371 = vpop.permute.xlu0 %2370
      %2372 = vrot.lane.b32.xlu0 %v2337, 110
      %v2373 = vpop.permute.xlu0 %2372
      %2374 = vrot.lane.b32.xlu0 %v2338, 110
      %v2375 = vpop.permute.xlu0 %2374
      %2376 = vrot.lane.b32.xlu0 %v2339, 110
      %v2377 = vpop.permute.xlu0 %2376
      %2378 = vrot.lane.b32.xlu0 %v2340, 110
      %v2379 = vpop.permute.xlu0 %2378
      %2380 = vrot.lane.b32.xlu0 %v2341, 110
      %v2381 = vpop.permute.xlu0 %2380
      %2382 = vrot.lane.b32.xlu0 %v2342, 110
      %v2383 = vpop.permute.xlu0 %2382
      %2384 = vrot.lane.b32.xlu0 %v2343, 110
      %v2385 = vpop.permute.xlu0 %2384
      %2386 = vrot.lane.b32.xlu0 %v2344, 110
      %v2387 = vpop.permute.xlu0 %2386
      %2388 = vrot.lane.b32.xlu0 %v2345, 110
      %v2389 = vpop.permute.xlu0 %2388
      %v2390 = vsel %vm1117, %v2367, %v2369
      %v2391 = vsel %vm1117, %v2369, %v2371
      %v2392 = vsel %vm1117, %v2373, %v2375
      %v2393 = vsel %vm1117, %v2375, %v2377
      %v2394 = vsel %vm1117, %v2379, %v2381
      %v2395 = vsel %vm1117, %v2381, %v2383
      %v2396 = vsel %vm1117, %v2385, %v2387
      %v2397 = vsel %vm1117, %v2387, %v2389
      %v2407 = vsel %vm1934, %v2353, 0
      %2409 = vmatprep.subr.bf16.mxu0 0
      %2410 = vmatpush1.bf16.msra.mxu0 0
      %2411 = vmatprep.subr.bf16.mxu0 0
      %2412 = vmatpush1.bf16.msra.mxu0 0
      %2413 = vmatprep.subr.bf16.mxu0 0
      %2414 = vmatpush1.bf16.msra.mxu0 0
      %2415 = vmatprep.subr.bf16.mxu0 0
      %2416 = vmatpush1.bf16.msra.mxu0 0
      %2417 = vmatprep.subr.bf16.mxu0 %v2397
      %2418 = vmatpush1.bf16.msra.mxu0 %v2396
      %2419 = vmatprep.subr.bf16.mxu0 %v2395
      %2420 = vmatpush1.bf16.msra.mxu0 %v2394
      %2421 = vmatprep.subr.bf16.mxu0 %v2393
      %2422 = vmatpush1.bf16.msra.mxu0 %v2392
      %2423 = vmatprep.subr.bf16.mxu0 %v2391
      %2424 = vmatpush1.bf16.msra.mxu0 %v2390
      %2425 = vmatprep.subr.bf16.mxu0 0
      %2426 = vmatpush2.bf16.msra.mxu0 0
      %2427 = vmatprep.subr.bf16.mxu0 0
      %2428 = vmatpush2.bf16.msra.mxu0 0
      %2429 = vmatprep.subr.bf16.mxu0 0
      %2430 = vmatpush2.bf16.msra.mxu0 0
      %2431 = vmatprep.subr.bf16.mxu0 0
      %2432 = vmatpush2.bf16.msra.mxu0 0
      %2433 = vmatprep.subr.bf16.mxu0 0
      %2434 = vmatpush2.bf16.msra.mxu0 0
      %2435 = vmatprep.subr.bf16.mxu0 0
      %2436 = vmatpush2.bf16.msra.mxu0 0
      %2437 = vmatprep.subr.bf16.mxu0 0
      %2438 = vmatpush2.bf16.msra.mxu0 0
      %2439 = vmatprep.subr.bf16.mxu0 0
      %2440 = vmatpush2.bf16.msra.mxu0 0
      %2441 = vmatprep.mubr.bf16.mxu0 0
      %2442 = vmatmul.mubr.bf16.gmra.mxu0 %v2407
      %v2443 = vpop.f32.mrf.mxu0
      %v2444 = vadd.f32 0.0, %v2443
      %v2445 = vpop.f32.mrf.mxu0
      %v2446 = vadd.f32 0.0, %v2445
      %v2447 = vpop.f32.mrf.mxu0
      %v2448 = vadd.f32 0.0, %v2447
      %v2449 = vpop.f32.mrf.mxu0
      %v2450 = vadd.f32 0.0, %v2449
      %2451 = vdwg.mxu0
      %v2452 = vadd.f32 %v2330, %v2444
      %v2453 = vadd.f32 %v2331, %v2446
      %v2454 = vadd.f32 %v2332, %v2448
      %v2455 = vadd.f32 %v2333, %v2450
      %v2456 = vsel %vm1233, %v1845, 0
      %v2457 = vsel %vm1234, %v1836, 0
      %v2458 = vsel %vm1235, %v1857, 0
      %v2459 = vsel %vm1233, %v1848, 0
      %v2460 = vsel %vm1234, %v1837, 0
      %v2461 = vsel %vm1235, %v1860, 0
      %v2462 = vsel %vm1233, %v1851, 0
      %v2463 = vsel %vm1234, %v1838, 0
      %v2464 = vsel %vm1235, %v1863, 0
      %v2465 = vsel %vm1233, %v1854, 0
      %v2466 = vsel %vm1234, %v1839, 0
      %v2467 = vsel %vm1235, %v1866, 0
      %s2468 = scalar_lea.vmem %s3, 48
      %v2469 = vld [vmem:[%s2468] sm:$0xf]
      %v2470 = vld [vmem:[%s2468 + $0x4] sm:$0xf]
      %v2473 = vunpack.c.l.b16 %v2469
      %v2474 = vunpack.c.l.b16 %v2470
      %v2475 = vpack.c.b16 %v2474, %v2473
      %2488 = vrot.lane.b32.xlu0 %v2456, 96
      %v2489 = vpop.permute.xlu0 %2488
      %2490 = vrot.lane.b32.xlu0 %v2457, 96
      %v2491 = vpop.permute.xlu0 %2490
      %2492 = vrot.lane.b32.xlu0 %v2458, 96
      %v2493 = vpop.permute.xlu0 %2492
      %2494 = vrot.lane.b32.xlu0 %v2459, 96
      %v2495 = vpop.permute.xlu0 %2494
      %2496 = vrot.lane.b32.xlu0 %v2460, 96
      %v2497 = vpop.permute.xlu0 %2496
      %2498 = vrot.lane.b32.xlu0 %v2461, 96
      %v2499 = vpop.permute.xlu0 %2498
      %2500 = vrot.lane.b32.xlu0 %v2462, 96
      %v2501 = vpop.permute.xlu0 %2500
      %2502 = vrot.lane.b32.xlu0 %v2463, 96
      %v2503 = vpop.permute.xlu0 %2502
      %2504 = vrot.lane.b32.xlu0 %v2464, 96
      %v2505 = vpop.permute.xlu0 %2504
      %2506 = vrot.lane.b32.xlu0 %v2465, 96
      %v2507 = vpop.permute.xlu0 %2506
      %2508 = vrot.lane.b32.xlu0 %v2466, 96
      %v2509 = vpop.permute.xlu0 %2508
      %2510 = vrot.lane.b32.xlu0 %v2467, 96
      %v2511 = vpop.permute.xlu0 %2510
      %v2512 = vsel %vm1277, %v2489, %v2491
      %v2513 = vsel %vm1277, %v2491, %v2493
      %v2514 = vsel %vm1277, %v2495, %v2497
      %v2515 = vsel %vm1277, %v2497, %v2499
      %v2516 = vsel %vm1277, %v2501, %v2503
      %v2517 = vsel %vm1277, %v2503, %v2505
      %v2518 = vsel %vm1277, %v2507, %v2509
      %v2519 = vsel %vm1277, %v2509, %v2511
      %v2529 = vsel %vm1934, %v2475, 0
      %2531 = vmatprep.subr.bf16.mxu0 0
      %2532 = vmatpush1.bf16.msra.mxu0 0
      %2533 = vmatprep.subr.bf16.mxu0 0
      %2534 = vmatpush1.bf16.msra.mxu0 0
      %2535 = vmatprep.subr.bf16.mxu0 0
      %2536 = vmatpush1.bf16.msra.mxu0 0
      %2537 = vmatprep.subr.bf16.mxu0 0
      %2538 = vmatpush1.bf16.msra.mxu0 0
      %2539 = vmatprep.subr.bf16.mxu0 %v2519
      %2540 = vmatpush1.bf16.msra.mxu0 %v2518
      %2541 = vmatprep.subr.bf16.mxu0 %v2517
      %2542 = vmatpush1.bf16.msra.mxu0 %v2516
      %2543 = vmatprep.subr.bf16.mxu0 %v2515
      %2544 = vmatpush1.bf16.msra.mxu0 %v2514
      %2545 = vmatprep.subr.bf16.mxu0 %v2513
      %2546 = vmatpush1.bf16.msra.mxu0 %v2512
      %2547 = vmatprep.subr.bf16.mxu0 0
      %2548 = vmatpush2.bf16.msra.mxu0 0
      %2549 = vmatprep.subr.bf16.mxu0 0
      %2550 = vmatpush2.bf16.msra.mxu0 0
      %2551 = vmatprep.subr.bf16.mxu0 0
      %2552 = vmatpush2.bf16.msra.mxu0 0
      %2553 = vmatprep.subr.bf16.mxu0 0
      %2554 = vmatpush2.bf16.msra.mxu0 0
      %2555 = vmatprep.subr.bf16.mxu0 0
      %2556 = vmatpush2.bf16.msra.mxu0 0
      %2557 = vmatprep.subr.bf16.mxu0 0
      %2558 = vmatpush2.bf16.msra.mxu0 0
      %2559 = vmatprep.subr.bf16.mxu0 0
      %2560 = vmatpush2.bf16.msra.mxu0 0
      %2561 = vmatprep.subr.bf16.mxu0 0
      %2562 = vmatpush2.bf16.msra.mxu0 0
      %2563 = vmatprep.mubr.bf16.mxu0 0
      %2564 = vmatmul.mubr.bf16.gmra.mxu0 %v2529
      %v2565 = vpop.f32.mrf.mxu0
      %v2566 = vadd.f32 0.0, %v2565
      %v2567 = vpop.f32.mrf.mxu0
      %v2568 = vadd.f32 0.0, %v2567
      %v2569 = vpop.f32.mrf.mxu0
      %v2570 = vadd.f32 0.0, %v2569
      %v2571 = vpop.f32.mrf.mxu0
      %v2572 = vadd.f32 0.0, %v2571
      %2573 = vdwg.mxu0
      %v2574 = vadd.f32 %v2452, %v2566
      %v2575 = vadd.f32 %v2453, %v2568
      %v2576 = vadd.f32 %v2454, %v2570
      %v2577 = vadd.f32 %v2455, %v2572
      %s2578 = scalar_lea.vmem %s3, 56
      %v2579 = vld [vmem:[%s2578] sm:$0xf]
      %v2580 = vld [vmem:[%s2578 + $0x4] sm:$0xf]
      %v2583 = vunpack.c.l.b16 %v2579
      %v2584 = vunpack.c.l.b16 %v2580
      %v2585 = vpack.c.b16 %v2584, %v2583
      %2586 = vrot.lane.b32.xlu0 %v1845, 95
      %v2587 = vpop.permute.xlu0 %2586
      %2588 = vrot.lane.b32.xlu0 %v1836, 95
      %v2589 = vpop.permute.xlu0 %2588
      %2590 = vrot.lane.b32.xlu0 %v1857, 95
      %v2591 = vpop.permute.xlu0 %2590
      %2592 = vrot.lane.b32.xlu0 %v1848, 95
      %v2593 = vpop.permute.xlu0 %2592
      %2594 = vrot.lane.b32.xlu0 %v1837, 95
      %v2595 = vpop.permute.xlu0 %2594
      %2596 = vrot.lane.b32.xlu0 %v1860, 95
      %v2597 = vpop.permute.xlu0 %2596
      %2598 = vrot.lane.b32.xlu0 %v1851, 95
      %v2599 = vpop.permute.xlu0 %2598
      %2600 = vrot.lane.b32.xlu0 %v1838, 95
      %v2601 = vpop.permute.xlu0 %2600
      %2602 = vrot.lane.b32.xlu0 %v1863, 95
      %v2603 = vpop.permute.xlu0 %2602
      %2604 = vrot.lane.b32.xlu0 %v1854, 95
      %v2605 = vpop.permute.xlu0 %2604
      %2606 = vrot.lane.b32.xlu0 %v1839, 95
      %v2607 = vpop.permute.xlu0 %2606
      %2608 = vrot.lane.b32.xlu0 %v1866, 95
      %v2609 = vpop.permute.xlu0 %2608
      %v2610 = vsel %vm1422, %v2587, %v2589
      %v2611 = vsel %vm1422, %v2589, %v2591
      %v2612 = vsel %vm1422, %v2593, %v2595
      %v2613 = vsel %vm1422, %v2595, %v2597
      %v2614 = vsel %vm1422, %v2599, %v2601
      %v2615 = vsel %vm1422, %v2601, %v2603
      %v2616 = vsel %vm1422, %v2605, %v2607
      %v2617 = vsel %vm1422, %v2607, %v2609
      %v2627 = vsel %vm1934, %v2585, 0
      %2629 = vmatprep.subr.bf16.mxu0 0
      %2630 = vmatpush1.bf16.msra.mxu0 0
      %2631 = vmatprep.subr.bf16.mxu0 0
      %2632 = vmatpush1.bf16.msra.mxu0 0
      %2633 = vmatprep.subr.bf16.mxu0 0
      %2634 = vmatpush1.bf16.msra.mxu0 0
      %2635 = vmatprep.subr.bf16.mxu0 0
      %2636 = vmatpush1.bf16.msra.mxu0 0
      %2637 = vmatprep.subr.bf16.mxu0 %v2617
      %2638 = vmatpush1.bf16.msra.mxu0 %v2616
      %2639 = vmatprep.subr.bf16.mxu0 %v2615
      %2640 = vmatpush1.bf16.msra.mxu0 %v2614
      %2641 = vmatprep.subr.bf16.mxu0 %v2613
      %2642 = vmatpush1.bf16.msra.mxu0 %v2612
      %2643 = vmatprep.subr.bf16.mxu0 %v2611
      %2644 = vmatpush1.bf16.msra.mxu0 %v2610
      %2645 = vmatprep.subr.bf16.mxu0 0
      %2646 = vmatpush2.bf16.msra.mxu0 0
      %2647 = vmatprep.subr.bf16.mxu0 0
      %2648 = vmatpush2.bf16.msra.mxu0 0
      %2649 = vmatprep.subr.bf16.mxu0 0
      %2650 = vmatpush2.bf16.msra.mxu0 0
      %2651 = vmatprep.subr.bf16.mxu0 0
      %2652 = vmatpush2.bf16.msra.mxu0 0
      %2653 = vmatprep.subr.bf16.mxu0 0
      %2654 = vmatpush2.bf16.msra.mxu0 0
      %2655 = vmatprep.subr.bf16.mxu0 0
      %2656 = vmatpush2.bf16.msra.mxu0 0
      %2657 = vmatprep.subr.bf16.mxu0 0
      %2658 = vmatpush2.bf16.msra.mxu0 0
      %2659 = vmatprep.subr.bf16.mxu0 0
      %2660 = vmatpush2.bf16.msra.mxu0 0
      %2661 = vmatprep.mubr.bf16.mxu0 0
      %2662 = vmatmul.mubr.bf16.gmra.mxu0 %v2627
      %v2663 = vpop.f32.mrf.mxu0
      %v2664 = vadd.f32 0.0, %v2663
      %v2665 = vpop.f32.mrf.mxu0
      %v2666 = vadd.f32 0.0, %v2665
      %v2667 = vpop.f32.mrf.mxu0
      %v2668 = vadd.f32 0.0, %v2667
      %v2669 = vpop.f32.mrf.mxu0
      %v2670 = vadd.f32 0.0, %v2669
      %2671 = vdwg.mxu0
      %v2672 = vadd.f32 %v2574, %v2664
      %v2673 = vadd.f32 %v2575, %v2666
      %v2674 = vadd.f32 %v2576, %v2668
      %v2675 = vadd.f32 %v2577, %v2670
      %v2676 = vsel %vm1538, %v1845, 0
      %v2677 = vsel %vm1539, %v1836, 0
      %v2678 = vsel %vm1540, %v1857, 0
      %v2679 = vsel %vm1538, %v1848, 0
      %v2680 = vsel %vm1539, %v1837, 0
      %v2681 = vsel %vm1540, %v1860, 0
      %v2682 = vsel %vm1538, %v1851, 0
      %v2683 = vsel %vm1539, %v1838, 0
      %v2684 = vsel %vm1540, %v1863, 0
      %v2685 = vsel %vm1538, %v1854, 0
      %v2686 = vsel %vm1539, %v1839, 0
      %v2687 = vsel %vm1540, %v1866, 0
      %s2688 = scalar_lea.vmem %s3, 64
      %v2689 = vld [vmem:[%s2688] sm:$0xf]
      %v2690 = vld [vmem:[%s2688 + $0x4] sm:$0xf]
      %v2693 = vunpack.c.l.b16 %v2689
      %v2694 = vunpack.c.l.b16 %v2690
      %v2695 = vpack.c.b16 %v2694, %v2693
      %2708 = vrot.lane.b32.xlu0 %v2676, 94
      %v2709 = vpop.permute.xlu0 %2708
      %2710 = vrot.lane.b32.xlu0 %v2677, 94
      %v2711 = vpop.permute.xlu0 %2710
      %2712 = vrot.lane.b32.xlu0 %v2678, 94
      %v2713 = vpop.permute.xlu0 %2712
      %2714 = vrot.lane.b32.xlu0 %v2679, 94
      %v2715 = vpop.permute.xlu0 %2714
      %2716 = vrot.lane.b32.xlu0 %v2680, 94
      %v2717 = vpop.permute.xlu0 %2716
      %2718 = vrot.lane.b32.xlu0 %v2681, 94
      %v2719 = vpop.permute.xlu0 %2718
      %2720 = vrot.lane.b32.xlu0 %v2682, 94
      %v2721 = vpop.permute.xlu0 %2720
      %2722 = vrot.lane.b32.xlu0 %v2683, 94
      %v2723 = vpop.permute.xlu0 %2722
      %2724 = vrot.lane.b32.xlu0 %v2684, 94
      %v2725 = vpop.permute.xlu0 %2724
      %2726 = vrot.lane.b32.xlu0 %v2685, 94
      %v2727 = vpop.permute.xlu0 %2726
      %2728 = vrot.lane.b32.xlu0 %v2686, 94
      %v2729 = vpop.permute.xlu0 %2728
      %2730 = vrot.lane.b32.xlu0 %v2687, 94
      %v2731 = vpop.permute.xlu0 %2730
      %v2732 = vsel %vm1582, %v2709, %v2711
      %v2733 = vsel %vm1582, %v2711, %v2713
      %v2734 = vsel %vm1582, %v2715, %v2717
      %v2735 = vsel %vm1582, %v2717, %v2719
      %v2736 = vsel %vm1582, %v2721, %v2723
      %v2737 = vsel %vm1582, %v2723, %v2725
      %v2738 = vsel %vm1582, %v2727, %v2729
      %v2739 = vsel %vm1582, %v2729, %v2731
      %v2749 = vsel %vm1934, %v2695, 0
      %2751 = vmatprep.subr.bf16.mxu0 0
      %2752 = vmatpush1.bf16.msra.mxu0 0
      %2753 = vmatprep.subr.bf16.mxu0 0
      %2754 = vmatpush1.bf16.msra.mxu0 0
      %2755 = vmatprep.subr.bf16.mxu0 0
      %2756 = vmatpush1.bf16.msra.mxu0 0
      %2757 = vmatprep.subr.bf16.mxu0 0
      %2758 = vmatpush1.bf16.msra.mxu0 0
      %2759 = vmatprep.subr.bf16.mxu0 %v2739
      %2760 = vmatpush1.bf16.msra.mxu0 %v2738
      %2761 = vmatprep.subr.bf16.mxu0 %v2737
      %2762 = vmatpush1.bf16.msra.mxu0 %v2736
      %2763 = vmatprep.subr.bf16.mxu0 %v2735
      %2764 = vmatpush1.bf16.msra.mxu0 %v2734
      %2765 = vmatprep.subr.bf16.mxu0 %v2733
      %2766 = vmatpush1.bf16.msra.mxu0 %v2732
      %2767 = vmatprep.subr.bf16.mxu0 0
      %2768 = vmatpush2.bf16.msra.mxu0 0
      %2769 = vmatprep.subr.bf16.mxu0 0
      %2770 = vmatpush2.bf16.msra.mxu0 0
      %2771 = vmatprep.subr.bf16.mxu0 0
      %2772 = vmatpush2.bf16.msra.mxu0 0
      %2773 = vmatprep.subr.bf16.mxu0 0
      %2774 = vmatpush2.bf16.msra.mxu0 0
      %2775 = vmatprep.subr.bf16.mxu0 0
      %2776 = vmatpush2.bf16.msra.mxu0 0
      %2777 = vmatprep.subr.bf16.mxu0 0
      %2778 = vmatpush2.bf16.msra.mxu0 0
      %2779 = vmatprep.subr.bf16.mxu0 0
      %2780 = vmatpush2.bf16.msra.mxu0 0
      %2781 = vmatprep.subr.bf16.mxu0 0
      %2782 = vmatpush2.bf16.msra.mxu0 0
      %2783 = vmatprep.mubr.bf16.mxu0 0
      %2784 = vmatmul.mubr.bf16.gmra.mxu0 %v2749
      %v2785 = vpop.f32.mrf.mxu0
      %v2786 = vadd.f32 0.0, %v2785
      %v2787 = vpop.f32.mrf.mxu0
      %v2788 = vadd.f32 0.0, %v2787
      %v2789 = vpop.f32.mrf.mxu0
      %v2790 = vadd.f32 0.0, %v2789
      %v2791 = vpop.f32.mrf.mxu0
      %v2792 = vadd.f32 0.0, %v2791
      %2793 = vdwg.mxu0
      %v2794 = vadd.f32 %v2672, %v2786
      %v2795 = vadd.f32 %v2673, %v2788
      %v2796 = vadd.f32 %v2674, %v2790
      %v2797 = vadd.f32 %v2675, %v2792
      %v2798 = vld [vmem:[%s4] sm:$0xff]
      %v2799 = vld [vmem:[%s4 + $0x8] sm:$0xff]
      %2801 = vset.pattern.permute.xlu0 0
      %2802 = vperm.xlu0 %2801, %v2798
      %v2803 = vpop.permute.xlu0 %2802
      %2806 = vset.pattern.permute.xlu0 0
      %2807 = vperm.xlu0 %2806, %v2799
      %v2808 = vpop.permute.xlu0 %2807
      %v2810 = vadd.f32 %v2794, %v2803
      %v2811 = vadd.f32 %v2795, %v2803
      %v2812 = vadd.f32 %v2796, %v2808
      %v2813 = vadd.f32 %v2797, %v2808
      %2814 = vst [vmem:[%s259] sm:$0xff] %v2810
      %2815 = vst [vmem:[%s259 + $0x8] sm:$0xff] %v2811
      %2816 = vst [vmem:[%s259 + $0x10] sm:$0xff] %v2812
      %2817 = vst [vmem:[%s259 + $0x18] sm:$0xff] %v2813
      %v2818 = vadd.f32 %v2810, %v2811
      %2819 = vadd.xlane.f32.xlu0 %v2818
      %v2820 = vpop.xlane.xlu0 %2819
      %v2821 = vadd.f32 %v2812, %v2813
      %2822 = vadd.xlane.f32.xlu0 %v2821
      %v2823 = vpop.xlane.xlu0 %2822
      %v2824 = vadd.f32 %v2820, 0.0
      %v2825 = vadd.f32 %v2823, 0.0
      %v2826 = vmul.f32 %v2810, %v2810
      %v2827 = vmul.f32 %v2811, %v2811
      %v2828 = vmul.f32 %v2812, %v2812
      %v2829 = vmul.f32 %v2813, %v2813
      %v2830 = vadd.f32 %v2826, %v2827
      %2831 = vadd.xlane.f32.xlu0 %v2830
      %v2832 = vpop.xlane.xlu0 %2831
      %v2833 = vadd.f32 %v2828, %v2829
      %2834 = vadd.xlane.f32.xlu0 %v2833
      %v2835 = vpop.xlane.xlu0 %2834
      %v2836 = vadd.f32 %v2832, 0.0
      %v2837 = vadd.f32 %v2835, 0.0
      %vm2838 = vcmask 7168
      %2839 = vst.msk [vmem:[%s264] sm:$0xff] %vm2838, %v2824
      %2840 = vst.msk [vmem:[%s264 + $0x8] sm:$0xff] %vm2838, %v2825
      %vm2841 = vcmask 15368
      %2842 = vst.msk [vmem:[%s264] sm:$0xff] %vm2841, %v2836
      %2843 = vst.msk [vmem:[%s264 + $0x8] sm:$0xff] %vm2841, %v2837
      %p2844 = scmp.lt.s32.totalorder %s18, 1
      %s2845 = scalar_select %p2844, %s18, 1
      %s2846 = smul.addr %s2845, 4
      %s2847 = smul.addr %s2846, 8
      %s2848 = scalar_lea.vmem %s5, %s2847
      %p2849 = scmp.lt.s32.totalorder %s18, 1
      %s2850 = scalar_select %p2849, %s18, 1
      %s2851 = smul.addr %s2850, 2
      %s2852 = smul.addr %s2851, 8
      %s2853 = scalar_lea.vmem %s6, %s2852
      // Predicated region
      $region41: #{fcn_forward.2} parent=39 // pred_check
        %p2854 = pneg %p146
      $region42: #{fcn_forward.2} parent=39 // pred_check_branch
        %2856 = sbr.rel (%p2854) target = $region44
      $region43: #{fcn_forward.2} parent=39 // pred_region
        _
      $region44: #{fcn_forward.2} parent=39 // pred_fallthru
        _
      // Predicated region
      $region45: #{fcn_forward.2} parent=39 // pred_check
        %p2857 = pneg %p172
      $region46: #{fcn_forward.2} parent=39 // pred_check_branch
        %2859 = sbr.rel (%p2857) target = $region48
      $region47: #{fcn_forward.2} parent=39 // pred_region
        _
      $region48: #{fcn_forward.2} parent=39 // pred_fallthru
        _
    $region40: #{fcn_forward.2} parent=5 // pred_fallthru
      _
    %p2860 = scmp.le.s32.totalorder 2, %s13
    // Predicated region
    $region49: #{fcn_forward.2} parent=5 // pred_check
      %p2861 = pneg %p2860
    $region50: #{fcn_forward.2} parent=5 // pred_check_branch
      %2863 = sbr.rel (%p2861) target = $region52
    $region51: #{fcn_forward.2} parent=5 // pred_region
      %s2864 = ssub.s32 %s13, 2
      // Predicated region
      $region53: #{fcn_forward.2} parent=51 // pred_check
        %p2865 = pneg %p152
      $region54: #{fcn_forward.2} parent=51 // pred_check_branch
        %2867 = sbr.rel (%p2865) target = $region56
      $region55: #{fcn_forward.2} parent=51 // pred_region
        %p2868 = scmp.lt.s32.totalorder %s19, 1
        %s2869 = scalar_select %p2868, %s19, 1
        %s2870 = smul.addr %s2869, 4
        %s2871 = smul.addr %s2870, 8
        %s2872 = scalar_lea.vmem %s5, %s2871
      $region56: #{fcn_forward.2} parent=51 // pred_fallthru
        _
      // Predicated region
      $region57: #{fcn_forward.2} parent=51 // pred_check
        %p2873 = pneg %p178
      $region58: #{fcn_forward.2} parent=51 // pred_check_branch
        %2875 = sbr.rel (%p2873) target = $region60
      $region59: #{fcn_forward.2} parent=51 // pred_region
        %p2876 = scmp.lt.s32.totalorder %s19, 1
        %s2877 = scalar_select %p2876, %s19, 1
        %s2878 = smul.addr %s2877, 2
        %s2879 = smul.addr %s2878, 8
        %s2880 = scalar_lea.vmem %s6, %s2879
      $region60: #{fcn_forward.2} parent=51 // pred_fallthru
        _
    $region52: #{fcn_forward.2} parent=5 // pred_fallthru
      _
  $region6: #{fcn_forward.2} parent=0 // loop_footer
    %s17 = sadd.s32 1, %s13
  $region7: #{fcn_forward.2} parent=0 // loop_footer_branch
    %12 = sbr.rel target = $region3
  $region8: #{fcn_forward.2} parent=0 // loop_exit
    _

</llo_original>
